<compile_context>
chip_gen: v5e
topology: v5e:2x2
jax: 0.10.0
libtpu: 0.0.40
codegen_flags: <defaults>
</compile_context>

<pallas_src>
import functools

import jax
import jax.numpy as jnp
from jax.experimental import pallas as pl
from jax.experimental.pallas import tpu as pltpu


# ---------------------------------------------------------------------------
# Pallas kernel: per-image conv as a sum of tap matmuls + affine + LeakyReLU
# ---------------------------------------------------------------------------
def _conv_taps_kernel(x_ref, w_ref, scale_ref, shift_ref, o_ref, *,
                      kh, kw, we, m_rows, apply_leaky):
    """x_ref:     (He*We + kw - 1, Ce)  flattened padded image (bf16)
       w_ref:     (kh*kw, Ce, Coutp)    tap-stacked weights (bf16, resident)
       scale_ref: (1, Coutp) f32        folded BN scale (1 for plain conv)
       shift_ref: (1, Coutp) f32        folded BN shift (or conv bias)
       o_ref:     (OH*We, Coutp)        output rows (incl. kw-1 wrap cols/row)
    """
    acc = None
    for dy in range(kh):
        for dx in range(kw):
            off = dy * we + dx                       # static tap offset
            lhs = x_ref[off:off + m_rows, :]         # contiguous row window
            rhs = w_ref[dy * kw + dx]                # (Ce, Coutp)
            part = jnp.dot(lhs, rhs, preferred_element_type=jnp.float32)
            acc = part if acc is None else acc + part
    y = acc * scale_ref[...] + shift_ref[...]
    if apply_leaky:
        y = jnp.where(y >= 0, y, 0.2 * y)
    o_ref[...] = y.astype(o_ref.dtype)


# ---------------------------------------------------------------------------
# One Conv2d(k=4, pad=1, stride in {1,2}) (+ folded norm/bias, + LeakyReLU)
# ---------------------------------------------------------------------------
def _conv2d_pallas(x_nhwc, w_oihw, scale, shift, *, stride, apply_leaky,
                   out_dtype):
    N, H, W, Cin = x_nhwc.shape
    Cout = w_oihw.shape[0]

    xb = x_nhwc.astype(jnp.bfloat16)
    xp = jnp.pad(xb, ((0, 0), (1, 1), (1, 1), (0, 0)))

    if stride == 2:
        # TODO(synk): odd spatial sizes would need one extra zero row/col before
        # the space-to-depth; every stride-2 PatchGAN stage sees even sizes.
        assert H % 2 == 0 and W % 2 == 0, (H, W)
        Hp, Wp = H + 2, W + 2
        # space-to-depth(2): stride-2 4x4 conv -> stride-1 2x2 conv, Ce = 4*Cin
        xe = xp.reshape(N, Hp // 2, 2, Wp // 2, 2, Cin)
        xe = xe.transpose(0, 1, 3, 2, 4, 5).reshape(N, Hp // 2, Wp // 2, 4 * Cin)
        kh = kw = 2
        # (Cout,Cin,4,4) -> (co,ci,dy,p,dx,pw) -> (dy,dx,p,pw,ci,co) -> (4,4Cin,Cout)
        wt = w_oihw.reshape(Cout, Cin, 2, 2, 2, 2)
        wt = wt.transpose(2, 4, 3, 5, 1, 0).reshape(4, 4 * Cin, Cout)
    else:
        xe = xp
        kh = kw = 4
        wt = w_oihw.transpose(2, 3, 1, 0).reshape(16, Cin, Cout)

    _, He, We, Ce = xe.shape
    OH = He - kh + 1
    OW = We - kw + 1
    M = OH * We                       # kernel output rows (valid cols = :OW)
    R = He * We + (kw - 1)            # flat rows + tail pad so all taps fit

    xf = xe.reshape(N, He * We, Ce)
    xf = jnp.pad(xf, ((0, 0), (0, kw - 1), (0, 0)))

    # Lane-pad the tiny final projection head (Cout=1) to a full 128-lane
    # output (unmasked stores, MXU-shaped N); padded weight columns are zero.
    Cout_p = 128 if Cout < 8 else Cout
    if Cout_p != Cout:
        wt = jnp.pad(wt, ((0, 0), (0, 0), (0, Cout_p - Cout)))
        scale = jnp.pad(scale, (0, Cout_p - Cout))
        shift = jnp.pad(shift, (0, Cout_p - Cout))
    wt = wt.astype(jnp.bfloat16)
    scale2 = scale.reshape(1, Cout_p).astype(jnp.float32)
    shift2 = shift.reshape(1, Cout_p).astype(jnp.float32)

    kernel = functools.partial(_conv_taps_kernel, kh=kh, kw=kw, we=We,
                               m_rows=M, apply_leaky=apply_leaky)

    out = pl.pallas_call(
        kernel,
        grid=(N,),
        in_specs=[
            pl.BlockSpec((None, R, Ce), lambda n: (n, 0, 0)),          # image n
            pl.BlockSpec((kh * kw, Ce, Cout_p), lambda n: (0, 0, 0)),  # resident
            pl.BlockSpec((1, Cout_p), lambda n: (0, 0)),
            pl.BlockSpec((1, Cout_p), lambda n: (0, 0)),
        ],
        out_specs=pl.BlockSpec((None, M, Cout_p), lambda n: (n, 0, 0)),
        out_shape=jax.ShapeDtypeStruct((N, M, Cout_p), out_dtype),
        compiler_params=pltpu.CompilerParams(
            dimension_semantics=("parallel",),
            vmem_limit_bytes=48 * 1024 * 1024),
    )(xf, wt, scale2, shift2)

    # (N, OH*We, Coutp) -> (N, OH, OW, Cout): drop wrap cols and lane padding.
    return out.reshape(N, OH, We, Cout_p)[:, :, :OW, :Cout]


# ---------------------------------------------------------------------------
# Parameter construction (deterministic, synthetic), mirrors the nn.Module
# ---------------------------------------------------------------------------
def init_params(key, input_nc, ndf=64, n_layers=3):
    """Returns (params, cfg): params = list of dicts(w, scale, shift) (arrays),
    cfg = static tuple of (stride, leaky) per layer."""
    eps = 1e-5
    params, cfg = [], []

    def conv_w(k, cout, cin):
        return 0.02 * jax.random.normal(k, (cout, cin, 4, 4), jnp.float32)

    keys = jax.random.split(key, 64)
    ki = 0

    def bn_fold(k0, k1, k2, k3, cout):
        gamma = 1.0 + 0.1 * jax.random.normal(k0, (cout,), jnp.float32)
        beta = 0.05 * jax.random.normal(k1, (cout,), jnp.float32)
        rmean = 0.05 * jax.random.normal(k2, (cout,), jnp.float32)
        rvar = 1.0 + 0.1 * jnp.abs(jax.random.normal(k3, (cout,), jnp.float32))
        s = gamma / jnp.sqrt(rvar + eps)
        return s, beta - rmean * s

    # layer 0: conv(input_nc -> ndf, stride 2, bias) + LeakyReLU
    w = conv_w(keys[ki], ndf, input_nc); ki += 1
    b = 0.01 * jax.random.normal(keys[ki], (ndf,), jnp.float32); ki += 1
    params.append(dict(w=w, scale=jnp.ones((ndf,), jnp.float32), shift=b))
    cfg.append((2, True))

    nf_mult = 1
    for n in range(1, n_layers):
        nf_prev, nf_mult = nf_mult, min(2 ** n, 8)
        cin, cout = ndf * nf_prev, ndf * nf_mult
        w = conv_w(keys[ki], cout, cin); ki += 1
        s, sh = bn_fold(keys[ki], keys[ki + 1], keys[ki + 2], keys[ki + 3], cout)
        ki += 4
        params.append(dict(w=w, scale=s, shift=sh))
        cfg.append((2, True))

    nf_prev, nf_mult = nf_mult, min(2 ** n_layers, 8)
    cin, cout = ndf * nf_prev, ndf * nf_mult
    w = conv_w(keys[ki], cout, cin); ki += 1
    s, sh = bn_fold(keys[ki], keys[ki + 1], keys[ki + 2], keys[ki + 3], cout)
    ki += 4
    params.append(dict(w=w, scale=s, shift=sh))
    cfg.append((1, True))

    # final: conv(ndf*nf_mult -> 1, stride 1, bias), no activation
    w = conv_w(keys[ki], 1, ndf * nf_mult); ki += 1
    b = 0.01 * jax.random.normal(keys[ki], (1,), jnp.float32); ki += 1
    params.append(dict(w=w, scale=jnp.ones((1,), jnp.float32), shift=b))
    cfg.append((1, False))

    return params, tuple(cfg)


# ---------------------------------------------------------------------------
# Forward: NCHW in, NCHW out (matches the PyTorch module)
# ---------------------------------------------------------------------------
@functools.partial(jax.jit, static_argnums=(2,))
def nlayer_discriminator_forward(params, x_nchw, cfg):
    x = jnp.transpose(x_nchw, (0, 2, 3, 1))            # NCHW -> NHWC
    last = len(cfg) - 1
    for i, (layer, (stride, leaky)) in enumerate(zip(params, cfg)):
        x = _conv2d_pallas(x, layer["w"], layer["scale"], layer["shift"],
                           stride=stride, apply_leaky=leaky,
                           out_dtype=jnp.float32 if i == last else jnp.bfloat16)
    return jnp.transpose(x.astype(jnp.float32), (0, 3, 1, 2))  # NHWC -> NCHW


def _reference_forward(params, x_nchw, cfg):
    """Pure-XLA f32 reference (same eval-mode folded-BN semantics)."""
    x = jnp.transpose(x_nchw, (0, 2, 3, 1)).astype(jnp.float32)
    for layer, (stride, leaky) in zip(params, cfg):
        y = jax.lax.conv_general_dilated(
            x, layer["w"], window_strides=(stride, stride),
            padding=((1, 1), (1, 1)),
            dimension_numbers=("NHWC", "OIHW", "NHWC"))
        y = y * layer["scale"][None, None, None, :] \
              + layer["shift"][None, None, None, :]
        if leaky:
            y = jnp.where(y >= 0, y, 0.2 * y)
        x = y
    return jnp.transpose(x, (0, 3, 1, 2))


if __name__ == "__main__":
    key = jax.random.PRNGKey(0)
    k_in, k_par = jax.random.split(key)

    # Small shapes consistent with the module: the 5-conv PatchGAN stack needs
    # spatial >= 32 to keep every stage's output size positive.
    N, C, H, W = 2, 4, 32, 32
    ndf, n_layers = 8, 3

    x = jax.random.normal(k_in, (N, C, H, W), jnp.float32)
    params, cfg = init_params(k_par, input_nc=C, ndf=ndf, n_layers=n_layers)

    out = nlayer_discriminator_forward(params, x, cfg)
    out = jax.block_until_ready(out)

    # Expected PatchGAN output: (N, 1, 2, 2) for 32x32 input
    assert out.shape == (N, 1, 2, 2), out.shape

    # Loose sanity check (bf16 MXU path vs f32 XLA reference)
    ref = _reference_forward(params, x, cfg)
    err = float(jnp.max(jnp.abs(out - ref)))
    mag = float(jnp.max(jnp.abs(ref))) + 1e-6
    assert err <= 0.1 * mag, (err, mag)

    print("KERNEL_OK")
</pallas_src>

<mosaic_0001>
module attributes {stable_mosaic.version = 11 : i64} {
  func.func @_conv_taps_kernel(%arg0: i32, %arg1: memref<1x290x16xbf16, #tpu.memory_space<vmem>>, %arg2: memref<4x16x8xbf16, #tpu.memory_space<vmem>>, %arg3: memref<1x8xf32, #tpu.memory_space<vmem>>, %arg4: memref<1x8xf32, #tpu.memory_space<vmem>>, %arg5: memref<1x272x8xbf16, #tpu.memory_space<vmem>>) attributes {dimension_semantics = [#tpu.dimension_semantics<parallel>], iteration_bounds = array<i64: 2>, scalar_prefetch = 0 : i64, scratch_operands = 0 : i64, tpu.core_type = #tpu.core_type<tc>, window_params = [{transform_indices = @transform_0, window_bounds = array<i64: 1, 290, 16>}, {pipeline_mode = #tpu.pipeline_mode<synchronous>, transform_indices = @transform_1, window_bounds = array<i64: 4, 16, 8>}, {pipeline_mode = #tpu.pipeline_mode<synchronous>, transform_indices = @transform_2, window_bounds = array<i64: 1, 8>}, {pipeline_mode = #tpu.pipeline_mode<synchronous>, transform_indices = @transform_3, window_bounds = array<i64: 1, 8>}, {transform_indices = @transform_4, window_bounds = array<i64: 1, 272, 8>}]} {
    %c0 = arith.constant 0 : index
    %c0_0 = arith.constant 0 : index
    %c0_1 = arith.constant 0 : index
    %0 = vector.load %arg1[%c0, %c0_0, %c0_1] : memref<1x290x16xbf16, #tpu.memory_space<vmem>>, vector<1x272x16xbf16>
    %1 = vector.shape_cast %0 : vector<1x272x16xbf16> to vector<272x16xbf16>
    %c0_2 = arith.constant 0 : index
    %c0_3 = arith.constant 0 : index
    %c0_4 = arith.constant 0 : index
    %2 = vector.load %arg2[%c0_2, %c0_3, %c0_4] : memref<4x16x8xbf16, #tpu.memory_space<vmem>>, vector<1x16x8xbf16>
    %3 = vector.shape_cast %2 : vector<1x16x8xbf16> to vector<16x8xbf16>
    %cst = arith.constant dense<0.000000e+00> : vector<272x8xf32>
    %4 = tpu.matmul %1, %3, %cst {dimension_numbers = #tpu.dot_dimension_numbers<[1], [0], [0], [1], [0, 0, 1, 1], [], []>} : vector<272x16xbf16>, vector<16x8xbf16>, vector<272x8xf32> -> vector<272x8xf32>
    %c0_5 = arith.constant 0 : index
    %c1 = arith.constant 1 : index
    %c0_6 = arith.constant 0 : index
    %5 = vector.load %arg1[%c0_5, %c1, %c0_6] : memref<1x290x16xbf16, #tpu.memory_space<vmem>>, vector<1x272x16xbf16>
    %6 = vector.shape_cast %5 : vector<1x272x16xbf16> to vector<272x16xbf16>
    %c1_7 = arith.constant 1 : index
    %c0_8 = arith.constant 0 : index
    %c0_9 = arith.constant 0 : index
    %7 = vector.load %arg2[%c1_7, %c0_8, %c0_9] : memref<4x16x8xbf16, #tpu.memory_space<vmem>>, vector<1x16x8xbf16>
    %8 = vector.shape_cast %7 : vector<1x16x8xbf16> to vector<16x8xbf16>
    %cst_10 = arith.constant dense<0.000000e+00> : vector<272x8xf32>
    %9 = tpu.matmul %6, %8, %cst_10 {dimension_numbers = #tpu.dot_dimension_numbers<[1], [0], [0], [1], [0, 0, 1, 1], [], []>} : vector<272x16xbf16>, vector<16x8xbf16>, vector<272x8xf32> -> vector<272x8xf32>
    %10 = arith.addf %4, %9 : vector<272x8xf32>
    %c0_11 = arith.constant 0 : index
    %c17 = arith.constant 17 : index
    %c0_12 = arith.constant 0 : index
    %11 = vector.load %arg1[%c0_11, %c17, %c0_12] : memref<1x290x16xbf16, #tpu.memory_space<vmem>>, vector<1x272x16xbf16>
    %12 = vector.shape_cast %11 : vector<1x272x16xbf16> to vector<272x16xbf16>
    %c2 = arith.constant 2 : index
    %c0_13 = arith.constant 0 : index
    %c0_14 = arith.constant 0 : index
    %13 = vector.load %arg2[%c2, %c0_13, %c0_14] : memref<4x16x8xbf16, #tpu.memory_space<vmem>>, vector<1x16x8xbf16>
    %14 = vector.shape_cast %13 : vector<1x16x8xbf16> to vector<16x8xbf16>
    %cst_15 = arith.constant dense<0.000000e+00> : vector<272x8xf32>
    %15 = tpu.matmul %12, %14, %cst_15 {dimension_numbers = #tpu.dot_dimension_numbers<[1], [0], [0], [1], [0, 0, 1, 1], [], []>} : vector<272x16xbf16>, vector<16x8xbf16>, vector<272x8xf32> -> vector<272x8xf32>
    %16 = arith.addf %10, %15 : vector<272x8xf32>
    %c0_16 = arith.constant 0 : index
    %c18 = arith.constant 18 : index
    %c0_17 = arith.constant 0 : index
    %17 = vector.load %arg1[%c0_16, %c18, %c0_17] : memref<1x290x16xbf16, #tpu.memory_space<vmem>>, vector<1x272x16xbf16>
    %18 = vector.shape_cast %17 : vector<1x272x16xbf16> to vector<272x16xbf16>
    %c3 = arith.constant 3 : index
    %c0_18 = arith.constant 0 : index
    %c0_19 = arith.constant 0 : index
    %19 = vector.load %arg2[%c3, %c0_18, %c0_19] : memref<4x16x8xbf16, #tpu.memory_space<vmem>>, vector<1x16x8xbf16>
    %20 = vector.shape_cast %19 : vector<1x16x8xbf16> to vector<16x8xbf16>
    %cst_20 = arith.constant dense<0.000000e+00> : vector<272x8xf32>
    %21 = tpu.matmul %18, %20, %cst_20 {dimension_numbers = #tpu.dot_dimension_numbers<[1], [0], [0], [1], [0, 0, 1, 1], [], []>} : vector<272x16xbf16>, vector<16x8xbf16>, vector<272x8xf32> -> vector<272x8xf32>
    %22 = arith.addf %16, %21 : vector<272x8xf32>
    %c0_21 = arith.constant 0 : index
    %c0_22 = arith.constant 0 : index
    %23 = vector.load %arg3[%c0_21, %c0_22] : memref<1x8xf32, #tpu.memory_space<vmem>>, vector<1x8xf32>
    %24 = vector.broadcast %23 : vector<1x8xf32> to vector<272x8xf32>
    %25 = arith.mulf %22, %24 : vector<272x8xf32>
    %c0_23 = arith.constant 0 : index
    %c0_24 = arith.constant 0 : index
    %26 = vector.load %arg4[%c0_23, %c0_24] : memref<1x8xf32, #tpu.memory_space<vmem>>, vector<1x8xf32>
    %27 = vector.broadcast %26 : vector<1x8xf32> to vector<272x8xf32>
    %28 = arith.addf %25, %27 : vector<272x8xf32>
    %cst_25 = arith.constant 0.000000e+00 : f32
    %29 = vector.broadcast %cst_25 : f32 to vector<272x8xf32>
    %30 = arith.cmpf oge, %28, %29 : vector<272x8xf32>
    %cst_26 = arith.constant 2.000000e-01 : f32
    %31 = vector.broadcast %cst_26 : f32 to vector<272x8xf32>
    %32 = arith.mulf %31, %28 : vector<272x8xf32>
    %33 = arith.select %30, %28, %32 : vector<272x8xi1>, vector<272x8xf32>
    %34 = arith.truncf %33 : vector<272x8xf32> to vector<272x8xbf16>
    %c0_27 = arith.constant 0 : index
    %c0_28 = arith.constant 0 : index
    %c0_29 = arith.constant 0 : index
    %35 = vector.load %arg5[%c0_27, %c0_28, %c0_29] : memref<1x272x8xbf16, #tpu.memory_space<vmem>>, vector<1x272x8xbf16>
    %36 = vector.shape_cast %35 : vector<1x272x8xbf16> to vector<272x8xbf16>
    %37 = vector.shape_cast %34 : vector<272x8xbf16> to vector<1x272x8xbf16>
    tpu.vector_store %arg5[%c0_27, %c0_28, %c0_29], %37 {strides = array<i32>} : memref<1x272x8xbf16, #tpu.memory_space<vmem>>, vector<1x272x8xbf16>,
    return
  }
  func.func @transform_0(%arg0: i32) -> (i32, i32, i32) {
    %c0_i32 = arith.constant 0 : i32
    %c0_i32_0 = arith.constant 0 : i32
    %c0_i32_1 = arith.constant 0 : i32
    return %arg0, %c0_i32, %c0_i32_0 : i32, i32, i32
  }
  func.func @transform_1(%arg0: i32) -> (i32, i32, i32) {
    %c0_i32 = arith.constant 0 : i32
    %c0_i32_0 = arith.constant 0 : i32
    %c0_i32_1 = arith.constant 0 : i32
    %c0_i32_2 = arith.constant 0 : i32
    return %c0_i32, %c0_i32_0, %c0_i32_1 : i32, i32, i32
  }
  func.func @transform_2(%arg0: i32) -> (i32, i32) {
    %c0_i32 = arith.constant 0 : i32
    %c0_i32_0 = arith.constant 0 : i32
    %c0_i32_1 = arith.constant 0 : i32
    return %c0_i32, %c0_i32_0 : i32, i32
  }
  func.func @transform_3(%arg0: i32) -> (i32, i32) {
    %c0_i32 = arith.constant 0 : i32
    %c0_i32_0 = arith.constant 0 : i32
    %c0_i32_1 = arith.constant 0 : i32
    return %c0_i32, %c0_i32_0 : i32, i32
  }
  func.func @transform_4(%arg0: i32) -> (i32, i32, i32) {
    %c0_i32 = arith.constant 0 : i32
    %c0_i32_0 = arith.constant 0 : i32
    %c0_i32_1 = arith.constant 0 : i32
    return %arg0, %c0_i32, %c0_i32_0 : i32, i32, i32
  }
}

module attributes {stable_mosaic.version = 11 : i64} {
  func.func @_conv_taps_kernel(%arg0: i32, %arg1: memref<1x82x32xbf16, #tpu.memory_space<vmem>>, %arg2: memref<4x32x16xbf16, #tpu.memory_space<vmem>>, %arg3: memref<1x16xf32, #tpu.memory_space<vmem>>, %arg4: memref<1x16xf32, #tpu.memory_space<vmem>>, %arg5: memref<1x72x16xbf16, #tpu.memory_space<vmem>>) attributes {dimension_semantics = [#tpu.dimension_semantics<parallel>], iteration_bounds = array<i64: 2>, scalar_prefetch = 0 : i64, scratch_operands = 0 : i64, tpu.core_type = #tpu.core_type<tc>, window_params = [{transform_indices = @transform_0, window_bounds = array<i64: 1, 82, 32>}, {pipeline_mode = #tpu.pipeline_mode<synchronous>, transform_indices = @transform_1, window_bounds = array<i64: 4, 32, 16>}, {pipeline_mode = #tpu.pipeline_mode<synchronous>, transform_indices = @transform_2, window_bounds = array<i64: 1, 16>}, {pipeline_mode = #tpu.pipeline_mode<synchronous>, transform_indices = @transform_3, window_bounds = array<i64: 1, 16>}, {transform_indices = @transform_4, window_bounds = array<i64: 1, 72, 16>}]} {
    %c0 = arith.constant 0 : index
    %c0_0 = arith.constant 0 : index
    %c0_1 = arith.constant 0 : index
    %0 = vector.load %arg1[%c0, %c0_0, %c0_1] : memref<1x82x32xbf16, #tpu.memory_space<vmem>>, vector<1x72x32xbf16>
    %1 = vector.shape_cast %0 : vector<1x72x32xbf16> to vector<72x32xbf16>
    %c0_2 = arith.constant 0 : index
    %c0_3 = arith.constant 0 : index
    %c0_4 = arith.constant 0 : index
    %2 = vector.load %arg2[%c0_2, %c0_3, %c0_4] : memref<4x32x16xbf16, #tpu.memory_space<vmem>>, vector<1x32x16xbf16>
    %3 = vector.shape_cast %2 : vector<1x32x16xbf16> to vector<32x16xbf16>
    %cst = arith.constant dense<0.000000e+00> : vector<72x16xf32>
    %4 = tpu.matmul %1, %3, %cst {dimension_numbers = #tpu.dot_dimension_numbers<[1], [0], [0], [1], [0, 0, 1, 1], [], []>} : vector<72x32xbf16>, vector<32x16xbf16>, vector<72x16xf32> -> vector<72x16xf32>
    %c0_5 = arith.constant 0 : index
    %c1 = arith.constant 1 : index
    %c0_6 = arith.constant 0 : index
    %5 = vector.load %arg1[%c0_5, %c1, %c0_6] : memref<1x82x32xbf16, #tpu.memory_space<vmem>>, vector<1x72x32xbf16>
    %6 = vector.shape_cast %5 : vector<1x72x32xbf16> to vector<72x32xbf16>
    %c1_7 = arith.constant 1 : index
    %c0_8 = arith.constant 0 : index
    %c0_9 = arith.constant 0 : index
    %7 = vector.load %arg2[%c1_7, %c0_8, %c0_9] : memref<4x32x16xbf16, #tpu.memory_space<vmem>>, vector<1x32x16xbf16>
    %8 = vector.shape_cast %7 : vector<1x32x16xbf16> to vector<32x16xbf16>
    %cst_10 = arith.constant dense<0.000000e+00> : vector<72x16xf32>
    %9 = tpu.matmul %6, %8, %cst_10 {dimension_numbers = #tpu.dot_dimension_numbers<[1], [0], [0], [1], [0, 0, 1, 1], [], []>} : vector<72x32xbf16>, vector<32x16xbf16>, vector<72x16xf32> -> vector<72x16xf32>
    %10 = arith.addf %4, %9 : vector<72x16xf32>
    %c0_11 = arith.constant 0 : index
    %c9 = arith.constant 9 : index
    %c0_12 = arith.constant 0 : index
    %11 = vector.load %arg1[%c0_11, %c9, %c0_12] : memref<1x82x32xbf16, #tpu.memory_space<vmem>>, vector<1x72x32xbf16>
    %12 = vector.shape_cast %11 : vector<1x72x32xbf16> to vector<72x32xbf16>
    %c2 = arith.constant 2 : index
    %c0_13 = arith.constant 0 : index
    %c0_14 = arith.constant 0 : index
    %13 = vector.load %arg2[%c2, %c0_13, %c0_14] : memref<4x32x16xbf16, #tpu.memory_space<vmem>>, vector<1x32x16xbf16>
    %14 = vector.shape_cast %13 : vector<1x32x16xbf16> to vector<32x16xbf16>
    %cst_15 = arith.constant dense<0.000000e+00> : vector<72x16xf32>
    %15 = tpu.matmul %12, %14, %cst_15 {dimension_numbers = #tpu.dot_dimension_numbers<[1], [0], [0], [1], [0, 0, 1, 1], [], []>} : vector<72x32xbf16>, vector<32x16xbf16>, vector<72x16xf32> -> vector<72x16xf32>
    %16 = arith.addf %10, %15 : vector<72x16xf32>
    %c0_16 = arith.constant 0 : index
    %c10 = arith.constant 10 : index
    %c0_17 = arith.constant 0 : index
    %17 = vector.load %arg1[%c0_16, %c10, %c0_17] : memref<1x82x32xbf16, #tpu.memory_space<vmem>>, vector<1x72x32xbf16>
    %18 = vector.shape_cast %17 : vector<1x72x32xbf16> to vector<72x32xbf16>
    %c3 = arith.constant 3 : index
    %c0_18 = arith.constant 0 : index
    %c0_19 = arith.constant 0 : index
    %19 = vector.load %arg2[%c3, %c0_18, %c0_19] : memref<4x32x16xbf16, #tpu.memory_space<vmem>>, vector<1x32x16xbf16>
    %20 = vector.shape_cast %19 : vector<1x32x16xbf16> to vector<32x16xbf16>
    %cst_20 = arith.constant dense<0.000000e+00> : vector<72x16xf32>
    %21 = tpu.matmul %18, %20, %cst_20 {dimension_numbers = #tpu.dot_dimension_numbers<[1], [0], [0], [1], [0, 0, 1, 1], [], []>} : vector<72x32xbf16>, vector<32x16xbf16>, vector<72x16xf32> -> vector<72x16xf32>
    %22 = arith.addf %16, %21 : vector<72x16xf32>
    %c0_21 = arith.constant 0 : index
    %c0_22 = arith.constant 0 : index
    %23 = vector.load %arg3[%c0_21, %c0_22] : memref<1x16xf32, #tpu.memory_space<vmem>>, vector<1x16xf32>
    %24 = vector.broadcast %23 : vector<1x16xf32> to vector<72x16xf32>
    %25 = arith.mulf %22, %24 : vector<72x16xf32>
    %c0_23 = arith.constant 0 : index
    %c0_24 = arith.constant 0 : index
    %26 = vector.load %arg4[%c0_23, %c0_24] : memref<1x16xf32, #tpu.memory_space<vmem>>, vector<1x16xf32>
    %27 = vector.broadcast %26 : vector<1x16xf32> to vector<72x16xf32>
    %28 = arith.addf %25, %27 : vector<72x16xf32>
    %cst_25 = arith.constant 0.000000e+00 : f32
    %29 = vector.broadcast %cst_25 : f32 to vector<72x16xf32>
    %30 = arith.cmpf oge, %28, %29 : vector<72x16xf32>
    %cst_26 = arith.constant 2.000000e-01 : f32
    %31 = vector.broadcast %cst_26 : f32 to vector<72x16xf32>
    %32 = arith.mulf %31, %28 : vector<72x16xf32>
    %33 = arith.select %30, %28, %32 : vector<72x16xi1>, vector<72x16xf32>
    %34 = arith.truncf %33 : vector<72x16xf32> to vector<72x16xbf16>
    %c0_27 = arith.constant 0 : index
    %c0_28 = arith.constant 0 : index
    %c0_29 = arith.constant 0 : index
    %35 = vector.load %arg5[%c0_27, %c0_28, %c0_29] : memref<1x72x16xbf16, #tpu.memory_space<vmem>>, vector<1x72x16xbf16>
    %36 = vector.shape_cast %35 : vector<1x72x16xbf16> to vector<72x16xbf16>
    %37 = vector.shape_cast %34 : vector<72x16xbf16> to vector<1x72x16xbf16>
    tpu.vector_store %arg5[%c0_27, %c0_28, %c0_29], %37 {strides = array<i32>} : memref<1x72x16xbf16, #tpu.memory_space<vmem>>, vector<1x72x16xbf16>,
    return
  }
  func.func @transform_0(%arg0: i32) -> (i32, i32, i32) {
    %c0_i32 = arith.constant 0 : i32
    %c0_i32_0 = arith.constant 0 : i32
    %c0_i32_1 = arith.constant 0 : i32
    return %arg0, %c0_i32, %c0_i32_0 : i32, i32, i32
  }
  func.func @transform_1(%arg0: i32) -> (i32, i32, i32) {
    %c0_i32 = arith.constant 0 : i32
    %c0_i32_0 = arith.constant 0 : i32
    %c0_i32_1 = arith.constant 0 : i32
    %c0_i32_2 = arith.constant 0 : i32
    return %c0_i32, %c0_i32_0, %c0_i32_1 : i32, i32, i32
  }
  func.func @transform_2(%arg0: i32) -> (i32, i32) {
    %c0_i32 = arith.constant 0 : i32
    %c0_i32_0 = arith.constant 0 : i32
    %c0_i32_1 = arith.constant 0 : i32
    return %c0_i32, %c0_i32_0 : i32, i32
  }
  func.func @transform_3(%arg0: i32) -> (i32, i32) {
    %c0_i32 = arith.constant 0 : i32
    %c0_i32_0 = arith.constant 0 : i32
    %c0_i32_1 = arith.constant 0 : i32
    return %c0_i32, %c0_i32_0 : i32, i32
  }
  func.func @transform_4(%arg0: i32) -> (i32, i32, i32) {
    %c0_i32 = arith.constant 0 : i32
    %c0_i32_0 = arith.constant 0 : i32
    %c0_i32_1 = arith.constant 0 : i32
    return %arg0, %c0_i32, %c0_i32_0 : i32, i32, i32
  }
}

module attributes {stable_mosaic.version = 11 : i64} {
  func.func @_conv_taps_kernel(%arg0: i32, %arg1: memref<1x26x64xbf16, #tpu.memory_space<vmem>>, %arg2: memref<4x64x32xbf16, #tpu.memory_space<vmem>>, %arg3: memref<1x32xf32, #tpu.memory_space<vmem>>, %arg4: memref<1x32xf32, #tpu.memory_space<vmem>>, %arg5: memref<1x20x32xbf16, #tpu.memory_space<vmem>>) attributes {dimension_semantics = [#tpu.dimension_semantics<parallel>], iteration_bounds = array<i64: 2>, scalar_prefetch = 0 : i64, scratch_operands = 0 : i64, tpu.core_type = #tpu.core_type<tc>, window_params = [{transform_indices = @transform_0, window_bounds = array<i64: 1, 26, 64>}, {pipeline_mode = #tpu.pipeline_mode<synchronous>, transform_indices = @transform_1, window_bounds = array<i64: 4, 64, 32>}, {pipeline_mode = #tpu.pipeline_mode<synchronous>, transform_indices = @transform_2, window_bounds = array<i64: 1, 32>}, {pipeline_mode = #tpu.pipeline_mode<synchronous>, transform_indices = @transform_3, window_bounds = array<i64: 1, 32>}, {transform_indices = @transform_4, window_bounds = array<i64: 1, 20, 32>}]} {
    %c0 = arith.constant 0 : index
    %c0_0 = arith.constant 0 : index
    %c0_1 = arith.constant 0 : index
    %0 = vector.load %arg1[%c0, %c0_0, %c0_1] : memref<1x26x64xbf16, #tpu.memory_space<vmem>>, vector<1x20x64xbf16>
    %1 = vector.shape_cast %0 : vector<1x20x64xbf16> to vector<20x64xbf16>
    %c0_2 = arith.constant 0 : index
    %c0_3 = arith.constant 0 : index
    %c0_4 = arith.constant 0 : index
    %2 = vector.load %arg2[%c0_2, %c0_3, %c0_4] : memref<4x64x32xbf16, #tpu.memory_space<vmem>>, vector<1x64x32xbf16>
    %3 = vector.shape_cast %2 : vector<1x64x32xbf16> to vector<64x32xbf16>
    %cst = arith.constant dense<0.000000e+00> : vector<20x32xf32>
    %4 = tpu.matmul %1, %3, %cst {dimension_numbers = #tpu.dot_dimension_numbers<[1], [0], [0], [1], [0, 0, 1, 1], [], []>} : vector<20x64xbf16>, vector<64x32xbf16>, vector<20x32xf32> -> vector<20x32xf32>
    %c0_5 = arith.constant 0 : index
    %c1 = arith.constant 1 : index
    %c0_6 = arith.constant 0 : index
    %5 = vector.load %arg1[%c0_5, %c1, %c0_6] : memref<1x26x64xbf16, #tpu.memory_space<vmem>>, vector<1x20x64xbf16>
    %6 = vector.shape_cast %5 : vector<1x20x64xbf16> to vector<20x64xbf16>
    %c1_7 = arith.constant 1 : index
    %c0_8 = arith.constant 0 : index
    %c0_9 = arith.constant 0 : index
    %7 = vector.load %arg2[%c1_7, %c0_8, %c0_9] : memref<4x64x32xbf16, #tpu.memory_space<vmem>>, vector<1x64x32xbf16>
    %8 = vector.shape_cast %7 : vector<1x64x32xbf16> to vector<64x32xbf16>
    %cst_10 = arith.constant dense<0.000000e+00> : vector<20x32xf32>
    %9 = tpu.matmul %6, %8, %cst_10 {dimension_numbers = #tpu.dot_dimension_numbers<[1], [0], [0], [1], [0, 0, 1, 1], [], []>} : vector<20x64xbf16>, vector<64x32xbf16>, vector<20x32xf32> -> vector<20x32xf32>
    %10 = arith.addf %4, %9 : vector<20x32xf32>
    %c0_11 = arith.constant 0 : index
    %c5 = arith.constant 5 : index
    %c0_12 = arith.constant 0 : index
    %11 = vector.load %arg1[%c0_11, %c5, %c0_12] : memref<1x26x64xbf16, #tpu.memory_space<vmem>>, vector<1x20x64xbf16>
    %12 = vector.shape_cast %11 : vector<1x20x64xbf16> to vector<20x64xbf16>
    %c2 = arith.constant 2 : index
    %c0_13 = arith.constant 0 : index
    %c0_14 = arith.constant 0 : index
    %13 = vector.load %arg2[%c2, %c0_13, %c0_14] : memref<4x64x32xbf16, #tpu.memory_space<vmem>>, vector<1x64x32xbf16>
    %14 = vector.shape_cast %13 : vector<1x64x32xbf16> to vector<64x32xbf16>
    %cst_15 = arith.constant dense<0.000000e+00> : vector<20x32xf32>
    %15 = tpu.matmul %12, %14, %cst_15 {dimension_numbers = #tpu.dot_dimension_numbers<[1], [0], [0], [1], [0, 0, 1, 1], [], []>} : vector<20x64xbf16>, vector<64x32xbf16>, vector<20x32xf32> -> vector<20x32xf32>
    %16 = arith.addf %10, %15 : vector<20x32xf32>
    %c0_16 = arith.constant 0 : index
    %c6 = arith.constant 6 : index
    %c0_17 = arith.constant 0 : index
    %17 = vector.load %arg1[%c0_16, %c6, %c0_17] : memref<1x26x64xbf16, #tpu.memory_space<vmem>>, vector<1x20x64xbf16>
    %18 = vector.shape_cast %17 : vector<1x20x64xbf16> to vector<20x64xbf16>
    %c3 = arith.constant 3 : index
    %c0_18 = arith.constant 0 : index
    %c0_19 = arith.constant 0 : index
    %19 = vector.load %arg2[%c3, %c0_18, %c0_19] : memref<4x64x32xbf16, #tpu.memory_space<vmem>>, vector<1x64x32xbf16>
    %20 = vector.shape_cast %19 : vector<1x64x32xbf16> to vector<64x32xbf16>
    %cst_20 = arith.constant dense<0.000000e+00> : vector<20x32xf32>
    %21 = tpu.matmul %18, %20, %cst_20 {dimension_numbers = #tpu.dot_dimension_numbers<[1], [0], [0], [1], [0, 0, 1, 1], [], []>} : vector<20x64xbf16>, vector<64x32xbf16>, vector<20x32xf32> -> vector<20x32xf32>
    %22 = arith.addf %16, %21 : vector<20x32xf32>
    %c0_21 = arith.constant 0 : index
    %c0_22 = arith.constant 0 : index
    %23 = vector.load %arg3[%c0_21, %c0_22] : memref<1x32xf32, #tpu.memory_space<vmem>>, vector<1x32xf32>
    %24 = vector.broadcast %23 : vector<1x32xf32> to vector<20x32xf32>
    %25 = arith.mulf %22, %24 : vector<20x32xf32>
    %c0_23 = arith.constant 0 : index
    %c0_24 = arith.constant 0 : index
    %26 = vector.load %arg4[%c0_23, %c0_24] : memref<1x32xf32, #tpu.memory_space<vmem>>, vector<1x32xf32>
    %27 = vector.broadcast %26 : vector<1x32xf32> to vector<20x32xf32>
    %28 = arith.addf %25, %27 : vector<20x32xf32>
    %cst_25 = arith.constant 0.000000e+00 : f32
    %29 = vector.broadcast %cst_25 : f32 to vector<20x32xf32>
    %30 = arith.cmpf oge, %28, %29 : vector<20x32xf32>
    %cst_26 = arith.constant 2.000000e-01 : f32
    %31 = vector.broadcast %cst_26 : f32 to vector<20x32xf32>
    %32 = arith.mulf %31, %28 : vector<20x32xf32>
    %33 = arith.select %30, %28, %32 : vector<20x32xi1>, vector<20x32xf32>
    %34 = arith.truncf %33 : vector<20x32xf32> to vector<20x32xbf16>
    %c0_27 = arith.constant 0 : index
    %c0_28 = arith.constant 0 : index
    %c0_29 = arith.constant 0 : index
    %35 = vector.load %arg5[%c0_27, %c0_28, %c0_29] : memref<1x20x32xbf16, #tpu.memory_space<vmem>>, vector<1x20x32xbf16>
    %36 = vector.shape_cast %35 : vector<1x20x32xbf16> to vector<20x32xbf16>
    %37 = vector.shape_cast %34 : vector<20x32xbf16> to vector<1x20x32xbf16>
    tpu.vector_store %arg5[%c0_27, %c0_28, %c0_29], %37 {strides = array<i32>} : memref<1x20x32xbf16, #tpu.memory_space<vmem>>, vector<1x20x32xbf16>,
    return
  }
  func.func @transform_0(%arg0: i32) -> (i32, i32, i32) {
    %c0_i32 = arith.constant 0 : i32
    %c0_i32_0 = arith.constant 0 : i32
    %c0_i32_1 = arith.constant 0 : i32
    return %arg0, %c0_i32, %c0_i32_0 : i32, i32, i32
  }
  func.func @transform_1(%arg0: i32) -> (i32, i32, i32) {
    %c0_i32 = arith.constant 0 : i32
    %c0_i32_0 = arith.constant 0 : i32
    %c0_i32_1 = arith.constant 0 : i32
    %c0_i32_2 = arith.constant 0 : i32
    return %c0_i32, %c0_i32_0, %c0_i32_1 : i32, i32, i32
  }
  func.func @transform_2(%arg0: i32) -> (i32, i32) {
    %c0_i32 = arith.constant 0 : i32
    %c0_i32_0 = arith.constant 0 : i32
    %c0_i32_1 = arith.constant 0 : i32
    return %c0_i32, %c0_i32_0 : i32, i32
  }
  func.func @transform_3(%arg0: i32) -> (i32, i32) {
    %c0_i32 = arith.constant 0 : i32
    %c0_i32_0 = arith.constant 0 : i32
    %c0_i32_1 = arith.constant 0 : i32
    return %c0_i32, %c0_i32_0 : i32, i32
  }
  func.func @transform_4(%arg0: i32) -> (i32, i32, i32) {
    %c0_i32 = arith.constant 0 : i32
    %c0_i32_0 = arith.constant 0 : i32
    %c0_i32_1 = arith.constant 0 : i32
    return %arg0, %c0_i32, %c0_i32_0 : i32, i32, i32
  }
}

module attributes {stable_mosaic.version = 11 : i64} {
  func.func @_conv_taps_kernel(%arg0: i32, %arg1: memref<1x39x32xbf16, #tpu.memory_space<vmem>>, %arg2: memref<16x32x64xbf16, #tpu.memory_space<vmem>>, %arg3: memref<1x64xf32, #tpu.memory_space<vmem>>, %arg4: memref<1x64xf32, #tpu.memory_space<vmem>>, %arg5: memref<1x18x64xbf16, #tpu.memory_space<vmem>>) attributes {dimension_semantics = [#tpu.dimension_semantics<parallel>], iteration_bounds = array<i64: 2>, scalar_prefetch = 0 : i64, scratch_operands = 0 : i64, tpu.core_type = #tpu.core_type<tc>, window_params = [{transform_indices = @transform_0, window_bounds = array<i64: 1, 39, 32>}, {pipeline_mode = #tpu.pipeline_mode<synchronous>, transform_indices = @transform_1, window_bounds = array<i64: 16, 32, 64>}, {pipeline_mode = #tpu.pipeline_mode<synchronous>, transform_indices = @transform_2, window_bounds = array<i64: 1, 64>}, {pipeline_mode = #tpu.pipeline_mode<synchronous>, transform_indices = @transform_3, window_bounds = array<i64: 1, 64>}, {transform_indices = @transform_4, window_bounds = array<i64: 1, 18, 64>}]} {
    %c0 = arith.constant 0 : index
    %c0_0 = arith.constant 0 : index
    %c0_1 = arith.constant 0 : index
    %0 = vector.load %arg1[%c0, %c0_0, %c0_1] : memref<1x39x32xbf16, #tpu.memory_space<vmem>>, vector<1x18x32xbf16>
    %1 = vector.shape_cast %0 : vector<1x18x32xbf16> to vector<18x32xbf16>
    %c0_2 = arith.constant 0 : index
    %c0_3 = arith.constant 0 : index
    %c0_4 = arith.constant 0 : index
    %2 = vector.load %arg2[%c0_2, %c0_3, %c0_4] : memref<16x32x64xbf16, #tpu.memory_space<vmem>>, vector<1x32x64xbf16>
    %3 = vector.shape_cast %2 : vector<1x32x64xbf16> to vector<32x64xbf16>
    %cst = arith.constant dense<0.000000e+00> : vector<18x64xf32>
    %4 = tpu.matmul %1, %3, %cst {dimension_numbers = #tpu.dot_dimension_numbers<[1], [0], [0], [1], [0, 0, 1, 1], [], []>} : vector<18x32xbf16>, vector<32x64xbf16>, vector<18x64xf32> -> vector<18x64xf32>
    %c0_5 = arith.constant 0 : index
    %c1 = arith.constant 1 : index
    %c0_6 = arith.constant 0 : index
    %5 = vector.load %arg1[%c0_5, %c1, %c0_6] : memref<1x39x32xbf16, #tpu.memory_space<vmem>>, vector<1x18x32xbf16>
    %6 = vector.shape_cast %5 : vector<1x18x32xbf16> to vector<18x32xbf16>
    %c1_7 = arith.constant 1 : index
    %c0_8 = arith.constant 0 : index
    %c0_9 = arith.constant 0 : index
    %7 = vector.load %arg2[%c1_7, %c0_8, %c0_9] : memref<16x32x64xbf16, #tpu.memory_space<vmem>>, vector<1x32x64xbf16>
    %8 = vector.shape_cast %7 : vector<1x32x64xbf16> to vector<32x64xbf16>
    %cst_10 = arith.constant dense<0.000000e+00> : vector<18x64xf32>
    %9 = tpu.matmul %6, %8, %cst_10 {dimension_numbers = #tpu.dot_dimension_numbers<[1], [0], [0], [1], [0, 0, 1, 1], [], []>} : vector<18x32xbf16>, vector<32x64xbf16>, vector<18x64xf32> -> vector<18x64xf32>
    %10 = arith.addf %4, %9 : vector<18x64xf32>
    %c0_11 = arith.constant 0 : index
    %c2 = arith.constant 2 : index
    %c0_12 = arith.constant 0 : index
    %11 = vector.load %arg1[%c0_11, %c2, %c0_12] : memref<1x39x32xbf16, #tpu.memory_space<vmem>>, vector<1x18x32xbf16>
    %12 = vector.shape_cast %11 : vector<1x18x32xbf16> to vector<18x32xbf16>
    %c2_13 = arith.constant 2 : index
    %c0_14 = arith.constant 0 : index
    %c0_15 = arith.constant 0 : index
    %13 = vector.load %arg2[%c2_13, %c0_14, %c0_15] : memref<16x32x64xbf16, #tpu.memory_space<vmem>>, vector<1x32x64xbf16>
    %14 = vector.shape_cast %13 : vector<1x32x64xbf16> to vector<32x64xbf16>
    %cst_16 = arith.constant dense<0.000000e+00> : vector<18x64xf32>
    %15 = tpu.matmul %12, %14, %cst_16 {dimension_numbers = #tpu.dot_dimension_numbers<[1], [0], [0], [1], [0, 0, 1, 1], [], []>} : vector<18x32xbf16>, vector<32x64xbf16>, vector<18x64xf32> -> vector<18x64xf32>
    %16 = arith.addf %10, %15 : vector<18x64xf32>
    %c0_17 = arith.constant 0 : index
    %c3 = arith.constant 3 : index
    %c0_18 = arith.constant 0 : index
    %17 = vector.load %arg1[%c0_17, %c3, %c0_18] : memref<1x39x32xbf16, #tpu.memory_space<vmem>>, vector<1x18x32xbf16>
    %18 = vector.shape_cast %17 : vector<1x18x32xbf16> to vector<18x32xbf16>
    %c3_19 = arith.constant 3 : index
    %c0_20 = arith.constant 0 : index
    %c0_21 = arith.constant 0 : index
    %19 = vector.load %arg2[%c3_19, %c0_20, %c0_21] : memref<16x32x64xbf16, #tpu.memory_space<vmem>>, vector<1x32x64xbf16>
    %20 = vector.shape_cast %19 : vector<1x32x64xbf16> to vector<32x64xbf16>
    %cst_22 = arith.constant dense<0.000000e+00> : vector<18x64xf32>
    %21 = tpu.matmul %18, %20, %cst_22 {dimension_numbers = #tpu.dot_dimension_numbers<[1], [0], [0], [1], [0, 0, 1, 1], [], []>} : vector<18x32xbf16>, vector<32x64xbf16>, vector<18x64xf32> -> vector<18x64xf32>
    %22 = arith.addf %16, %21 : vector<18x64xf32>
    %c0_23 = arith.constant 0 : index
    %c6 = arith.constant 6 : index
    %c0_24 = arith.constant 0 : index
    %23 = vector.load %arg1[%c0_23, %c6, %c0_24] : memref<1x39x32xbf16, #tpu.memory_space<vmem>>, vector<1x18x32xbf16>
    %24 = vector.shape_cast %23 : vector<1x18x32xbf16> to vector<18x32xbf16>
    %c4 = arith.constant 4 : index
    %c0_25 = arith.constant 0 : index
    %c0_26 = arith.constant 0 : index
    %25 = vector.load %arg2[%c4, %c0_25, %c0_26] : memref<16x32x64xbf16, #tpu.memory_space<vmem>>, vector<1x32x64xbf16>
    %26 = vector.shape_cast %25 : vector<1x32x64xbf16> to vector<32x64xbf16>
    %cst_27 = arith.constant dense<0.000000e+00> : vector<18x64xf32>
    %27 = tpu.matmul %24, %26, %cst_27 {dimension_numbers = #tpu.dot_dimension_numbers<[1], [0], [0], [1], [0, 0, 1, 1], [], []>} : vector<18x32xbf16>, vector<32x64xbf16>, vector<18x64xf32> -> vector<18x64xf32>
    %28 = arith.addf %22, %27 : vector<18x64xf32>
    %c0_28 = arith.constant 0 : index
    %c7 = arith.constant 7 : index
    %c0_29 = arith.constant 0 : index
    %29 = vector.load %arg1[%c0_28, %c7, %c0_29] : memref<1x39x32xbf16, #tpu.memory_space<vmem>>, vector<1x18x32xbf16>
    %30 = vector.shape_cast %29 : vector<1x18x32xbf16> to vector<18x32xbf16>
    %c5 = arith.constant 5 : index
    %c0_30 = arith.constant 0 : index
    %c0_31 = arith.constant 0 : index
    %31 = vector.load %arg2[%c5, %c0_30, %c0_31] : memref<16x32x64xbf16, #tpu.memory_space<vmem>>, vector<1x32x64xbf16>
    %32 = vector.shape_cast %31 : vector<1x32x64xbf16> to vector<32x64xbf16>
    %cst_32 = arith.constant dense<0.000000e+00> : vector<18x64xf32>
    %33 = tpu.matmul %30, %32, %cst_32 {dimension_numbers = #tpu.dot_dimension_numbers<[1], [0], [0], [1], [0, 0, 1, 1], [], []>} : vector<18x32xbf16>, vector<32x64xbf16>, vector<18x64xf32> -> vector<18x64xf32>
    %34 = arith.addf %28, %33 : vector<18x64xf32>
    %c0_33 = arith.constant 0 : index
    %c8 = arith.constant 8 : index
    %c0_34 = arith.constant 0 : index
    %35 = vector.load %arg1[%c0_33, %c8, %c0_34] : memref<1x39x32xbf16, #tpu.memory_space<vmem>>, vector<1x18x32xbf16>
    %36 = vector.shape_cast %35 : vector<1x18x32xbf16> to vector<18x32xbf16>
    %c6_35 = arith.constant 6 : index
    %c0_36 = arith.constant 0 : index
    %c0_37 = arith.constant 0 : index
    %37 = vector.load %arg2[%c6_35, %c0_36, %c0_37] : memref<16x32x64xbf16, #tpu.memory_space<vmem>>, vector<1x32x64xbf16>
    %38 = vector.shape_cast %37 : vector<1x32x64xbf16> to vector<32x64xbf16>
    %cst_38 = arith.constant dense<0.000000e+00> : vector<18x64xf32>
    %39 = tpu.matmul %36, %38, %cst_38 {dimension_numbers = #tpu.dot_dimension_numbers<[1], [0], [0], [1], [0, 0, 1, 1], [], []>} : vector<18x32xbf16>, vector<32x64xbf16>, vector<18x64xf32> -> vector<18x64xf32>
    %40 = arith.addf %34, %39 : vector<18x64xf32>
    %c0_39 = arith.constant 0 : index
    %c9 = arith.constant 9 : index
    %c0_40 = arith.constant 0 : index
    %41 = vector.load %arg1[%c0_39, %c9, %c0_40] : memref<1x39x32xbf16, #tpu.memory_space<vmem>>, vector<1x18x32xbf16>
    %42 = vector.shape_cast %41 : vector<1x18x32xbf16> to vector<18x32xbf16>
    %c7_41 = arith.constant 7 : index
    %c0_42 = arith.constant 0 : index
    %c0_43 = arith.constant 0 : index
    %43 = vector.load %arg2[%c7_41, %c0_42, %c0_43] : memref<16x32x64xbf16, #tpu.memory_space<vmem>>, vector<1x32x64xbf16>
    %44 = vector.shape_cast %43 : vector<1x32x64xbf16> to vector<32x64xbf16>
    %cst_44 = arith.constant dense<0.000000e+00> : vector<18x64xf32>
    %45 = tpu.matmul %42, %44, %cst_44 {dimension_numbers = #tpu.dot_dimension_numbers<[1], [0], [0], [1], [0, 0, 1, 1], [], []>} : vector<18x32xbf16>, vector<32x64xbf16>, vector<18x64xf32> -> vector<18x64xf32>
    %46 = arith.addf %40, %45 : vector<18x64xf32>
    %c0_45 = arith.constant 0 : index
    %c12 = arith.constant 12 : index
    %c0_46 = arith.constant 0 : index
    %47 = vector.load %arg1[%c0_45, %c12, %c0_46] : memref<1x39x32xbf16, #tpu.memory_space<vmem>>, vector<1x18x32xbf16>
    %48 = vector.shape_cast %47 : vector<1x18x32xbf16> to vector<18x32xbf16>
    %c8_47 = arith.constant 8 : index
    %c0_48 = arith.constant 0 : index
    %c0_49 = arith.constant 0 : index
    %49 = vector.load %arg2[%c8_47, %c0_48, %c0_49] : memref<16x32x64xbf16, #tpu.memory_space<vmem>>, vector<1x32x64xbf16>
    %50 = vector.shape_cast %49 : vector<1x32x64xbf16> to vector<32x64xbf16>
    %cst_50 = arith.constant dense<0.000000e+00> : vector<18x64xf32>
    %51 = tpu.matmul %48, %50, %cst_50 {dimension_numbers = #tpu.dot_dimension_numbers<[1], [0], [0], [1], [0, 0, 1, 1], [], []>} : vector<18x32xbf16>, vector<32x64xbf16>, vector<18x64xf32> -> vector<18x64xf32>
    %52 = arith.addf %46, %51 : vector<18x64xf32>
    %c0_51 = arith.constant 0 : index
    %c13 = arith.constant 13 : index
    %c0_52 = arith.constant 0 : index
    %53 = vector.load %arg1[%c0_51, %c13, %c0_52] : memref<1x39x32xbf16, #tpu.memory_space<vmem>>, vector<1x18x32xbf16>
    %54 = vector.shape_cast %53 : vector<1x18x32xbf16> to vector<18x32xbf16>
    %c9_53 = arith.constant 9 : index
    %c0_54 = arith.constant 0 : index
    %c0_55 = arith.constant 0 : index
    %55 = vector.load %arg2[%c9_53, %c0_54, %c0_55] : memref<16x32x64xbf16, #tpu.memory_space<vmem>>, vector<1x32x64xbf16>
    %56 = vector.shape_cast %55 : vector<1x32x64xbf16> to vector<32x64xbf16>
    %cst_56 = arith.constant dense<0.000000e+00> : vector<18x64xf32>
    %57 = tpu.matmul %54, %56, %cst_56 {dimension_numbers = #tpu.dot_dimension_numbers<[1], [0], [0], [1], [0, 0, 1, 1], [], []>} : vector<18x32xbf16>, vector<32x64xbf16>, vector<18x64xf32> -> vector<18x64xf32>
    %58 = arith.addf %52, %57 : vector<18x64xf32>
    %c0_57 = arith.constant 0 : index
    %c14 = arith.constant 14 : index
    %c0_58 = arith.constant 0 : index
    %59 = vector.load %arg1[%c0_57, %c14, %c0_58] : memref<1x39x32xbf16, #tpu.memory_space<vmem>>, vector<1x18x32xbf16>
    %60 = vector.shape_cast %59 : vector<1x18x32xbf16> to vector<18x32xbf16>
    %c10 = arith.constant 10 : index
    %c0_59 = arith.constant 0 : index
    %c0_60 = arith.constant 0 : index
    %61 = vector.load %arg2[%c10, %c0_59, %c0_60] : memref<16x32x64xbf16, #tpu.memory_space<vmem>>, vector<1x32x64xbf16>
    %62 = vector.shape_cast %61 : vector<1x32x64xbf16> to vector<32x64xbf16>
    %cst_61 = arith.constant dense<0.000000e+00> : vector<18x64xf32>
    %63 = tpu.matmul %60, %62, %cst_61 {dimension_numbers = #tpu.dot_dimension_numbers<[1], [0], [0], [1], [0, 0, 1, 1], [], []>} : vector<18x32xbf16>, vector<32x64xbf16>, vector<18x64xf32> -> vector<18x64xf32>
    %64 = arith.addf %58, %63 : vector<18x64xf32>
    %c0_62 = arith.constant 0 : index
    %c15 = arith.constant 15 : index
    %c0_63 = arith.constant 0 : index
    %65 = vector.load %arg1[%c0_62, %c15, %c0_63] : memref<1x39x32xbf16, #tpu.memory_space<vmem>>, vector<1x18x32xbf16>
    %66 = vector.shape_cast %65 : vector<1x18x32xbf16> to vector<18x32xbf16>
    %c11 = arith.constant 11 : index
    %c0_64 = arith.constant 0 : index
    %c0_65 = arith.constant 0 : index
    %67 = vector.load %arg2[%c11, %c0_64, %c0_65] : memref<16x32x64xbf16, #tpu.memory_space<vmem>>, vector<1x32x64xbf16>
    %68 = vector.shape_cast %67 : vector<1x32x64xbf16> to vector<32x64xbf16>
    %cst_66 = arith.constant dense<0.000000e+00> : vector<18x64xf32>
    %69 = tpu.matmul %66, %68, %cst_66 {dimension_numbers = #tpu.dot_dimension_numbers<[1], [0], [0], [1], [0, 0, 1, 1], [], []>} : vector<18x32xbf16>, vector<32x64xbf16>, vector<18x64xf32> -> vector<18x64xf32>
    %70 = arith.addf %64, %69 : vector<18x64xf32>
    %c0_67 = arith.constant 0 : index
    %c18 = arith.constant 18 : index
    %c0_68 = arith.constant 0 : index
    %71 = vector.load %arg1[%c0_67, %c18, %c0_68] : memref<1x39x32xbf16, #tpu.memory_space<vmem>>, vector<1x18x32xbf16>
    %72 = vector.shape_cast %71 : vector<1x18x32xbf16> to vector<18x32xbf16>
    %c12_69 = arith.constant 12 : index
    %c0_70 = arith.constant 0 : index
    %c0_71 = arith.constant 0 : index
    %73 = vector.load %arg2[%c12_69, %c0_70, %c0_71] : memref<16x32x64xbf16, #tpu.memory_space<vmem>>, vector<1x32x64xbf16>
    %74 = vector.shape_cast %73 : vector<1x32x64xbf16> to vector<32x64xbf16>
    %cst_72 = arith.constant dense<0.000000e+00> : vector<18x64xf32>
    %75 = tpu.matmul %72, %74, %cst_72 {dimension_numbers = #tpu.dot_dimension_numbers<[1], [0], [0], [1], [0, 0, 1, 1], [], []>} : vector<18x32xbf16>, vector<32x64xbf16>, vector<18x64xf32> -> vector<18x64xf32>
    %76 = arith.addf %70, %75 : vector<18x64xf32>
    %c0_73 = arith.constant 0 : index
    %c19 = arith.constant 19 : index
    %c0_74 = arith.constant 0 : index
    %77 = vector.load %arg1[%c0_73, %c19, %c0_74] : memref<1x39x32xbf16, #tpu.memory_space<vmem>>, vector<1x18x32xbf16>
    %78 = vector.shape_cast %77 : vector<1x18x32xbf16> to vector<18x32xbf16>
    %c13_75 = arith.constant 13 : index
    %c0_76 = arith.constant 0 : index
    %c0_77 = arith.constant 0 : index
    %79 = vector.load %arg2[%c13_75, %c0_76, %c0_77] : memref<16x32x64xbf16, #tpu.memory_space<vmem>>, vector<1x32x64xbf16>
    %80 = vector.shape_cast %79 : vector<1x32x64xbf16> to vector<32x64xbf16>
    %cst_78 = arith.constant dense<0.000000e+00> : vector<18x64xf32>
    %81 = tpu.matmul %78, %80, %cst_78 {dimension_numbers = #tpu.dot_dimension_numbers<[1], [0], [0], [1], [0, 0, 1, 1], [], []>} : vector<18x32xbf16>, vector<32x64xbf16>, vector<18x64xf32> -> vector<18x64xf32>
    %82 = arith.addf %76, %81 : vector<18x64xf32>
    %c0_79 = arith.constant 0 : index
    %c20 = arith.constant 20 : index
    %c0_80 = arith.constant 0 : index
    %83 = vector.load %arg1[%c0_79, %c20, %c0_80] : memref<1x39x32xbf16, #tpu.memory_space<vmem>>, vector<1x18x32xbf16>
    %84 = vector.shape_cast %83 : vector<1x18x32xbf16> to vector<18x32xbf16>
    %c14_81 = arith.constant 14 : index
    %c0_82 = arith.constant 0 : index
    %c0_83 = arith.constant 0 : index
    %85 = vector.load %arg2[%c14_81, %c0_82, %c0_83] : memref<16x32x64xbf16, #tpu.memory_space<vmem>>, vector<1x32x64xbf16>
    %86 = vector.shape_cast %85 : vector<1x32x64xbf16> to vector<32x64xbf16>
    %cst_84 = arith.constant dense<0.000000e+00> : vector<18x64xf32>
    %87 = tpu.matmul %84, %86, %cst_84 {dimension_numbers = #tpu.dot_dimension_numbers<[1], [0], [0], [1], [0, 0, 1, 1], [], []>} : vector<18x32xbf16>, vector<32x64xbf16>, vector<18x64xf32> -> vector<18x64xf32>
    %88 = arith.addf %82, %87 : vector<18x64xf32>
    %c0_85 = arith.constant 0 : index
    %c21 = arith.constant 21 : index
    %c0_86 = arith.constant 0 : index
    %89 = vector.load %arg1[%c0_85, %c21, %c0_86] : memref<1x39x32xbf16, #tpu.memory_space<vmem>>, vector<1x18x32xbf16>
    %90 = vector.shape_cast %89 : vector<1x18x32xbf16> to vector<18x32xbf16>
    %c15_87 = arith.constant 15 : index
    %c0_88 = arith.constant 0 : index
    %c0_89 = arith.constant 0 : index
    %91 = vector.load %arg2[%c15_87, %c0_88, %c0_89] : memref<16x32x64xbf16, #tpu.memory_space<vmem>>, vector<1x32x64xbf16>
    %92 = vector.shape_cast %91 : vector<1x32x64xbf16> to vector<32x64xbf16>
    %cst_90 = arith.constant dense<0.000000e+00> : vector<18x64xf32>
    %93 = tpu.matmul %90, %92, %cst_90 {dimension_numbers = #tpu.dot_dimension_numbers<[1], [0], [0], [1], [0, 0, 1, 1], [], []>} : vector<18x32xbf16>, vector<32x64xbf16>, vector<18x64xf32> -> vector<18x64xf32>
    %94 = arith.addf %88, %93 : vector<18x64xf32>
    %c0_91 = arith.constant 0 : index
    %c0_92 = arith.constant 0 : index
    %95 = vector.load %arg3[%c0_91, %c0_92] : memref<1x64xf32, #tpu.memory_space<vmem>>, vector<1x64xf32>
    %96 = vector.broadcast %95 : vector<1x64xf32> to vector<18x64xf32>
    %97 = arith.mulf %94, %96 : vector<18x64xf32>
    %c0_93 = arith.constant 0 : index
    %c0_94 = arith.constant 0 : index
    %98 = vector.load %arg4[%c0_93, %c0_94] : memref<1x64xf32, #tpu.memory_space<vmem>>, vector<1x64xf32>
    %99 = vector.broadcast %98 : vector<1x64xf32> to vector<18x64xf32>
    %100 = arith.addf %97, %99 : vector<18x64xf32>
    %cst_95 = arith.constant 0.000000e+00 : f32
    %101 = vector.broadcast %cst_95 : f32 to vector<18x64xf32>
    %102 = arith.cmpf oge, %100, %101 : vector<18x64xf32>
    %cst_96 = arith.constant 2.000000e-01 : f32
    %103 = vector.broadcast %cst_96 : f32 to vector<18x64xf32>
    %104 = arith.mulf %103, %100 : vector<18x64xf32>
    %105 = arith.select %102, %100, %104 : vector<18x64xi1>, vector<18x64xf32>
    %106 = arith.truncf %105 : vector<18x64xf32> to vector<18x64xbf16>
    %c0_97 = arith.constant 0 : index
    %c0_98 = arith.constant 0 : index
    %c0_99 = arith.constant 0 : index
    %107 = vector.load %arg5[%c0_97, %c0_98, %c0_99] : memref<1x18x64xbf16, #tpu.memory_space<vmem>>, vector<1x18x64xbf16>
    %108 = vector.shape_cast %107 : vector<1x18x64xbf16> to vector<18x64xbf16>
    %109 = vector.shape_cast %106 : vector<18x64xbf16> to vector<1x18x64xbf16>
    tpu.vector_store %arg5[%c0_97, %c0_98, %c0_99], %109 {strides = array<i32>} : memref<1x18x64xbf16, #tpu.memory_space<vmem>>, vector<1x18x64xbf16>,
    return
  }
  func.func @transform_0(%arg0: i32) -> (i32, i32, i32) {
    %c0_i32 = arith.constant 0 : i32
    %c0_i32_0 = arith.constant 0 : i32
    %c0_i32_1 = arith.constant 0 : i32
    return %arg0, %c0_i32, %c0_i32_0 : i32, i32, i32
  }
  func.func @transform_1(%arg0: i32) -> (i32, i32, i32) {
    %c0_i32 = arith.constant 0 : i32
    %c0_i32_0 = arith.constant 0 : i32
    %c0_i32_1 = arith.constant 0 : i32
    %c0_i32_2 = arith.constant 0 : i32
    return %c0_i32, %c0_i32_0, %c0_i32_1 : i32, i32, i32
  }
  func.func @transform_2(%arg0: i32) -> (i32, i32) {
    %c0_i32 = arith.constant 0 : i32
    %c0_i32_0 = arith.constant 0 : i32
    %c0_i32_1 = arith.constant 0 : i32
    return %c0_i32, %c0_i32_0 : i32, i32
  }
  func.func @transform_3(%arg0: i32) -> (i32, i32) {
    %c0_i32 = arith.constant 0 : i32
    %c0_i32_0 = arith.constant 0 : i32
    %c0_i32_1 = arith.constant 0 : i32
    return %c0_i32, %c0_i32_0 : i32, i32
  }
  func.func @transform_4(%arg0: i32) -> (i32, i32, i32) {
    %c0_i32 = arith.constant 0 : i32
    %c0_i32_0 = arith.constant 0 : i32
    %c0_i32_1 = arith.constant 0 : i32
    return %arg0, %c0_i32, %c0_i32_0 : i32, i32, i32
  }
}

module attributes {stable_mosaic.version = 11 : i64} {
  func.func @_conv_taps_kernel(%arg0: i32, %arg1: memref<1x28x64xbf16, #tpu.memory_space<vmem>>, %arg2: memref<16x64x128xbf16, #tpu.memory_space<vmem>>, %arg3: memref<1x128xf32, #tpu.memory_space<vmem>>, %arg4: memref<1x128xf32, #tpu.memory_space<vmem>>, %arg5: memref<1x10x128xf32, #tpu.memory_space<vmem>>) attributes {dimension_semantics = [#tpu.dimension_semantics<parallel>], iteration_bounds = array<i64: 2>, scalar_prefetch = 0 : i64, scratch_operands = 0 : i64, tpu.core_type = #tpu.core_type<tc>, window_params = [{transform_indices = @transform_0, window_bounds = array<i64: 1, 28, 64>}, {pipeline_mode = #tpu.pipeline_mode<synchronous>, transform_indices = @transform_1, window_bounds = array<i64: 16, 64, 128>}, {pipeline_mode = #tpu.pipeline_mode<synchronous>, transform_indices = @transform_2, window_bounds = array<i64: 1, 128>}, {pipeline_mode = #tpu.pipeline_mode<synchronous>, transform_indices = @transform_3, window_bounds = array<i64: 1, 128>}, {transform_indices = @transform_4, window_bounds = array<i64: 1, 10, 128>}]} {
    %c0 = arith.constant 0 : index
    %c0_0 = arith.constant 0 : index
    %c0_1 = arith.constant 0 : index
    %0 = vector.load %arg1[%c0, %c0_0, %c0_1] : memref<1x28x64xbf16, #tpu.memory_space<vmem>>, vector<1x10x64xbf16>
    %1 = vector.shape_cast %0 : vector<1x10x64xbf16> to vector<10x64xbf16>
    %c0_2 = arith.constant 0 : index
    %c0_3 = arith.constant 0 : index
    %c0_4 = arith.constant 0 : index
    %2 = vector.load %arg2[%c0_2, %c0_3, %c0_4] : memref<16x64x128xbf16, #tpu.memory_space<vmem>>, vector<1x64x128xbf16>
    %3 = vector.shape_cast %2 : vector<1x64x128xbf16> to vector<64x128xbf16>
    %cst = arith.constant dense<0.000000e+00> : vector<10x128xf32>
    %4 = tpu.matmul %1, %3, %cst {dimension_numbers = #tpu.dot_dimension_numbers<[1], [0], [0], [1], [0, 0, 1, 1], [], []>} : vector<10x64xbf16>, vector<64x128xbf16>, vector<10x128xf32> -> vector<10x128xf32>
    %c0_5 = arith.constant 0 : index
    %c1 = arith.constant 1 : index
    %c0_6 = arith.constant 0 : index
    %5 = vector.load %arg1[%c0_5, %c1, %c0_6] : memref<1x28x64xbf16, #tpu.memory_space<vmem>>, vector<1x10x64xbf16>
    %6 = vector.shape_cast %5 : vector<1x10x64xbf16> to vector<10x64xbf16>
    %c1_7 = arith.constant 1 : index
    %c0_8 = arith.constant 0 : index
    %c0_9 = arith.constant 0 : index
    %7 = vector.load %arg2[%c1_7, %c0_8, %c0_9] : memref<16x64x128xbf16, #tpu.memory_space<vmem>>, vector<1x64x128xbf16>
    %8 = vector.shape_cast %7 : vector<1x64x128xbf16> to vector<64x128xbf16>
    %cst_10 = arith.constant dense<0.000000e+00> : vector<10x128xf32>
    %9 = tpu.matmul %6, %8, %cst_10 {dimension_numbers = #tpu.dot_dimension_numbers<[1], [0], [0], [1], [0, 0, 1, 1], [], []>} : vector<10x64xbf16>, vector<64x128xbf16>, vector<10x128xf32> -> vector<10x128xf32>
    %10 = arith.addf %4, %9 : vector<10x128xf32>
    %c0_11 = arith.constant 0 : index
    %c2 = arith.constant 2 : index
    %c0_12 = arith.constant 0 : index
    %11 = vector.load %arg1[%c0_11, %c2, %c0_12] : memref<1x28x64xbf16, #tpu.memory_space<vmem>>, vector<1x10x64xbf16>
    %12 = vector.shape_cast %11 : vector<1x10x64xbf16> to vector<10x64xbf16>
    %c2_13 = arith.constant 2 : index
    %c0_14 = arith.constant 0 : index
    %c0_15 = arith.constant 0 : index
    %13 = vector.load %arg2[%c2_13, %c0_14, %c0_15] : memref<16x64x128xbf16, #tpu.memory_space<vmem>>, vector<1x64x128xbf16>
    %14 = vector.shape_cast %13 : vector<1x64x128xbf16> to vector<64x128xbf16>
    %cst_16 = arith.constant dense<0.000000e+00> : vector<10x128xf32>
    %15 = tpu.matmul %12, %14, %cst_16 {dimension_numbers = #tpu.dot_dimension_numbers<[1], [0], [0], [1], [0, 0, 1, 1], [], []>} : vector<10x64xbf16>, vector<64x128xbf16>, vector<10x128xf32> -> vector<10x128xf32>
    %16 = arith.addf %10, %15 : vector<10x128xf32>
    %c0_17 = arith.constant 0 : index
    %c3 = arith.constant 3 : index
    %c0_18 = arith.constant 0 : index
    %17 = vector.load %arg1[%c0_17, %c3, %c0_18] : memref<1x28x64xbf16, #tpu.memory_space<vmem>>, vector<1x10x64xbf16>
    %18 = vector.shape_cast %17 : vector<1x10x64xbf16> to vector<10x64xbf16>
    %c3_19 = arith.constant 3 : index
    %c0_20 = arith.constant 0 : index
    %c0_21 = arith.constant 0 : index
    %19 = vector.load %arg2[%c3_19, %c0_20, %c0_21] : memref<16x64x128xbf16, #tpu.memory_space<vmem>>, vector<1x64x128xbf16>
    %20 = vector.shape_cast %19 : vector<1x64x128xbf16> to vector<64x128xbf16>
    %cst_22 = arith.constant dense<0.000000e+00> : vector<10x128xf32>
    %21 = tpu.matmul %18, %20, %cst_22 {dimension_numbers = #tpu.dot_dimension_numbers<[1], [0], [0], [1], [0, 0, 1, 1], [], []>} : vector<10x64xbf16>, vector<64x128xbf16>, vector<10x128xf32> -> vector<10x128xf32>
    %22 = arith.addf %16, %21 : vector<10x128xf32>
    %c0_23 = arith.constant 0 : index
    %c5 = arith.constant 5 : index
    %c0_24 = arith.constant 0 : index
    %23 = vector.load %arg1[%c0_23, %c5, %c0_24] : memref<1x28x64xbf16, #tpu.memory_space<vmem>>, vector<1x10x64xbf16>
    %24 = vector.shape_cast %23 : vector<1x10x64xbf16> to vector<10x64xbf16>
    %c4 = arith.constant 4 : index
    %c0_25 = arith.constant 0 : index
    %c0_26 = arith.constant 0 : index
    %25 = vector.load %arg2[%c4, %c0_25, %c0_26] : memref<16x64x128xbf16, #tpu.memory_space<vmem>>, vector<1x64x128xbf16>
    %26 = vector.shape_cast %25 : vector<1x64x128xbf16> to vector<64x128xbf16>
    %cst_27 = arith.constant dense<0.000000e+00> : vector<10x128xf32>
    %27 = tpu.matmul %24, %26, %cst_27 {dimension_numbers = #tpu.dot_dimension_numbers<[1], [0], [0], [1], [0, 0, 1, 1], [], []>} : vector<10x64xbf16>, vector<64x128xbf16>, vector<10x128xf32> -> vector<10x128xf32>
    %28 = arith.addf %22, %27 : vector<10x128xf32>
    %c0_28 = arith.constant 0 : index
    %c6 = arith.constant 6 : index
    %c0_29 = arith.constant 0 : index
    %29 = vector.load %arg1[%c0_28, %c6, %c0_29] : memref<1x28x64xbf16, #tpu.memory_space<vmem>>, vector<1x10x64xbf16>
    %30 = vector.shape_cast %29 : vector<1x10x64xbf16> to vector<10x64xbf16>
    %c5_30 = arith.constant 5 : index
    %c0_31 = arith.constant 0 : index
    %c0_32 = arith.constant 0 : index
    %31 = vector.load %arg2[%c5_30, %c0_31, %c0_32] : memref<16x64x128xbf16, #tpu.memory_space<vmem>>, vector<1x64x128xbf16>
    %32 = vector.shape_cast %31 : vector<1x64x128xbf16> to vector<64x128xbf16>
    %cst_33 = arith.constant dense<0.000000e+00> : vector<10x128xf32>
    %33 = tpu.matmul %30, %32, %cst_33 {dimension_numbers = #tpu.dot_dimension_numbers<[1], [0], [0], [1], [0, 0, 1, 1], [], []>} : vector<10x64xbf16>, vector<64x128xbf16>, vector<10x128xf32> -> vector<10x128xf32>
    %34 = arith.addf %28, %33 : vector<10x128xf32>
    %c0_34 = arith.constant 0 : index
    %c7 = arith.constant 7 : index
    %c0_35 = arith.constant 0 : index
    %35 = vector.load %arg1[%c0_34, %c7, %c0_35] : memref<1x28x64xbf16, #tpu.memory_space<vmem>>, vector<1x10x64xbf16>
    %36 = vector.shape_cast %35 : vector<1x10x64xbf16> to vector<10x64xbf16>
    %c6_36 = arith.constant 6 : index
    %c0_37 = arith.constant 0 : index
    %c0_38 = arith.constant 0 : index
    %37 = vector.load %arg2[%c6_36, %c0_37, %c0_38] : memref<16x64x128xbf16, #tpu.memory_space<vmem>>, vector<1x64x128xbf16>
    %38 = vector.shape_cast %37 : vector<1x64x128xbf16> to vector<64x128xbf16>
    %cst_39 = arith.constant dense<0.000000e+00> : vector<10x128xf32>
    %39 = tpu.matmul %36, %38, %cst_39 {dimension_numbers = #tpu.dot_dimension_numbers<[1], [0], [0], [1], [0, 0, 1, 1], [], []>} : vector<10x64xbf16>, vector<64x128xbf16>, vector<10x128xf32> -> vector<10x128xf32>
    %40 = arith.addf %34, %39 : vector<10x128xf32>
    %c0_40 = arith.constant 0 : index
    %c8 = arith.constant 8 : index
    %c0_41 = arith.constant 0 : index
    %41 = vector.load %arg1[%c0_40, %c8, %c0_41] : memref<1x28x64xbf16, #tpu.memory_space<vmem>>, vector<1x10x64xbf16>
    %42 = vector.shape_cast %41 : vector<1x10x64xbf16> to vector<10x64xbf16>
    %c7_42 = arith.constant 7 : index
    %c0_43 = arith.constant 0 : index
    %c0_44 = arith.constant 0 : index
    %43 = vector.load %arg2[%c7_42, %c0_43, %c0_44] : memref<16x64x128xbf16, #tpu.memory_space<vmem>>, vector<1x64x128xbf16>
    %44 = vector.shape_cast %43 : vector<1x64x128xbf16> to vector<64x128xbf16>
    %cst_45 = arith.constant dense<0.000000e+00> : vector<10x128xf32>
    %45 = tpu.matmul %42, %44, %cst_45 {dimension_numbers = #tpu.dot_dimension_numbers<[1], [0], [0], [1], [0, 0, 1, 1], [], []>} : vector<10x64xbf16>, vector<64x128xbf16>, vector<10x128xf32> -> vector<10x128xf32>
    %46 = arith.addf %40, %45 : vector<10x128xf32>
    %c0_46 = arith.constant 0 : index
    %c10 = arith.constant 10 : index
    %c0_47 = arith.constant 0 : index
    %47 = vector.load %arg1[%c0_46, %c10, %c0_47] : memref<1x28x64xbf16, #tpu.memory_space<vmem>>, vector<1x10x64xbf16>
    %48 = vector.shape_cast %47 : vector<1x10x64xbf16> to vector<10x64xbf16>
    %c8_48 = arith.constant 8 : index
    %c0_49 = arith.constant 0 : index
    %c0_50 = arith.constant 0 : index
    %49 = vector.load %arg2[%c8_48, %c0_49, %c0_50] : memref<16x64x128xbf16, #tpu.memory_space<vmem>>, vector<1x64x128xbf16>
    %50 = vector.shape_cast %49 : vector<1x64x128xbf16> to vector<64x128xbf16>
    %cst_51 = arith.constant dense<0.000000e+00> : vector<10x128xf32>
    %51 = tpu.matmul %48, %50, %cst_51 {dimension_numbers = #tpu.dot_dimension_numbers<[1], [0], [0], [1], [0, 0, 1, 1], [], []>} : vector<10x64xbf16>, vector<64x128xbf16>, vector<10x128xf32> -> vector<10x128xf32>
    %52 = arith.addf %46, %51 : vector<10x128xf32>
    %c0_52 = arith.constant 0 : index
    %c11 = arith.constant 11 : index
    %c0_53 = arith.constant 0 : index
    %53 = vector.load %arg1[%c0_52, %c11, %c0_53] : memref<1x28x64xbf16, #tpu.memory_space<vmem>>, vector<1x10x64xbf16>
    %54 = vector.shape_cast %53 : vector<1x10x64xbf16> to vector<10x64xbf16>
    %c9 = arith.constant 9 : index
    %c0_54 = arith.constant 0 : index
    %c0_55 = arith.constant 0 : index
    %55 = vector.load %arg2[%c9, %c0_54, %c0_55] : memref<16x64x128xbf16, #tpu.memory_space<vmem>>, vector<1x64x128xbf16>
    %56 = vector.shape_cast %55 : vector<1x64x128xbf16> to vector<64x128xbf16>
    %cst_56 = arith.constant dense<0.000000e+00> : vector<10x128xf32>
    %57 = tpu.matmul %54, %56, %cst_56 {dimension_numbers = #tpu.dot_dimension_numbers<[1], [0], [0], [1], [0, 0, 1, 1], [], []>} : vector<10x64xbf16>, vector<64x128xbf16>, vector<10x128xf32> -> vector<10x128xf32>
    %58 = arith.addf %52, %57 : vector<10x128xf32>
    %c0_57 = arith.constant 0 : index
    %c12 = arith.constant 12 : index
    %c0_58 = arith.constant 0 : index
    %59 = vector.load %arg1[%c0_57, %c12, %c0_58] : memref<1x28x64xbf16, #tpu.memory_space<vmem>>, vector<1x10x64xbf16>
    %60 = vector.shape_cast %59 : vector<1x10x64xbf16> to vector<10x64xbf16>
    %c10_59 = arith.constant 10 : index
    %c0_60 = arith.constant 0 : index
    %c0_61 = arith.constant 0 : index
    %61 = vector.load %arg2[%c10_59, %c0_60, %c0_61] : memref<16x64x128xbf16, #tpu.memory_space<vmem>>, vector<1x64x128xbf16>
    %62 = vector.shape_cast %61 : vector<1x64x128xbf16> to vector<64x128xbf16>
    %cst_62 = arith.constant dense<0.000000e+00> : vector<10x128xf32>
    %63 = tpu.matmul %60, %62, %cst_62 {dimension_numbers = #tpu.dot_dimension_numbers<[1], [0], [0], [1], [0, 0, 1, 1], [], []>} : vector<10x64xbf16>, vector<64x128xbf16>, vector<10x128xf32> -> vector<10x128xf32>
    %64 = arith.addf %58, %63 : vector<10x128xf32>
    %c0_63 = arith.constant 0 : index
    %c13 = arith.constant 13 : index
    %c0_64 = arith.constant 0 : index
    %65 = vector.load %arg1[%c0_63, %c13, %c0_64] : memref<1x28x64xbf16, #tpu.memory_space<vmem>>, vector<1x10x64xbf16>
    %66 = vector.shape_cast %65 : vector<1x10x64xbf16> to vector<10x64xbf16>
    %c11_65 = arith.constant 11 : index
    %c0_66 = arith.constant 0 : index
    %c0_67 = arith.constant 0 : index
    %67 = vector.load %arg2[%c11_65, %c0_66, %c0_67] : memref<16x64x128xbf16, #tpu.memory_space<vmem>>, vector<1x64x128xbf16>
    %68 = vector.shape_cast %67 : vector<1x64x128xbf16> to vector<64x128xbf16>
    %cst_68 = arith.constant dense<0.000000e+00> : vector<10x128xf32>
    %69 = tpu.matmul %66, %68, %cst_68 {dimension_numbers = #tpu.dot_dimension_numbers<[1], [0], [0], [1], [0, 0, 1, 1], [], []>} : vector<10x64xbf16>, vector<64x128xbf16>, vector<10x128xf32> -> vector<10x128xf32>
    %70 = arith.addf %64, %69 : vector<10x128xf32>
    %c0_69 = arith.constant 0 : index
    %c15 = arith.constant 15 : index
    %c0_70 = arith.constant 0 : index
    %71 = vector.load %arg1[%c0_69, %c15, %c0_70] : memref<1x28x64xbf16, #tpu.memory_space<vmem>>, vector<1x10x64xbf16>
    %72 = vector.shape_cast %71 : vector<1x10x64xbf16> to vector<10x64xbf16>
    %c12_71 = arith.constant 12 : index
    %c0_72 = arith.constant 0 : index
    %c0_73 = arith.constant 0 : index
    %73 = vector.load %arg2[%c12_71, %c0_72, %c0_73] : memref<16x64x128xbf16, #tpu.memory_space<vmem>>, vector<1x64x128xbf16>
    %74 = vector.shape_cast %73 : vector<1x64x128xbf16> to vector<64x128xbf16>
    %cst_74 = arith.constant dense<0.000000e+00> : vector<10x128xf32>
    %75 = tpu.matmul %72, %74, %cst_74 {dimension_numbers = #tpu.dot_dimension_numbers<[1], [0], [0], [1], [0, 0, 1, 1], [], []>} : vector<10x64xbf16>, vector<64x128xbf16>, vector<10x128xf32> -> vector<10x128xf32>
    %76 = arith.addf %70, %75 : vector<10x128xf32>
    %c0_75 = arith.constant 0 : index
    %c16 = arith.constant 16 : index
    %c0_76 = arith.constant 0 : index
    %77 = vector.load %arg1[%c0_75, %c16, %c0_76] : memref<1x28x64xbf16, #tpu.memory_space<vmem>>, vector<1x10x64xbf16>
    %78 = vector.shape_cast %77 : vector<1x10x64xbf16> to vector<10x64xbf16>
    %c13_77 = arith.constant 13 : index
    %c0_78 = arith.constant 0 : index
    %c0_79 = arith.constant 0 : index
    %79 = vector.load %arg2[%c13_77, %c0_78, %c0_79] : memref<16x64x128xbf16, #tpu.memory_space<vmem>>, vector<1x64x128xbf16>
    %80 = vector.shape_cast %79 : vector<1x64x128xbf16> to vector<64x128xbf16>
    %cst_80 = arith.constant dense<0.000000e+00> : vector<10x128xf32>
    %81 = tpu.matmul %78, %80, %cst_80 {dimension_numbers = #tpu.dot_dimension_numbers<[1], [0], [0], [1], [0, 0, 1, 1], [], []>} : vector<10x64xbf16>, vector<64x128xbf16>, vector<10x128xf32> -> vector<10x128xf32>
    %82 = arith.addf %76, %81 : vector<10x128xf32>
    %c0_81 = arith.constant 0 : index
    %c17 = arith.constant 17 : index
    %c0_82 = arith.constant 0 : index
    %83 = vector.load %arg1[%c0_81, %c17, %c0_82] : memref<1x28x64xbf16, #tpu.memory_space<vmem>>, vector<1x10x64xbf16>
    %84 = vector.shape_cast %83 : vector<1x10x64xbf16> to vector<10x64xbf16>
    %c14 = arith.constant 14 : index
    %c0_83 = arith.constant 0 : index
    %c0_84 = arith.constant 0 : index
    %85 = vector.load %arg2[%c14, %c0_83, %c0_84] : memref<16x64x128xbf16, #tpu.memory_space<vmem>>, vector<1x64x128xbf16>
    %86 = vector.shape_cast %85 : vector<1x64x128xbf16> to vector<64x128xbf16>
    %cst_85 = arith.constant dense<0.000000e+00> : vector<10x128xf32>
    %87 = tpu.matmul %84, %86, %cst_85 {dimension_numbers = #tpu.dot_dimension_numbers<[1], [0], [0], [1], [0, 0, 1, 1], [], []>} : vector<10x64xbf16>, vector<64x128xbf16>, vector<10x128xf32> -> vector<10x128xf32>
    %88 = arith.addf %82, %87 : vector<10x128xf32>
    %c0_86 = arith.constant 0 : index
    %c18 = arith.constant 18 : index
    %c0_87 = arith.constant 0 : index
    %89 = vector.load %arg1[%c0_86, %c18, %c0_87] : memref<1x28x64xbf16, #tpu.memory_space<vmem>>, vector<1x10x64xbf16>
    %90 = vector.shape_cast %89 : vector<1x10x64xbf16> to vector<10x64xbf16>
    %c15_88 = arith.constant 15 : index
    %c0_89 = arith.constant 0 : index
    %c0_90 = arith.constant 0 : index
    %91 = vector.load %arg2[%c15_88, %c0_89, %c0_90] : memref<16x64x128xbf16, #tpu.memory_space<vmem>>, vector<1x64x128xbf16>
    %92 = vector.shape_cast %91 : vector<1x64x128xbf16> to vector<64x128xbf16>
    %cst_91 = arith.constant dense<0.000000e+00> : vector<10x128xf32>
    %93 = tpu.matmul %90, %92, %cst_91 {dimension_numbers = #tpu.dot_dimension_numbers<[1], [0], [0], [1], [0, 0, 1, 1], [], []>} : vector<10x64xbf16>, vector<64x128xbf16>, vector<10x128xf32> -> vector<10x128xf32>
    %94 = arith.addf %88, %93 : vector<10x128xf32>
    %c0_92 = arith.constant 0 : index
    %c0_93 = arith.constant 0 : index
    %95 = vector.load %arg3[%c0_92, %c0_93] : memref<1x128xf32, #tpu.memory_space<vmem>>, vector<1x128xf32>
    %96 = vector.broadcast %95 : vector<1x128xf32> to vector<10x128xf32>
    %97 = arith.mulf %94, %96 : vector<10x128xf32>
    %c0_94 = arith.constant 0 : index
    %c0_95 = arith.constant 0 : index
    %98 = vector.load %arg4[%c0_94, %c0_95] : memref<1x128xf32, #tpu.memory_space<vmem>>, vector<1x128xf32>
    %99 = vector.broadcast %98 : vector<1x128xf32> to vector<10x128xf32>
    %100 = arith.addf %97, %99 : vector<10x128xf32>
    %c0_96 = arith.constant 0 : index
    %c0_97 = arith.constant 0 : index
    %c0_98 = arith.constant 0 : index
    %101 = vector.load %arg5[%c0_96, %c0_97, %c0_98] : memref<1x10x128xf32, #tpu.memory_space<vmem>>, vector<1x10x128xf32>
    %102 = vector.shape_cast %101 : vector<1x10x128xf32> to vector<10x128xf32>
    %103 = vector.shape_cast %100 : vector<10x128xf32> to vector<1x10x128xf32>
    tpu.vector_store %arg5[%c0_96, %c0_97, %c0_98], %103 {strides = array<i32>} : memref<1x10x128xf32, #tpu.memory_space<vmem>>, vector<1x10x128xf32>,
    return
  }
  func.func @transform_0(%arg0: i32) -> (i32, i32, i32) {
    %c0_i32 = arith.constant 0 : i32
    %c0_i32_0 = arith.constant 0 : i32
    %c0_i32_1 = arith.constant 0 : i32
    return %arg0, %c0_i32, %c0_i32_0 : i32, i32, i32
  }
  func.func @transform_1(%arg0: i32) -> (i32, i32, i32) {
    %c0_i32 = arith.constant 0 : i32
    %c0_i32_0 = arith.constant 0 : i32
    %c0_i32_1 = arith.constant 0 : i32
    %c0_i32_2 = arith.constant 0 : i32
    return %c0_i32, %c0_i32_0, %c0_i32_1 : i32, i32, i32
  }
  func.func @transform_2(%arg0: i32) -> (i32, i32) {
    %c0_i32 = arith.constant 0 : i32
    %c0_i32_0 = arith.constant 0 : i32
    %c0_i32_1 = arith.constant 0 : i32
    return %c0_i32, %c0_i32_0 : i32, i32
  }
  func.func @transform_3(%arg0: i32) -> (i32, i32) {
    %c0_i32 = arith.constant 0 : i32
    %c0_i32_0 = arith.constant 0 : i32
    %c0_i32_1 = arith.constant 0 : i32
    return %c0_i32, %c0_i32_0 : i32, i32
  }
  func.func @transform_4(%arg0: i32) -> (i32, i32, i32) {
    %c0_i32 = arith.constant 0 : i32
    %c0_i32_0 = arith.constant 0 : i32
    %c0_i32_1 = arith.constant 0 : i32
    return %arg0, %c0_i32, %c0_i32_0 : i32, i32, i32
  }
}

</mosaic_0001>

<llo_original>
// kernel: nlayer_discriminator_forward.5
$region0: #{nlayer_discriminator_forward.5}
  #allocation0 [shape = 'u32[]', space=smem, size = 0x4, offset = 0x4, fixed_abs, tag = 'smem constant byte address 0x4 - core index']
  #allocation1 [shape = 'u32[72,128]{1,0:T(1,128)}', space=vmem, size = 0x9000, scoped, tag = 'internal scratch']
  %s0 = inlined_call_operand.vmem [shape: bf16[2,290,16], index: 0, kind: input, shape index: {}]
  %s1 = inlined_call_operand.vmem [shape: bf16[4,16,8], index: 1, kind: input, shape index: {}]
  %s2 = inlined_call_operand.vmem [shape: f32[1,8], index: 2, kind: input, shape index: {}]
  %s3 = inlined_call_operand.vmem [shape: f32[1,8], index: 3, kind: input, shape index: {}]
  %s4 = inlined_call_operand.vmem [shape: bf16[2,272,8], index: 4, kind: output, shape index: {}]
  %s5 = sld [smem:[#allocation0]]
  $region49: #{nlayer_discriminator_forward.5} parent=0
    _
  %s7 = ssub.s32 1, %s5
  %s8 = scalar_select 0, %s7, %s5
  loop: start=0, step=1, limit=4
  $region2: #{nlayer_discriminator_forward.5} parent=0 // loop_pre_header
    _
  $region3: #{nlayer_discriminator_forward.5} parent=0 // loop_header
    %s10 = sphi 0, %s14
    %p11 = scmp.ge.s32.totalorder %s10, 4
    %s20 = sphi 0, %s22
    %s23 = sphi 0, %s20
    %s24 = sphi 0, %s23
    %s40 = sphi 0, %s24
    %s44 = sphi 0, %s44
    %s46 = sphi 0, %s44
    %s47 = sphi 0, %s46
    %s61 = sphi 0, %s47
    %s65 = sphi 0, %s65
    %s67 = sphi 0, %s65
    %s68 = sphi 0, %s67
    %s82 = sphi 0, %s68
    %s86 = sphi 0, %s86
    %s88 = sphi 0, %s86
    %s89 = sphi 0, %s88
    %s103 = sphi 0, %s89
    %s109 = sphi 0, %s111
    %s112 = sphi 0, %s109
    %s113 = sphi 0, %s112
    %s129 = sphi 0, %s113
  $region4: #{nlayer_discriminator_forward.5} parent=0 // loop_header_branch
    %13 = sbr.rel (%p11) target = $region8
  $region5: #{nlayer_discriminator_forward.5} parent=0 // loop_body
    %s15 = ssub.s32 %s10, 1
    %s16 = ssub.s32 %s10, 2
    %s17 = sadd.s32 %s10, 1
    %s18 = ssub.s32 %s10, %s17
    %p19 = scmp.eq.s32.totalorder %s18, 0
    %s21 = sadd.s32 %s20, 1
    %s22 = scalar_select %p19, %s20, %s21
    %p25 = pneg %p19
    %p26 = scmp.eq.s32.totalorder %s10, 1
    %p27 = por %p25, %p26
    %p28 = scmp.ne.s32.totalorder %s20, %s23
    %p29 = scmp.eq.s32.totalorder %s10, 0
    %p30 = por %p28, %p29
    %p31 = scmp.ne.s32.totalorder %s20, %s23
    %p32 = scmp.eq.s32.totalorder %s15, 1
    %p33 = por %p31, %p32
    %p34 = scmp.ne.s32.totalorder %s23, %s24
    %p35 = scmp.eq.s32.totalorder %s15, 0
    %p36 = por %p34, %p35
    %p37 = scmp.ne.s32.totalorder %s23, %s24
    %p38 = scmp.eq.s32.totalorder %s16, 1
    %p39 = por %p37, %p38
    %p41 = scmp.ne.s32.totalorder %s24, %s40
    %p42 = scmp.eq.s32.totalorder %s16, 0
    %p43 = por %p41, %p42
    %s45 = sadd.s32 %s44, 1
    %p48 = scmp.eq.s32.totalorder %s10, 1
    %p49 = scmp.ne.s32.totalorder %s44, %s46
    %p50 = scmp.eq.s32.totalorder %s10, 0
    %p51 = por %p49, %p50
    %p52 = scmp.ne.s32.totalorder %s44, %s46
    %p53 = scmp.eq.s32.totalorder %s15, 1
    %p54 = por %p52, %p53
    %p55 = scmp.ne.s32.totalorder %s46, %s47
    %p56 = scmp.eq.s32.totalorder %s15, 0
    %p57 = por %p55, %p56
    %p58 = scmp.ne.s32.totalorder %s46, %s47
    %p59 = scmp.eq.s32.totalorder %s16, 1
    %p60 = por %p58, %p59
    %p62 = scmp.ne.s32.totalorder %s47, %s61
    %p63 = scmp.eq.s32.totalorder %s16, 0
    %p64 = por %p62, %p63
    %s66 = sadd.s32 %s65, 1
    %p69 = scmp.eq.s32.totalorder %s10, 1
    %p70 = scmp.ne.s32.totalorder %s65, %s67
    %p71 = scmp.eq.s32.totalorder %s10, 0
    %p72 = por %p70, %p71
    %p73 = scmp.ne.s32.totalorder %s65, %s67
    %p74 = scmp.eq.s32.totalorder %s15, 1
    %p75 = por %p73, %p74
    %p76 = scmp.ne.s32.totalorder %s67, %s68
    %p77 = scmp.eq.s32.totalorder %s15, 0
    %p78 = por %p76, %p77
    %p79 = scmp.ne.s32.totalorder %s67, %s68
    %p80 = scmp.eq.s32.totalorder %s16, 1
    %p81 = por %p79, %p80
    %p83 = scmp.ne.s32.totalorder %s68, %s82
    %p84 = scmp.eq.s32.totalorder %s16, 0
    %p85 = por %p83, %p84
    %s87 = sadd.s32 %s86, 1
    %p90 = scmp.eq.s32.totalorder %s10, 1
    %p91 = scmp.ne.s32.totalorder %s86, %s88
    %p92 = scmp.eq.s32.totalorder %s10, 0
    %p93 = por %p91, %p92
    %p94 = scmp.ne.s32.totalorder %s86, %s88
    %p95 = scmp.eq.s32.totalorder %s15, 1
    %p96 = por %p94, %p95
    %p97 = scmp.ne.s32.totalorder %s88, %s89
    %p98 = scmp.eq.s32.totalorder %s15, 0
    %p99 = por %p97, %p98
    %p100 = scmp.ne.s32.totalorder %s88, %s89
    %p101 = scmp.eq.s32.totalorder %s16, 1
    %p102 = por %p100, %p101
    %p104 = scmp.ne.s32.totalorder %s89, %s103
    %p105 = scmp.eq.s32.totalorder %s16, 0
    %p106 = por %p104, %p105
    %s107 = ssub.s32 %s10, %s17
    %p108 = scmp.eq.s32.totalorder %s107, 0
    %s110 = sadd.s32 %s109, 1
    %s111 = scalar_select %p108, %s109, %s110
    %p114 = pneg %p108
    %p115 = scmp.eq.s32.totalorder %s10, 1
    %p116 = por %p114, %p115
    %p117 = scmp.ne.s32.totalorder %s109, %s112
    %p118 = scmp.eq.s32.totalorder %s10, 0
    %p119 = por %p117, %p118
    %p120 = scmp.ne.s32.totalorder %s109, %s112
    %p121 = scmp.eq.s32.totalorder %s15, 1
    %p122 = por %p120, %p121
    %p123 = scmp.ne.s32.totalorder %s112, %s113
    %p124 = scmp.eq.s32.totalorder %s15, 0
    %p125 = por %p123, %p124
    %p126 = scmp.ne.s32.totalorder %s112, %s113
    %p127 = scmp.eq.s32.totalorder %s16, 1
    %p128 = por %p126, %p127
    %p130 = scmp.ne.s32.totalorder %s113, %s129
    %p131 = scmp.eq.s32.totalorder %s16, 0
    %p132 = por %p130, %p131
    %p133 = scmp.le.s32.totalorder 1, %s10
    %p134 = scmp.lt.s32.totalorder %s10, 3
    %p135 = pnand %p133, %p134
    %p136 = pneg %p135
    // Predicated region
    $region9: #{nlayer_discriminator_forward.5} parent=5 // pred_check
      _
    $region10: #{nlayer_discriminator_forward.5} parent=5 // pred_check_branch
      %138 = sbr.rel (%p135) target = $region12
    $region11: #{nlayer_discriminator_forward.5} parent=5 // pred_region
      %s139 = ssub.s32 %s10, 1
      // Predicated region
      $region13: #{nlayer_discriminator_forward.5} parent=11 // pred_check
        %p140 = pneg %p57
      $region14: #{nlayer_discriminator_forward.5} parent=11 // pred_check_branch
        %142 = sbr.rel (%p140) target = $region16
      $region15: #{nlayer_discriminator_forward.5} parent=11 // pred_region
        _
      $region16: #{nlayer_discriminator_forward.5} parent=11 // pred_fallthru
        _
      // Predicated region
      $region17: #{nlayer_discriminator_forward.5} parent=11 // pred_check
        %p143 = pneg %p78
      $region18: #{nlayer_discriminator_forward.5} parent=11 // pred_check_branch
        %145 = sbr.rel (%p143) target = $region20
      $region19: #{nlayer_discriminator_forward.5} parent=11 // pred_region
        _
      $region20: #{nlayer_discriminator_forward.5} parent=11 // pred_fallthru
        _
      // Predicated region
      $region21: #{nlayer_discriminator_forward.5} parent=11 // pred_check
        %p146 = pneg %p99
      $region22: #{nlayer_discriminator_forward.5} parent=11 // pred_check_branch
        %148 = sbr.rel (%p146) target = $region24
      $region23: #{nlayer_discriminator_forward.5} parent=11 // pred_region
        _
      $region24: #{nlayer_discriminator_forward.5} parent=11 // pred_fallthru
        _
    $region12: #{nlayer_discriminator_forward.5} parent=5 // pred_fallthru
      _
    %p149 = scmp.lt.s32.totalorder %s10, 2
    // Predicated region
    $region25: #{nlayer_discriminator_forward.5} parent=5 // pred_check
      %p150 = pneg %p149
    $region26: #{nlayer_discriminator_forward.5} parent=5 // pred_check_branch
      %152 = sbr.rel (%p150) target = $region28
    $region27: #{nlayer_discriminator_forward.5} parent=5 // pred_region
      // Predicated region
      $region29: #{nlayer_discriminator_forward.5} parent=27 // pred_check
        %p153 = pneg %p30
      $region30: #{nlayer_discriminator_forward.5} parent=27 // pred_check_branch
        %155 = sbr.rel (%p153) target = $region32
      $region31: #{nlayer_discriminator_forward.5} parent=27 // pred_region
        %p156 = scmp.lt.s32.totalorder %s10, 1
        %s157 = scalar_select %p156, %s10, 1
        %s158 = smul.addr %s157, 37
        %s159 = smul.addr %s158, 4
        %s160 = scalar_lea.vmem %s0, %s159
      $region32: #{nlayer_discriminator_forward.5} parent=27 // pred_fallthru
        _
    $region28: #{nlayer_discriminator_forward.5} parent=5 // pred_fallthru
      _
    %p161 = scmp.le.s32.totalorder 1, %s10
    %p162 = scmp.lt.s32.totalorder %s10, 3
    %p163 = pnand %p161, %p162
    %p164 = pneg %p163
    // Predicated region
    $region33: #{nlayer_discriminator_forward.5} parent=5 // pred_check
      _
    $region34: #{nlayer_discriminator_forward.5} parent=5 // pred_check_branch
      %166 = sbr.rel (%p163) target = $region36
    $region35: #{nlayer_discriminator_forward.5} parent=5 // pred_region
      %s167 = ssub.s32 %s10, 1
      %p168 = scmp.lt.s32.totalorder %s15, 1
      %s169 = scalar_select %p168, %s15, 1
      %s170 = smul.addr %s169, 37
      %s171 = smul.addr %s170, 4
      %s172 = scalar_lea.vmem %s0, %s171
      %p173 = pneg %p36
      %p174 = pneg %p33
      %p175 = pneg %p57
      %p176 = pneg %p54
      %p177 = pneg %p78
      %p178 = pneg %p75
      %p179 = pneg %p99
      %p180 = pneg %p96
      %p181 = pneg %p125
      %p182 = pneg %p122
      %p183 = scmp.lt.s32.totalorder %s15, 1
      %s184 = scalar_select %p183, %s15, 1
      %s185 = smul.addr %s184, 34
      %s186 = smul.addr %s185, 4
      %s187 = scalar_lea.vmem %s4, %s186
      %p188 = scmp.lt.s32.totalorder %s15, 1
      %s189 = scalar_select %p188, %s15, 1
      %s190 = smul.addr %s189, 37
      %s191 = smul.addr %s190, 4
      %s192 = scalar_lea.vmem %s0, %s191
      %p193 = scmp.lt.s32.totalorder %s15, 1
      %s194 = scalar_select %p193, %s15, 1
      %s195 = smul.addr %s194, 34
      %s196 = smul.addr %s195, 4
      %s197 = scalar_lea.vmem %s4, %s196
      %v199 = vld [vmem:[%s192] sm:$0xf]
      %v200 = vld [vmem:[%s192 + $0x4] sm:$0xf]
      %v201 = vld [vmem:[%s192 + $0x8] sm:$0xf]
      %v202 = vld [vmem:[%s192 + $0xc] sm:$0xf]
      %v203 = vld [vmem:[%s192 + $0x10] sm:$0xf]
      %v204 = vld [vmem:[%s192 + $0x14] sm:$0xf]
      %v205 = vld [vmem:[%s192 + $0x18] sm:$0xf]
      %v206 = vld [vmem:[%s192 + $0x1c] sm:$0xf]
      %v207 = vld [vmem:[%s192 + $0x20] sm:$0xf]
      %v208 = vld [vmem:[%s192 + $0x24] sm:$0xf]
      %v209 = vld [vmem:[%s192 + $0x28] sm:$0xf]
      %v210 = vld [vmem:[%s192 + $0x2c] sm:$0xf]
      %v211 = vld [vmem:[%s192 + $0x30] sm:$0xf]
      %v212 = vld [vmem:[%s192 + $0x34] sm:$0xf]
      %v213 = vld [vmem:[%s192 + $0x38] sm:$0xf]
      %v214 = vld [vmem:[%s192 + $0x3c] sm:$0xf]
      %v215 = vld [vmem:[%s192 + $0x40] sm:$0xf]
      %v216 = vld [vmem:[%s192 + $0x44] sm:$0xf]
      %v217 = vld [vmem:[%s192 + $0x48] sm:$0xf]
      %v218 = vld [vmem:[%s192 + $0x4c] sm:$0xf]
      %v219 = vld [vmem:[%s192 + $0x50] sm:$0xf]
      %v220 = vld [vmem:[%s192 + $0x54] sm:$0xf]
      %v221 = vld [vmem:[%s192 + $0x58] sm:$0xf]
      %v222 = vld [vmem:[%s192 + $0x5c] sm:$0xf]
      %v223 = vld [vmem:[%s192 + $0x60] sm:$0xf]
      %v224 = vld [vmem:[%s192 + $0x64] sm:$0xf]
      %v225 = vld [vmem:[%s192 + $0x68] sm:$0xf]
      %v226 = vld [vmem:[%s192 + $0x6c] sm:$0xf]
      %v227 = vld [vmem:[%s192 + $0x70] sm:$0xf]
      %v228 = vld [vmem:[%s192 + $0x74] sm:$0xf]
      %v229 = vld [vmem:[%s192 + $0x78] sm:$0xf]
      %v230 = vld [vmem:[%s192 + $0x7c] sm:$0xf]
      %v231 = vld [vmem:[%s192 + $0x80] sm:$0xf]
      %v232 = vld [vmem:[%s192 + $0x84] sm:$0xf]
      %v233 = vld [vmem:[%s1] sm:$0xf]
      %v234 = vld [vmem:[%s1 + $0x4] sm:$0xf]
      %v235 = vld [vmem:[%s192 + $0x88] sm:$0x1]
      %s236 = scalar_lea.vmem %s1, 8
      %v237 = vld [vmem:[%s236] sm:$0xf]
      %v238 = vld [vmem:[%s236 + $0x4] sm:$0xf]
      %v274 = vunpack.c.l.b16 %v199
      %v275 = vunpack.c.l.b16 %v200
      %v276 = vunpack.c.l.b16 %v201
      %v277 = vunpack.c.l.b16 %v202
      %v278 = vunpack.c.l.b16 %v203
      %v279 = vunpack.c.l.b16 %v204
      %v280 = vunpack.c.l.b16 %v205
      %v281 = vunpack.c.l.b16 %v206
      %v282 = vunpack.c.l.b16 %v207
      %v283 = vunpack.c.l.b16 %v208
      %v284 = vunpack.c.l.b16 %v209
      %v285 = vunpack.c.l.b16 %v210
      %v286 = vunpack.c.l.b16 %v211
      %v287 = vunpack.c.l.b16 %v212
      %v288 = vunpack.c.l.b16 %v213
      %v289 = vunpack.c.l.b16 %v214
      %v290 = vunpack.c.l.b16 %v215
      %v291 = vunpack.c.l.b16 %v216
      %v292 = vunpack.c.l.b16 %v217
      %v293 = vunpack.c.l.b16 %v218
      %v294 = vunpack.c.l.b16 %v219
      %v295 = vunpack.c.l.b16 %v220
      %v296 = vunpack.c.l.b16 %v221
      %v297 = vunpack.c.l.b16 %v222
      %v298 = vunpack.c.l.b16 %v223
      %v299 = vunpack.c.l.b16 %v224
      %v300 = vunpack.c.l.b16 %v225
      %v301 = vunpack.c.l.b16 %v226
      %v302 = vunpack.c.l.b16 %v227
      %v303 = vunpack.c.l.b16 %v228
      %v304 = vunpack.c.l.b16 %v229
      %v305 = vunpack.c.l.b16 %v230
      %v306 = vunpack.c.l.b16 %v231
      %v307 = vunpack.c.l.b16 %v232
      %v308 = vunpack.c.l.b16 %v235
      %v309 = vpack.c.b16 %v275, %v274
      %v310 = vpack.c.b16 %v277, %v276
      %v311 = vpack.c.b16 %v279, %v278
      %v312 = vpack.c.b16 %v281, %v280
      %v313 = vpack.c.b16 %v283, %v282
      %v314 = vpack.c.b16 %v285, %v284
      %v315 = vpack.c.b16 %v287, %v286
      %v316 = vpack.c.b16 %v289, %v288
      %v317 = vpack.c.b16 %v291, %v290
      %v318 = vpack.c.b16 %v293, %v292
      %v319 = vpack.c.b16 %v295, %v294
      %v320 = vpack.c.b16 %v297, %v296
      %v321 = vpack.c.b16 %v299, %v298
      %v322 = vpack.c.b16 %v301, %v300
      %v323 = vpack.c.b16 %v303, %v302
      %v324 = vpack.c.b16 %v305, %v304
      %v325 = vpack.c.b16 %v307, %v306
      %v326 = vpack.c.b16 %v308, %v308
      %vm327 = vsmask.f32 7424
      %v329 = vshrl.u32 %v309, 16
      %v331 = vshll.u32 %v309, 16
      %v333 = vrot.slane %v331, 1
      %v334 = vor.u32 %v329, %v333
      %v336 = vshll.u32 %v310, 16
      %v338 = vrot.slane %v336, 1
      %v339 = vsel %vm327, %v334, %v338
      %v340 = vshrl.u32 %v310, 16
      %v342 = vor.u32 %v340, %v338
      %v344 = vshll.u32 %v311, 16
      %v346 = vrot.slane %v344, 1
      %v347 = vsel %vm327, %v342, %v346
      %v348 = vshrl.u32 %v311, 16
      %v350 = vor.u32 %v348, %v346
      %v352 = vshll.u32 %v312, 16
      %v354 = vrot.slane %v352, 1
      %v355 = vsel %vm327, %v350, %v354
      %v356 = vshrl.u32 %v312, 16
      %v358 = vor.u32 %v356, %v354
      %v360 = vshll.u32 %v313, 16
      %v362 = vrot.slane %v360, 1
      %v363 = vsel %vm327, %v358, %v362
      %v364 = vshrl.u32 %v313, 16
      %v366 = vor.u32 %v364, %v362
      %v368 = vshll.u32 %v314, 16
      %v370 = vrot.slane %v368, 1
      %v371 = vsel %vm327, %v366, %v370
      %v372 = vshrl.u32 %v314, 16
      %v374 = vor.u32 %v372, %v370
      %v376 = vshll.u32 %v315, 16
      %v378 = vrot.slane %v376, 1
      %v379 = vsel %vm327, %v374, %v378
      %v380 = vshrl.u32 %v315, 16
      %v382 = vor.u32 %v380, %v378
      %v384 = vshll.u32 %v316, 16
      %v386 = vrot.slane %v384, 1
      %v387 = vsel %vm327, %v382, %v386
      %v388 = vshrl.u32 %v316, 16
      %v390 = vor.u32 %v388, %v386
      %v392 = vshll.u32 %v317, 16
      %v394 = vrot.slane %v392, 1
      %v395 = vsel %vm327, %v390, %v394
      %v396 = vshrl.u32 %v317, 16
      %v398 = vor.u32 %v396, %v394
      %v400 = vshll.u32 %v318, 16
      %v402 = vrot.slane %v400, 1
      %v403 = vsel %vm327, %v398, %v402
      %v404 = vshrl.u32 %v318, 16
      %v406 = vor.u32 %v404, %v402
      %v408 = vshll.u32 %v319, 16
      %v410 = vrot.slane %v408, 1
      %v411 = vsel %vm327, %v406, %v410
      %v412 = vshrl.u32 %v319, 16
      %v414 = vor.u32 %v412, %v410
      %v416 = vshll.u32 %v320, 16
      %v418 = vrot.slane %v416, 1
      %v419 = vsel %vm327, %v414, %v418
      %v420 = vshrl.u32 %v320, 16
      %v422 = vor.u32 %v420, %v418
      %v424 = vshll.u32 %v321, 16
      %v426 = vrot.slane %v424, 1
      %v427 = vsel %vm327, %v422, %v426
      %v428 = vshrl.u32 %v321, 16
      %v430 = vor.u32 %v428, %v426
      %v432 = vshll.u32 %v322, 16
      %v434 = vrot.slane %v432, 1
      %v435 = vsel %vm327, %v430, %v434
      %v436 = vshrl.u32 %v322, 16
      %v438 = vor.u32 %v436, %v434
      %v440 = vshll.u32 %v323, 16
      %v442 = vrot.slane %v440, 1
      %v443 = vsel %vm327, %v438, %v442
      %v444 = vshrl.u32 %v323, 16
      %v446 = vor.u32 %v444, %v442
      %v448 = vshll.u32 %v324, 16
      %v450 = vrot.slane %v448, 1
      %v451 = vsel %vm327, %v446, %v450
      %v452 = vshrl.u32 %v324, 16
      %v454 = vor.u32 %v452, %v450
      %v456 = vshll.u32 %v325, 16
      %v458 = vrot.slane %v456, 1
      %v459 = vsel %vm327, %v454, %v458
      %v460 = vshrl.u32 %v325, 16
      %v462 = vor.u32 %v460, %v458
      %v464 = vshll.u32 %v326, 16
      %v466 = vrot.slane %v464, 1
      %v467 = vsel %vm327, %v462, %v466
      %v470 = vunpack.c.l.b16 %v237
      %v471 = vunpack.c.l.b16 %v238
      %v472 = vpack.c.b16 %v471, %v470
      %vm474 = vcmask 130048
      %v476 = vsel %vm474, %v339, 0
      %v479 = vsel %vm474, %v347, 0
      %v482 = vsel %vm474, %v355, 0
      %v485 = vsel %vm474, %v363, 0
      %v488 = vsel %vm474, %v371, 0
      %v491 = vsel %vm474, %v379, 0
      %v494 = vsel %vm474, %v387, 0
      %v497 = vsel %vm474, %v395, 0
      %v500 = vsel %vm474, %v403, 0
      %v503 = vsel %vm474, %v411, 0
      %v506 = vsel %vm474, %v419, 0
      %v509 = vsel %vm474, %v427, 0
      %v512 = vsel %vm474, %v435, 0
      %v515 = vsel %vm474, %v443, 0
      %v518 = vsel %vm474, %v451, 0
      %v521 = vsel %vm474, %v459, 0
      %v524 = vsel %vm474, %v467, 0
      %526 = vmatpush.bf16.msra.mxu0 0
      %527 = vmatpush.bf16.msra.mxu0 0
      %528 = vmatpush.bf16.msra.mxu0 0
      %529 = vmatpush.bf16.msra.mxu0 0
      %530 = vmatpush.bf16.msra.mxu0 0
      %531 = vmatpush.bf16.msra.mxu0 0
      %532 = vmatpush.bf16.msra.mxu0 0
      %533 = vmatpush.bf16.msra.mxu0 %v472
      %534 = vmatmul.bf16.gmra.mxu0 %v476
      %v535 = vpop.f32.mrf.mxu0
      %v536 = vadd.f32 0.0, %v535
      %v537 = vpop.f32.mrf.mxu0
      %v538 = vadd.f32 0.0, %v537
      %539 = vmatmul.bf16.gmra.mxu0 %v479
      %v540 = vpop.f32.mrf.mxu0
      %v541 = vadd.f32 0.0, %v540
      %v542 = vpop.f32.mrf.mxu0
      %v543 = vadd.f32 0.0, %v542
      %544 = vmatmul.bf16.gmra.mxu0 %v482
      %v545 = vpop.f32.mrf.mxu0
      %v546 = vadd.f32 0.0, %v545
      %v547 = vpop.f32.mrf.mxu0
      %v548 = vadd.f32 0.0, %v547
      %549 = vmatmul.bf16.gmra.mxu0 %v485
      %v550 = vpop.f32.mrf.mxu0
      %v551 = vadd.f32 0.0, %v550
      %v552 = vpop.f32.mrf.mxu0
      %v553 = vadd.f32 0.0, %v552
      %554 = vmatmul.bf16.gmra.mxu0 %v488
      %v555 = vpop.f32.mrf.mxu0
      %v556 = vadd.f32 0.0, %v555
      %v557 = vpop.f32.mrf.mxu0
      %v558 = vadd.f32 0.0, %v557
      %559 = vmatmul.bf16.gmra.mxu0 %v491
      %v560 = vpop.f32.mrf.mxu0
      %v561 = vadd.f32 0.0, %v560
      %v562 = vpop.f32.mrf.mxu0
      %v563 = vadd.f32 0.0, %v562
      %564 = vmatmul.bf16.gmra.mxu0 %v494
      %v565 = vpop.f32.mrf.mxu0
      %v566 = vadd.f32 0.0, %v565
      %v567 = vpop.f32.mrf.mxu0
      %v568 = vadd.f32 0.0, %v567
      %569 = vmatmul.bf16.gmra.mxu0 %v497
      %v570 = vpop.f32.mrf.mxu0
      %v571 = vadd.f32 0.0, %v570
      %v572 = vpop.f32.mrf.mxu0
      %v573 = vadd.f32 0.0, %v572
      %574 = vmatmul.bf16.gmra.mxu0 %v500
      %v575 = vpop.f32.mrf.mxu0
      %v576 = vadd.f32 0.0, %v575
      %v577 = vpop.f32.mrf.mxu0
      %v578 = vadd.f32 0.0, %v577
      %579 = vmatmul.bf16.gmra.mxu0 %v503
      %v580 = vpop.f32.mrf.mxu0
      %v581 = vadd.f32 0.0, %v580
      %v582 = vpop.f32.mrf.mxu0
      %v583 = vadd.f32 0.0, %v582
      %584 = vmatmul.bf16.gmra.mxu0 %v506
      %v585 = vpop.f32.mrf.mxu0
      %v586 = vadd.f32 0.0, %v585
      %v587 = vpop.f32.mrf.mxu0
      %v588 = vadd.f32 0.0, %v587
      %589 = vmatmul.bf16.gmra.mxu0 %v509
      %v590 = vpop.f32.mrf.mxu0
      %v591 = vadd.f32 0.0, %v590
      %v592 = vpop.f32.mrf.mxu0
      %v593 = vadd.f32 0.0, %v592
      %594 = vmatmul.bf16.gmra.mxu0 %v512
      %v595 = vpop.f32.mrf.mxu0
      %v596 = vadd.f32 0.0, %v595
      %v597 = vpop.f32.mrf.mxu0
      %v598 = vadd.f32 0.0, %v597
      %599 = vmatmul.bf16.gmra.mxu0 %v515
      %v600 = vpop.f32.mrf.mxu0
      %v601 = vadd.f32 0.0, %v600
      %v602 = vpop.f32.mrf.mxu0
      %v603 = vadd.f32 0.0, %v602
      %604 = vmatmul.bf16.gmra.mxu0 %v518
      %v605 = vpop.f32.mrf.mxu0
      %v606 = vadd.f32 0.0, %v605
      %v607 = vpop.f32.mrf.mxu0
      %v608 = vadd.f32 0.0, %v607
      %609 = vmatmul.bf16.gmra.mxu0 %v521
      %v610 = vpop.f32.mrf.mxu0
      %v611 = vadd.f32 0.0, %v610
      %v612 = vpop.f32.mrf.mxu0
      %v613 = vadd.f32 0.0, %v612
      %614 = vmatmul.bf16.gmra.mxu0 %v524
      %v615 = vpop.f32.mrf.mxu0
      %v616 = vadd.f32 0.0, %v615
      %v617 = vpop.f32.mrf.mxu0
      %v618 = vadd.f32 0.0, %v617
      %619 = vdwg.mxu0
      %v622 = vunpack.c.l.b16 %v233
      %v623 = vunpack.c.l.b16 %v234
      %v624 = vpack.c.b16 %v623, %v622
      %v626 = vsel %vm474, %v309, 0
      %v628 = vsel %vm474, %v310, 0
      %v630 = vsel %vm474, %v311, 0
      %v632 = vsel %vm474, %v312, 0
      %v634 = vsel %vm474, %v313, 0
      %v636 = vsel %vm474, %v314, 0
      %v638 = vsel %vm474, %v315, 0
      %v640 = vsel %vm474, %v316, 0
      %v642 = vsel %vm474, %v317, 0
      %v644 = vsel %vm474, %v318, 0
      %v646 = vsel %vm474, %v319, 0
      %v648 = vsel %vm474, %v320, 0
      %v650 = vsel %vm474, %v321, 0
      %v652 = vsel %vm474, %v322, 0
      %v654 = vsel %vm474, %v323, 0
      %v656 = vsel %vm474, %v324, 0
      %v658 = vsel %vm474, %v325, 0
      %660 = vmatpush.bf16.msra.mxu0 0
      %661 = vmatpush.bf16.msra.mxu0 0
      %662 = vmatpush.bf16.msra.mxu0 0
      %663 = vmatpush.bf16.msra.mxu0 0
      %664 = vmatpush.bf16.msra.mxu0 0
      %665 = vmatpush.bf16.msra.mxu0 0
      %666 = vmatpush.bf16.msra.mxu0 0
      %667 = vmatpush.bf16.msra.mxu0 %v624
      %668 = vmatmul.bf16.gmra.mxu0 %v626
      %v669 = vpop.f32.mrf.mxu0
      %v670 = vadd.f32 %v536, %v669
      %v671 = vpop.f32.mrf.mxu0
      %v672 = vadd.f32 %v538, %v671
      %673 = vmatmul.bf16.gmra.mxu0 %v628
      %v674 = vpop.f32.mrf.mxu0
      %v675 = vadd.f32 %v541, %v674
      %v676 = vpop.f32.mrf.mxu0
      %v677 = vadd.f32 %v543, %v676
      %678 = vmatmul.bf16.gmra.mxu0 %v630
      %v679 = vpop.f32.mrf.mxu0
      %v680 = vadd.f32 %v546, %v679
      %v681 = vpop.f32.mrf.mxu0
      %v682 = vadd.f32 %v548, %v681
      %683 = vmatmul.bf16.gmra.mxu0 %v632
      %v684 = vpop.f32.mrf.mxu0
      %v685 = vadd.f32 %v551, %v684
      %v686 = vpop.f32.mrf.mxu0
      %v687 = vadd.f32 %v553, %v686
      %688 = vmatmul.bf16.gmra.mxu0 %v634
      %v689 = vpop.f32.mrf.mxu0
      %v690 = vadd.f32 %v556, %v689
      %v691 = vpop.f32.mrf.mxu0
      %v692 = vadd.f32 %v558, %v691
      %693 = vmatmul.bf16.gmra.mxu0 %v636
      %v694 = vpop.f32.mrf.mxu0
      %v695 = vadd.f32 %v561, %v694
      %v696 = vpop.f32.mrf.mxu0
      %v697 = vadd.f32 %v563, %v696
      %698 = vmatmul.bf16.gmra.mxu0 %v638
      %v699 = vpop.f32.mrf.mxu0
      %v700 = vadd.f32 %v566, %v699
      %v701 = vpop.f32.mrf.mxu0
      %v702 = vadd.f32 %v568, %v701
      %703 = vmatmul.bf16.gmra.mxu0 %v640
      %v704 = vpop.f32.mrf.mxu0
      %v705 = vadd.f32 %v571, %v704
      %v706 = vpop.f32.mrf.mxu0
      %v707 = vadd.f32 %v573, %v706
      %708 = vmatmul.bf16.gmra.mxu0 %v642
      %v709 = vpop.f32.mrf.mxu0
      %v710 = vadd.f32 %v576, %v709
      %v711 = vpop.f32.mrf.mxu0
      %v712 = vadd.f32 %v578, %v711
      %713 = vmatmul.bf16.gmra.mxu0 %v644
      %v714 = vpop.f32.mrf.mxu0
      %v715 = vadd.f32 %v581, %v714
      %v716 = vpop.f32.mrf.mxu0
      %v717 = vadd.f32 %v583, %v716
      %718 = vmatmul.bf16.gmra.mxu0 %v646
      %v719 = vpop.f32.mrf.mxu0
      %v720 = vadd.f32 %v586, %v719
      %v721 = vpop.f32.mrf.mxu0
      %v722 = vadd.f32 %v588, %v721
      %723 = vmatmul.bf16.gmra.mxu0 %v648
      %v724 = vpop.f32.mrf.mxu0
      %v725 = vadd.f32 %v591, %v724
      %v726 = vpop.f32.mrf.mxu0
      %v727 = vadd.f32 %v593, %v726
      %728 = vmatmul.bf16.gmra.mxu0 %v650
      %v729 = vpop.f32.mrf.mxu0
      %v730 = vadd.f32 %v596, %v729
      %v731 = vpop.f32.mrf.mxu0
      %v732 = vadd.f32 %v598, %v731
      %733 = vmatmul.bf16.gmra.mxu0 %v652
      %v734 = vpop.f32.mrf.mxu0
      %v735 = vadd.f32 %v601, %v734
      %v736 = vpop.f32.mrf.mxu0
      %v737 = vadd.f32 %v603, %v736
      %738 = vmatmul.bf16.gmra.mxu0 %v654
      %v739 = vpop.f32.mrf.mxu0
      %v740 = vadd.f32 %v606, %v739
      %v741 = vpop.f32.mrf.mxu0
      %v742 = vadd.f32 %v608, %v741
      %743 = vmatmul.bf16.gmra.mxu0 %v656
      %v744 = vpop.f32.mrf.mxu0
      %v745 = vadd.f32 %v611, %v744
      %v746 = vpop.f32.mrf.mxu0
      %v747 = vadd.f32 %v613, %v746
      %748 = vmatmul.bf16.gmra.mxu0 %v658
      %v749 = vpop.f32.mrf.mxu0
      %v750 = vadd.f32 %v616, %v749
      %v751 = vpop.f32.mrf.mxu0
      %v752 = vadd.f32 %v618, %v751
      %753 = vdwg.mxu0
      %v754 = vld [vmem:[%s192 + $0x8] sm:$0xf]
      %v755 = vld [vmem:[%s192 + $0xc] sm:$0xf]
      %v756 = vld [vmem:[%s192 + $0x10] sm:$0xf]
      %v757 = vld [vmem:[%s192 + $0x14] sm:$0xf]
      %v758 = vld [vmem:[%s192 + $0x18] sm:$0xf]
      %v759 = vld [vmem:[%s192 + $0x1c] sm:$0xf]
      %v760 = vld [vmem:[%s192 + $0x20] sm:$0xf]
      %v761 = vld [vmem:[%s192 + $0x24] sm:$0xf]
      %v762 = vld [vmem:[%s192 + $0x28] sm:$0xf]
      %v763 = vld [vmem:[%s192 + $0x2c] sm:$0xf]
      %v764 = vld [vmem:[%s192 + $0x30] sm:$0xf]
      %v765 = vld [vmem:[%s192 + $0x34] sm:$0xf]
      %v766 = vld [vmem:[%s192 + $0x38] sm:$0xf]
      %v767 = vld [vmem:[%s192 + $0x3c] sm:$0xf]
      %v768 = vld [vmem:[%s192 + $0x40] sm:$0xf]
      %v769 = vld [vmem:[%s192 + $0x44] sm:$0xf]
      %v770 = vld [vmem:[%s192 + $0x48] sm:$0xf]
      %v771 = vld [vmem:[%s192 + $0x4c] sm:$0xf]
      %v772 = vld [vmem:[%s192 + $0x50] sm:$0xf]
      %v773 = vld [vmem:[%s192 + $0x54] sm:$0xf]
      %v774 = vld [vmem:[%s192 + $0x58] sm:$0xf]
      %v775 = vld [vmem:[%s192 + $0x5c] sm:$0xf]
      %v776 = vld [vmem:[%s192 + $0x60] sm:$0xf]
      %v777 = vld [vmem:[%s192 + $0x64] sm:$0xf]
      %v778 = vld [vmem:[%s192 + $0x68] sm:$0xf]
      %v779 = vld [vmem:[%s192 + $0x6c] sm:$0xf]
      %v780 = vld [vmem:[%s192 + $0x70] sm:$0xf]
      %v781 = vld [vmem:[%s192 + $0x74] sm:$0xf]
      %v782 = vld [vmem:[%s192 + $0x78] sm:$0xf]
      %v783 = vld [vmem:[%s192 + $0x7c] sm:$0xf]
      %v784 = vld [vmem:[%s192 + $0x80] sm:$0xf]
      %v785 = vld [vmem:[%s192 + $0x84] sm:$0xf]
      %v786 = vld [vmem:[%s192 + $0x88] sm:$0xf]
      %v787 = vld [vmem:[%s192 + $0x8c] sm:$0xf]
      %v788 = vld [vmem:[%s192 + $0x90] sm:$0x1]
      %s789 = scalar_lea.vmem %s1, 16
      %v790 = vld [vmem:[%s789] sm:$0xf]
      %v791 = vld [vmem:[%s789 + $0x4] sm:$0xf]
      %v827 = vunpack.c.l.b16 %v754
      %v828 = vunpack.c.l.b16 %v755
      %v829 = vunpack.c.l.b16 %v756
      %v830 = vunpack.c.l.b16 %v757
      %v831 = vunpack.c.l.b16 %v758
      %v832 = vunpack.c.l.b16 %v759
      %v833 = vunpack.c.l.b16 %v760
      %v834 = vunpack.c.l.b16 %v761
      %v835 = vunpack.c.l.b16 %v762
      %v836 = vunpack.c.l.b16 %v763
      %v837 = vunpack.c.l.b16 %v764
      %v838 = vunpack.c.l.b16 %v765
      %v839 = vunpack.c.l.b16 %v766
      %v840 = vunpack.c.l.b16 %v767
      %v841 = vunpack.c.l.b16 %v768
      %v842 = vunpack.c.l.b16 %v769
      %v843 = vunpack.c.l.b16 %v770
      %v844 = vunpack.c.l.b16 %v771
      %v845 = vunpack.c.l.b16 %v772
      %v846 = vunpack.c.l.b16 %v773
      %v847 = vunpack.c.l.b16 %v774
      %v848 = vunpack.c.l.b16 %v775
      %v849 = vunpack.c.l.b16 %v776
      %v850 = vunpack.c.l.b16 %v777
      %v851 = vunpack.c.l.b16 %v778
      %v852 = vunpack.c.l.b16 %v779
      %v853 = vunpack.c.l.b16 %v780
      %v854 = vunpack.c.l.b16 %v781
      %v855 = vunpack.c.l.b16 %v782
      %v856 = vunpack.c.l.b16 %v783
      %v857 = vunpack.c.l.b16 %v784
      %v858 = vunpack.c.l.b16 %v785
      %v859 = vunpack.c.l.b16 %v786
      %v860 = vunpack.c.l.b16 %v787
      %v861 = vunpack.c.l.b16 %v788
      %v862 = vpack.c.b16 %v828, %v827
      %v863 = vpack.c.b16 %v830, %v829
      %v864 = vpack.c.b16 %v832, %v831
      %v865 = vpack.c.b16 %v834, %v833
      %v866 = vpack.c.b16 %v836, %v835
      %v867 = vpack.c.b16 %v838, %v837
      %v868 = vpack.c.b16 %v840, %v839
      %v869 = vpack.c.b16 %v842, %v841
      %v870 = vpack.c.b16 %v844, %v843
      %v871 = vpack.c.b16 %v846, %v845
      %v872 = vpack.c.b16 %v848, %v847
      %v873 = vpack.c.b16 %v850, %v849
      %v874 = vpack.c.b16 %v852, %v851
      %v875 = vpack.c.b16 %v854, %v853
      %v876 = vpack.c.b16 %v856, %v855
      %v877 = vpack.c.b16 %v858, %v857
      %v878 = vpack.c.b16 %v860, %v859
      %v879 = vpack.c.b16 %v861, %v861
      %v881 = vshrl.u32 %v862, 16
      %v883 = vshll.u32 %v862, 16
      %v885 = vrot.slane %v883, 1
      %v886 = vor.u32 %v881, %v885
      %v888 = vshll.u32 %v863, 16
      %v890 = vrot.slane %v888, 1
      %v891 = vsel %vm327, %v886, %v890
      %v892 = vshrl.u32 %v863, 16
      %v894 = vor.u32 %v892, %v890
      %v896 = vshll.u32 %v864, 16
      %v898 = vrot.slane %v896, 1
      %v899 = vsel %vm327, %v894, %v898
      %v900 = vshrl.u32 %v864, 16
      %v902 = vor.u32 %v900, %v898
      %v904 = vshll.u32 %v865, 16
      %v906 = vrot.slane %v904, 1
      %v907 = vsel %vm327, %v902, %v906
      %v908 = vshrl.u32 %v865, 16
      %v910 = vor.u32 %v908, %v906
      %v912 = vshll.u32 %v866, 16
      %v914 = vrot.slane %v912, 1
      %v915 = vsel %vm327, %v910, %v914
      %v916 = vshrl.u32 %v866, 16
      %v918 = vor.u32 %v916, %v914
      %v920 = vshll.u32 %v867, 16
      %v922 = vrot.slane %v920, 1
      %v923 = vsel %vm327, %v918, %v922
      %v924 = vshrl.u32 %v867, 16
      %v926 = vor.u32 %v924, %v922
      %v928 = vshll.u32 %v868, 16
      %v930 = vrot.slane %v928, 1
      %v931 = vsel %vm327, %v926, %v930
      %v932 = vshrl.u32 %v868, 16
      %v934 = vor.u32 %v932, %v930
      %v936 = vshll.u32 %v869, 16
      %v938 = vrot.slane %v936, 1
      %v939 = vsel %vm327, %v934, %v938
      %v940 = vshrl.u32 %v869, 16
      %v942 = vor.u32 %v940, %v938
      %v944 = vshll.u32 %v870, 16
      %v946 = vrot.slane %v944, 1
      %v947 = vsel %vm327, %v942, %v946
      %v948 = vshrl.u32 %v870, 16
      %v950 = vor.u32 %v948, %v946
      %v952 = vshll.u32 %v871, 16
      %v954 = vrot.slane %v952, 1
      %v955 = vsel %vm327, %v950, %v954
      %v956 = vshrl.u32 %v871, 16
      %v958 = vor.u32 %v956, %v954
      %v960 = vshll.u32 %v872, 16
      %v962 = vrot.slane %v960, 1
      %v963 = vsel %vm327, %v958, %v962
      %v964 = vshrl.u32 %v872, 16
      %v966 = vor.u32 %v964, %v962
      %v968 = vshll.u32 %v873, 16
      %v970 = vrot.slane %v968, 1
      %v971 = vsel %vm327, %v966, %v970
      %v972 = vshrl.u32 %v873, 16
      %v974 = vor.u32 %v972, %v970
      %v976 = vshll.u32 %v874, 16
      %v978 = vrot.slane %v976, 1
      %v979 = vsel %vm327, %v974, %v978
      %v980 = vshrl.u32 %v874, 16
      %v982 = vor.u32 %v980, %v978
      %v984 = vshll.u32 %v875, 16
      %v986 = vrot.slane %v984, 1
      %v987 = vsel %vm327, %v982, %v986
      %v988 = vshrl.u32 %v875, 16
      %v990 = vor.u32 %v988, %v986
      %v992 = vshll.u32 %v876, 16
      %v994 = vrot.slane %v992, 1
      %v995 = vsel %vm327, %v990, %v994
      %v996 = vshrl.u32 %v876, 16
      %v998 = vor.u32 %v996, %v994
      %v1000 = vshll.u32 %v877, 16
      %v1002 = vrot.slane %v1000, 1
      %v1003 = vsel %vm327, %v998, %v1002
      %v1004 = vshrl.u32 %v877, 16
      %v1006 = vor.u32 %v1004, %v1002
      %v1008 = vshll.u32 %v878, 16
      %v1010 = vrot.slane %v1008, 1
      %v1011 = vsel %vm327, %v1006, %v1010
      %v1012 = vshrl.u32 %v878, 16
      %v1014 = vor.u32 %v1012, %v1010
      %v1016 = vshll.u32 %v879, 16
      %v1018 = vrot.slane %v1016, 1
      %v1019 = vsel %vm327, %v1014, %v1018
      %v1022 = vunpack.c.l.b16 %v790
      %v1023 = vunpack.c.l.b16 %v791
      %v1024 = vpack.c.b16 %v1023, %v1022
      %v1027 = vsel %vm474, %v891, 0
      %v1030 = vsel %vm474, %v899, 0
      %v1033 = vsel %vm474, %v907, 0
      %v1036 = vsel %vm474, %v915, 0
      %v1039 = vsel %vm474, %v923, 0
      %v1042 = vsel %vm474, %v931, 0
      %v1045 = vsel %vm474, %v939, 0
      %v1048 = vsel %vm474, %v947, 0
      %v1051 = vsel %vm474, %v955, 0
      %v1054 = vsel %vm474, %v963, 0
      %v1057 = vsel %vm474, %v971, 0
      %v1060 = vsel %vm474, %v979, 0
      %v1063 = vsel %vm474, %v987, 0
      %v1066 = vsel %vm474, %v995, 0
      %v1069 = vsel %vm474, %v1003, 0
      %v1072 = vsel %vm474, %v1011, 0
      %v1075 = vsel %vm474, %v1019, 0
      %1077 = vmatpush.bf16.msra.mxu0 0
      %1078 = vmatpush.bf16.msra.mxu0 0
      %1079 = vmatpush.bf16.msra.mxu0 0
      %1080 = vmatpush.bf16.msra.mxu0 0
      %1081 = vmatpush.bf16.msra.mxu0 0
      %1082 = vmatpush.bf16.msra.mxu0 0
      %1083 = vmatpush.bf16.msra.mxu0 0
      %1084 = vmatpush.bf16.msra.mxu0 %v1024
      %1085 = vmatmul.bf16.gmra.mxu0 %v1027
      %v1086 = vpop.f32.mrf.mxu0
      %v1087 = vadd.f32 0.0, %v1086
      %v1088 = vpop.f32.mrf.mxu0
      %v1089 = vadd.f32 0.0, %v1088
      %1090 = vmatmul.bf16.gmra.mxu0 %v1030
      %v1091 = vpop.f32.mrf.mxu0
      %v1092 = vadd.f32 0.0, %v1091
      %v1093 = vpop.f32.mrf.mxu0
      %v1094 = vadd.f32 0.0, %v1093
      %1095 = vmatmul.bf16.gmra.mxu0 %v1033
      %v1096 = vpop.f32.mrf.mxu0
      %v1097 = vadd.f32 0.0, %v1096
      %v1098 = vpop.f32.mrf.mxu0
      %v1099 = vadd.f32 0.0, %v1098
      %1100 = vmatmul.bf16.gmra.mxu0 %v1036
      %v1101 = vpop.f32.mrf.mxu0
      %v1102 = vadd.f32 0.0, %v1101
      %v1103 = vpop.f32.mrf.mxu0
      %v1104 = vadd.f32 0.0, %v1103
      %1105 = vmatmul.bf16.gmra.mxu0 %v1039
      %v1106 = vpop.f32.mrf.mxu0
      %v1107 = vadd.f32 0.0, %v1106
      %v1108 = vpop.f32.mrf.mxu0
      %v1109 = vadd.f32 0.0, %v1108
      %1110 = vmatmul.bf16.gmra.mxu0 %v1042
      %v1111 = vpop.f32.mrf.mxu0
      %v1112 = vadd.f32 0.0, %v1111
      %v1113 = vpop.f32.mrf.mxu0
      %v1114 = vadd.f32 0.0, %v1113
      %1115 = vmatmul.bf16.gmra.mxu0 %v1045
      %v1116 = vpop.f32.mrf.mxu0
      %v1117 = vadd.f32 0.0, %v1116
      %v1118 = vpop.f32.mrf.mxu0
      %v1119 = vadd.f32 0.0, %v1118
      %1120 = vmatmul.bf16.gmra.mxu0 %v1048
      %v1121 = vpop.f32.mrf.mxu0
      %v1122 = vadd.f32 0.0, %v1121
      %v1123 = vpop.f32.mrf.mxu0
      %v1124 = vadd.f32 0.0, %v1123
      %1125 = vmatmul.bf16.gmra.mxu0 %v1051
      %v1126 = vpop.f32.mrf.mxu0
      %v1127 = vadd.f32 0.0, %v1126
      %v1128 = vpop.f32.mrf.mxu0
      %v1129 = vadd.f32 0.0, %v1128
      %1130 = vmatmul.bf16.gmra.mxu0 %v1054
      %v1131 = vpop.f32.mrf.mxu0
      %v1132 = vadd.f32 0.0, %v1131
      %v1133 = vpop.f32.mrf.mxu0
      %v1134 = vadd.f32 0.0, %v1133
      %1135 = vmatmul.bf16.gmra.mxu0 %v1057
      %v1136 = vpop.f32.mrf.mxu0
      %v1137 = vadd.f32 0.0, %v1136
      %v1138 = vpop.f32.mrf.mxu0
      %v1139 = vadd.f32 0.0, %v1138
      %1140 = vmatmul.bf16.gmra.mxu0 %v1060
      %v1141 = vpop.f32.mrf.mxu0
      %v1142 = vadd.f32 0.0, %v1141
      %v1143 = vpop.f32.mrf.mxu0
      %v1144 = vadd.f32 0.0, %v1143
      %1145 = vmatmul.bf16.gmra.mxu0 %v1063
      %v1146 = vpop.f32.mrf.mxu0
      %v1147 = vadd.f32 0.0, %v1146
      %v1148 = vpop.f32.mrf.mxu0
      %v1149 = vadd.f32 0.0, %v1148
      %1150 = vmatmul.bf16.gmra.mxu0 %v1066
      %v1151 = vpop.f32.mrf.mxu0
      %v1152 = vadd.f32 0.0, %v1151
      %v1153 = vpop.f32.mrf.mxu0
      %v1154 = vadd.f32 0.0, %v1153
      %1155 = vmatmul.bf16.gmra.mxu0 %v1069
      %v1156 = vpop.f32.mrf.mxu0
      %v1157 = vadd.f32 0.0, %v1156
      %v1158 = vpop.f32.mrf.mxu0
      %v1159 = vadd.f32 0.0, %v1158
      %1160 = vmatmul.bf16.gmra.mxu0 %v1072
      %v1161 = vpop.f32.mrf.mxu0
      %v1162 = vadd.f32 0.0, %v1161
      %v1163 = vpop.f32.mrf.mxu0
      %v1164 = vadd.f32 0.0, %v1163
      %1165 = vmatmul.bf16.gmra.mxu0 %v1075
      %v1166 = vpop.f32.mrf.mxu0
      %v1167 = vadd.f32 0.0, %v1166
      %v1168 = vpop.f32.mrf.mxu0
      %v1169 = vadd.f32 0.0, %v1168
      %1170 = vdwg.mxu0
      %v1171 = vadd.f32 %v670, %v1087
      %v1172 = vadd.f32 %v672, %v1089
      %v1173 = vadd.f32 %v675, %v1092
      %v1174 = vadd.f32 %v677, %v1094
      %v1175 = vadd.f32 %v680, %v1097
      %v1176 = vadd.f32 %v682, %v1099
      %v1177 = vadd.f32 %v685, %v1102
      %v1178 = vadd.f32 %v687, %v1104
      %v1179 = vadd.f32 %v690, %v1107
      %v1180 = vadd.f32 %v692, %v1109
      %v1181 = vadd.f32 %v695, %v1112
      %v1182 = vadd.f32 %v697, %v1114
      %v1183 = vadd.f32 %v700, %v1117
      %v1184 = vadd.f32 %v702, %v1119
      %v1185 = vadd.f32 %v705, %v1122
      %v1186 = vadd.f32 %v707, %v1124
      %v1187 = vadd.f32 %v710, %v1127
      %v1188 = vadd.f32 %v712, %v1129
      %v1189 = vadd.f32 %v715, %v1132
      %v1190 = vadd.f32 %v717, %v1134
      %v1191 = vadd.f32 %v720, %v1137
      %v1192 = vadd.f32 %v722, %v1139
      %v1193 = vadd.f32 %v725, %v1142
      %v1194 = vadd.f32 %v727, %v1144
      %v1195 = vadd.f32 %v730, %v1147
      %v1196 = vadd.f32 %v732, %v1149
      %v1197 = vadd.f32 %v735, %v1152
      %v1198 = vadd.f32 %v737, %v1154
      %v1199 = vadd.f32 %v740, %v1157
      %v1200 = vadd.f32 %v742, %v1159
      %v1201 = vadd.f32 %v745, %v1162
      %v1202 = vadd.f32 %v747, %v1164
      %v1203 = vadd.f32 %v750, %v1167
      %v1204 = vadd.f32 %v752, %v1169
      %v1205 = vld [vmem:[%s192 + $0x8] sm:$0xe]
      %s1206 = scalar_lea.vmem %s1, 24
      %v1207 = vld [vmem:[%s1206] sm:$0xf]
      %v1208 = vld [vmem:[%s1206 + $0x4] sm:$0xf]
      %v1210 = vunpack.c.l.b16 %v1205
      %v1211 = vpack.c.b16 %v828, %v1210
      %vm1212 = vcmask 1046528
      %v1213 = vrot.slane %v1211, 1
      %v1214 = vrot.slane %v863, 1
      %v1215 = vsel %vm1212, %v1213, %v1214
      %v1216 = vrot.slane %v864, 1
      %v1217 = vsel %vm1212, %v1214, %v1216
      %v1218 = vrot.slane %v865, 1
      %v1219 = vsel %vm1212, %v1216, %v1218
      %v1220 = vrot.slane %v866, 1
      %v1221 = vsel %vm1212, %v1218, %v1220
      %v1222 = vrot.slane %v867, 1
      %v1223 = vsel %vm1212, %v1220, %v1222
      %v1224 = vrot.slane %v868, 1
      %v1225 = vsel %vm1212, %v1222, %v1224
      %v1226 = vrot.slane %v869, 1
      %v1227 = vsel %vm1212, %v1224, %v1226
      %v1228 = vrot.slane %v870, 1
      %v1229 = vsel %vm1212, %v1226, %v1228
      %v1230 = vrot.slane %v871, 1
      %v1231 = vsel %vm1212, %v1228, %v1230
      %v1232 = vrot.slane %v872, 1
      %v1233 = vsel %vm1212, %v1230, %v1232
      %v1234 = vrot.slane %v873, 1
      %v1235 = vsel %vm1212, %v1232, %v1234
      %v1236 = vrot.slane %v874, 1
      %v1237 = vsel %vm1212, %v1234, %v1236
      %v1238 = vrot.slane %v875, 1
      %v1239 = vsel %vm1212, %v1236, %v1238
      %v1240 = vrot.slane %v876, 1
      %v1241 = vsel %vm1212, %v1238, %v1240
      %v1242 = vrot.slane %v877, 1
      %v1243 = vsel %vm1212, %v1240, %v1242
      %v1244 = vrot.slane %v878, 1
      %v1245 = vsel %vm1212, %v1242, %v1244
      %v1246 = vrot.slane %v879, 1
      %v1247 = vsel %vm1212, %v1244, %v1246
      %v1250 = vunpack.c.l.b16 %v1207
      %v1251 = vunpack.c.l.b16 %v1208
      %v1252 = vpack.c.b16 %v1251, %v1250
      %v1255 = vsel %vm474, %v1215, 0
      %v1258 = vsel %vm474, %v1217, 0
      %v1261 = vsel %vm474, %v1219, 0
      %v1264 = vsel %vm474, %v1221, 0
      %v1267 = vsel %vm474, %v1223, 0
      %v1270 = vsel %vm474, %v1225, 0
      %v1273 = vsel %vm474, %v1227, 0
      %v1276 = vsel %vm474, %v1229, 0
      %v1279 = vsel %vm474, %v1231, 0
      %v1282 = vsel %vm474, %v1233, 0
      %v1285 = vsel %vm474, %v1235, 0
      %v1288 = vsel %vm474, %v1237, 0
      %v1291 = vsel %vm474, %v1239, 0
      %v1294 = vsel %vm474, %v1241, 0
      %v1297 = vsel %vm474, %v1243, 0
      %v1300 = vsel %vm474, %v1245, 0
      %v1303 = vsel %vm474, %v1247, 0
      %1305 = vmatpush.bf16.msra.mxu0 0
      %1306 = vmatpush.bf16.msra.mxu0 0
      %1307 = vmatpush.bf16.msra.mxu0 0
      %1308 = vmatpush.bf16.msra.mxu0 0
      %1309 = vmatpush.bf16.msra.mxu0 0
      %1310 = vmatpush.bf16.msra.mxu0 0
      %1311 = vmatpush.bf16.msra.mxu0 0
      %1312 = vmatpush.bf16.msra.mxu0 %v1252
      %1313 = vmatmul.bf16.gmra.mxu0 %v1255
      %v1314 = vpop.f32.mrf.mxu0
      %v1315 = vadd.f32 0.0, %v1314
      %v1316 = vpop.f32.mrf.mxu0
      %v1317 = vadd.f32 0.0, %v1316
      %1318 = vmatmul.bf16.gmra.mxu0 %v1258
      %v1319 = vpop.f32.mrf.mxu0
      %v1320 = vadd.f32 0.0, %v1319
      %v1321 = vpop.f32.mrf.mxu0
      %v1322 = vadd.f32 0.0, %v1321
      %1323 = vmatmul.bf16.gmra.mxu0 %v1261
      %v1324 = vpop.f32.mrf.mxu0
      %v1325 = vadd.f32 0.0, %v1324
      %v1326 = vpop.f32.mrf.mxu0
      %v1327 = vadd.f32 0.0, %v1326
      %1328 = vmatmul.bf16.gmra.mxu0 %v1264
      %v1329 = vpop.f32.mrf.mxu0
      %v1330 = vadd.f32 0.0, %v1329
      %v1331 = vpop.f32.mrf.mxu0
      %v1332 = vadd.f32 0.0, %v1331
      %1333 = vmatmul.bf16.gmra.mxu0 %v1267
      %v1334 = vpop.f32.mrf.mxu0
      %v1335 = vadd.f32 0.0, %v1334
      %v1336 = vpop.f32.mrf.mxu0
      %v1337 = vadd.f32 0.0, %v1336
      %1338 = vmatmul.bf16.gmra.mxu0 %v1270
      %v1339 = vpop.f32.mrf.mxu0
      %v1340 = vadd.f32 0.0, %v1339
      %v1341 = vpop.f32.mrf.mxu0
      %v1342 = vadd.f32 0.0, %v1341
      %1343 = vmatmul.bf16.gmra.mxu0 %v1273
      %v1344 = vpop.f32.mrf.mxu0
      %v1345 = vadd.f32 0.0, %v1344
      %v1346 = vpop.f32.mrf.mxu0
      %v1347 = vadd.f32 0.0, %v1346
      %1348 = vmatmul.bf16.gmra.mxu0 %v1276
      %v1349 = vpop.f32.mrf.mxu0
      %v1350 = vadd.f32 0.0, %v1349
      %v1351 = vpop.f32.mrf.mxu0
      %v1352 = vadd.f32 0.0, %v1351
      %1353 = vmatmul.bf16.gmra.mxu0 %v1279
      %v1354 = vpop.f32.mrf.mxu0
      %v1355 = vadd.f32 0.0, %v1354
      %v1356 = vpop.f32.mrf.mxu0
      %v1357 = vadd.f32 0.0, %v1356
      %1358 = vmatmul.bf16.gmra.mxu0 %v1282
      %v1359 = vpop.f32.mrf.mxu0
      %v1360 = vadd.f32 0.0, %v1359
      %v1361 = vpop.f32.mrf.mxu0
      %v1362 = vadd.f32 0.0, %v1361
      %1363 = vmatmul.bf16.gmra.mxu0 %v1285
      %v1364 = vpop.f32.mrf.mxu0
      %v1365 = vadd.f32 0.0, %v1364
      %v1366 = vpop.f32.mrf.mxu0
      %v1367 = vadd.f32 0.0, %v1366
      %1368 = vmatmul.bf16.gmra.mxu0 %v1288
      %v1369 = vpop.f32.mrf.mxu0
      %v1370 = vadd.f32 0.0, %v1369
      %v1371 = vpop.f32.mrf.mxu0
      %v1372 = vadd.f32 0.0, %v1371
      %1373 = vmatmul.bf16.gmra.mxu0 %v1291
      %v1374 = vpop.f32.mrf.mxu0
      %v1375 = vadd.f32 0.0, %v1374
      %v1376 = vpop.f32.mrf.mxu0
      %v1377 = vadd.f32 0.0, %v1376
      %1378 = vmatmul.bf16.gmra.mxu0 %v1294
      %v1379 = vpop.f32.mrf.mxu0
      %v1380 = vadd.f32 0.0, %v1379
      %v1381 = vpop.f32.mrf.mxu0
      %v1382 = vadd.f32 0.0, %v1381
      %1383 = vmatmul.bf16.gmra.mxu0 %v1297
      %v1384 = vpop.f32.mrf.mxu0
      %v1385 = vadd.f32 0.0, %v1384
      %v1386 = vpop.f32.mrf.mxu0
      %v1387 = vadd.f32 0.0, %v1386
      %1388 = vmatmul.bf16.gmra.mxu0 %v1300
      %v1389 = vpop.f32.mrf.mxu0
      %v1390 = vadd.f32 0.0, %v1389
      %v1391 = vpop.f32.mrf.mxu0
      %v1392 = vadd.f32 0.0, %v1391
      %1393 = vmatmul.bf16.gmra.mxu0 %v1303
      %v1394 = vpop.f32.mrf.mxu0
      %v1395 = vadd.f32 0.0, %v1394
      %v1396 = vpop.f32.mrf.mxu0
      %v1397 = vadd.f32 0.0, %v1396
      %1398 = vdwg.mxu0
      %v1399 = vadd.f32 %v1171, %v1315
      %v1400 = vadd.f32 %v1172, %v1317
      %v1401 = vadd.f32 %v1173, %v1320
      %v1402 = vadd.f32 %v1174, %v1322
      %v1403 = vadd.f32 %v1175, %v1325
      %v1404 = vadd.f32 %v1176, %v1327
      %v1405 = vadd.f32 %v1177, %v1330
      %v1406 = vadd.f32 %v1178, %v1332
      %v1407 = vadd.f32 %v1179, %v1335
      %v1408 = vadd.f32 %v1180, %v1337
      %v1409 = vadd.f32 %v1181, %v1340
      %v1410 = vadd.f32 %v1182, %v1342
      %v1411 = vadd.f32 %v1183, %v1345
      %v1412 = vadd.f32 %v1184, %v1347
      %v1413 = vadd.f32 %v1185, %v1350
      %v1414 = vadd.f32 %v1186, %v1352
      %v1415 = vadd.f32 %v1187, %v1355
      %v1416 = vadd.f32 %v1188, %v1357
      %v1417 = vadd.f32 %v1189, %v1360
      %v1418 = vadd.f32 %v1190, %v1362
      %v1419 = vadd.f32 %v1191, %v1365
      %v1420 = vadd.f32 %v1192, %v1367
      %v1421 = vadd.f32 %v1193, %v1370
      %v1422 = vadd.f32 %v1194, %v1372
      %v1423 = vadd.f32 %v1195, %v1375
      %v1424 = vadd.f32 %v1196, %v1377
      %v1425 = vadd.f32 %v1197, %v1380
      %v1426 = vadd.f32 %v1198, %v1382
      %v1427 = vadd.f32 %v1199, %v1385
      %v1428 = vadd.f32 %v1200, %v1387
      %v1429 = vadd.f32 %v1201, %v1390
      %v1430 = vadd.f32 %v1202, %v1392
      %v1431 = vadd.f32 %v1203, %v1395
      %v1432 = vadd.f32 %v1204, %v1397
      %v1433 = vld [vmem:[%s2] sm:$0x1]
      %v1435 = vperm.slane %v1433, 0
      %v1437 = vmul.f32 %v1399, %v1435
      %v1438 = vmul.f32 %v1400, %v1435
      %v1439 = vmul.f32 %v1401, %v1435
      %v1440 = vmul.f32 %v1402, %v1435
      %v1441 = vmul.f32 %v1403, %v1435
      %v1442 = vmul.f32 %v1404, %v1435
      %v1443 = vmul.f32 %v1405, %v1435
      %v1444 = vmul.f32 %v1406, %v1435
      %v1445 = vmul.f32 %v1407, %v1435
      %v1446 = vmul.f32 %v1408, %v1435
      %v1447 = vmul.f32 %v1409, %v1435
      %v1448 = vmul.f32 %v1410, %v1435
      %v1449 = vmul.f32 %v1411, %v1435
      %v1450 = vmul.f32 %v1412, %v1435
      %v1451 = vmul.f32 %v1413, %v1435
      %v1452 = vmul.f32 %v1414, %v1435
      %v1453 = vmul.f32 %v1415, %v1435
      %v1454 = vmul.f32 %v1416, %v1435
      %v1455 = vmul.f32 %v1417, %v1435
      %v1456 = vmul.f32 %v1418, %v1435
      %v1457 = vmul.f32 %v1419, %v1435
      %v1458 = vmul.f32 %v1420, %v1435
      %v1459 = vmul.f32 %v1421, %v1435
      %v1460 = vmul.f32 %v1422, %v1435
      %v1461 = vmul.f32 %v1423, %v1435
      %v1462 = vmul.f32 %v1424, %v1435
      %v1463 = vmul.f32 %v1425, %v1435
      %v1464 = vmul.f32 %v1426, %v1435
      %v1465 = vmul.f32 %v1427, %v1435
      %v1466 = vmul.f32 %v1428, %v1435
      %v1467 = vmul.f32 %v1429, %v1435
      %v1468 = vmul.f32 %v1430, %v1435
      %v1469 = vmul.f32 %v1431, %v1435
      %v1470 = vmul.f32 %v1432, %v1435
      %v1471 = vld [vmem:[%s3] sm:$0x1]
      %v1473 = vperm.slane %v1471, 0
      %v1475 = vadd.f32 %v1437, %v1473
      %v1476 = vadd.f32 %v1438, %v1473
      %v1477 = vadd.f32 %v1439, %v1473
      %v1478 = vadd.f32 %v1440, %v1473
      %v1479 = vadd.f32 %v1441, %v1473
      %v1480 = vadd.f32 %v1442, %v1473
      %v1481 = vadd.f32 %v1443, %v1473
      %v1482 = vadd.f32 %v1444, %v1473
      %v1483 = vadd.f32 %v1445, %v1473
      %v1484 = vadd.f32 %v1446, %v1473
      %v1485 = vadd.f32 %v1447, %v1473
      %v1486 = vadd.f32 %v1448, %v1473
      %v1487 = vadd.f32 %v1449, %v1473
      %v1488 = vadd.f32 %v1450, %v1473
      %v1489 = vadd.f32 %v1451, %v1473
      %v1490 = vadd.f32 %v1452, %v1473
      %v1491 = vadd.f32 %v1453, %v1473
      %v1492 = vadd.f32 %v1454, %v1473
      %v1493 = vadd.f32 %v1455, %v1473
      %v1494 = vadd.f32 %v1456, %v1473
      %v1495 = vadd.f32 %v1457, %v1473
      %v1496 = vadd.f32 %v1458, %v1473
      %v1497 = vadd.f32 %v1459, %v1473
      %v1498 = vadd.f32 %v1460, %v1473
      %v1499 = vadd.f32 %v1461, %v1473
      %v1500 = vadd.f32 %v1462, %v1473
      %v1501 = vadd.f32 %v1463, %v1473
      %v1502 = vadd.f32 %v1464, %v1473
      %v1503 = vadd.f32 %v1465, %v1473
      %v1504 = vadd.f32 %v1466, %v1473
      %v1505 = vadd.f32 %v1467, %v1473
      %v1506 = vadd.f32 %v1468, %v1473
      %v1507 = vadd.f32 %v1469, %v1473
      %v1508 = vadd.f32 %v1470, %v1473
      %vm1509 = vcmp.ge.f32.partialorder %v1475, 0.0
      %vm1510 = vcmp.ge.f32.partialorder %v1476, 0.0
      %vm1511 = vcmp.ge.f32.partialorder %v1477, 0.0
      %vm1512 = vcmp.ge.f32.partialorder %v1478, 0.0
      %vm1513 = vcmp.ge.f32.partialorder %v1479, 0.0
      %vm1514 = vcmp.ge.f32.partialorder %v1480, 0.0
      %vm1515 = vcmp.ge.f32.partialorder %v1481, 0.0
      %vm1516 = vcmp.ge.f32.partialorder %v1482, 0.0
      %vm1517 = vcmp.ge.f32.partialorder %v1483, 0.0
      %vm1518 = vcmp.ge.f32.partialorder %v1484, 0.0
      %vm1519 = vcmp.ge.f32.partialorder %v1485, 0.0
      %vm1520 = vcmp.ge.f32.partialorder %v1486, 0.0
      %vm1521 = vcmp.ge.f32.partialorder %v1487, 0.0
      %vm1522 = vcmp.ge.f32.partialorder %v1488, 0.0
      %vm1523 = vcmp.ge.f32.partialorder %v1489, 0.0
      %vm1524 = vcmp.ge.f32.partialorder %v1490, 0.0
      %vm1525 = vcmp.ge.f32.partialorder %v1491, 0.0
      %vm1526 = vcmp.ge.f32.partialorder %v1492, 0.0
      %vm1527 = vcmp.ge.f32.partialorder %v1493, 0.0
      %vm1528 = vcmp.ge.f32.partialorder %v1494, 0.0
      %vm1529 = vcmp.ge.f32.partialorder %v1495, 0.0
      %vm1530 = vcmp.ge.f32.partialorder %v1496, 0.0
      %vm1531 = vcmp.ge.f32.partialorder %v1497, 0.0
      %vm1532 = vcmp.ge.f32.partialorder %v1498, 0.0
      %vm1533 = vcmp.ge.f32.partialorder %v1499, 0.0
      %vm1534 = vcmp.ge.f32.partialorder %v1500, 0.0
      %vm1535 = vcmp.ge.f32.partialorder %v1501, 0.0
      %vm1536 = vcmp.ge.f32.partialorder %v1502, 0.0
      %vm1537 = vcmp.ge.f32.partialorder %v1503, 0.0
      %vm1538 = vcmp.ge.f32.partialorder %v1504, 0.0
      %vm1539 = vcmp.ge.f32.partialorder %v1505, 0.0
      %vm1540 = vcmp.ge.f32.partialorder %v1506, 0.0
      %vm1541 = vcmp.ge.f32.partialorder %v1507, 0.0
      %vm1542 = vcmp.ge.f32.partialorder %v1508, 0.0
      %v1543 = vmul.f32 %v1475, 0.2
      %v1544 = vmul.f32 %v1476, 0.2
      %v1545 = vmul.f32 %v1477, 0.2
      %v1546 = vmul.f32 %v1478, 0.2
      %v1547 = vmul.f32 %v1479, 0.2
      %v1548 = vmul.f32 %v1480, 0.2
      %v1549 = vmul.f32 %v1481, 0.2
      %v1550 = vmul.f32 %v1482, 0.2
      %v1551 = vmul.f32 %v1483, 0.2
      %v1552 = vmul.f32 %v1484, 0.2
      %v1553 = vmul.f32 %v1485, 0.2
      %v1554 = vmul.f32 %v1486, 0.2
      %v1555 = vmul.f32 %v1487, 0.2
      %v1556 = vmul.f32 %v1488, 0.2
      %v1557 = vmul.f32 %v1489, 0.2
      %v1558 = vmul.f32 %v1490, 0.2
      %v1559 = vmul.f32 %v1491, 0.2
      %v1560 = vmul.f32 %v1492, 0.2
      %v1561 = vmul.f32 %v1493, 0.2
      %v1562 = vmul.f32 %v1494, 0.2
      %v1563 = vmul.f32 %v1495, 0.2
      %v1564 = vmul.f32 %v1496, 0.2
      %v1565 = vmul.f32 %v1497, 0.2
      %v1566 = vmul.f32 %v1498, 0.2
      %v1567 = vmul.f32 %v1499, 0.2
      %v1568 = vmul.f32 %v1500, 0.2
      %v1569 = vmul.f32 %v1501, 0.2
      %v1570 = vmul.f32 %v1502, 0.2
      %v1571 = vmul.f32 %v1503, 0.2
      %v1572 = vmul.f32 %v1504, 0.2
      %v1573 = vmul.f32 %v1505, 0.2
      %v1574 = vmul.f32 %v1506, 0.2
      %v1575 = vmul.f32 %v1507, 0.2
      %v1576 = vmul.f32 %v1508, 0.2
      %v1577 = vsel %vm1509, %v1475, %v1543
      %v1578 = vsel %vm1510, %v1476, %v1544
      %v1579 = vsel %vm1511, %v1477, %v1545
      %v1580 = vsel %vm1512, %v1478, %v1546
      %v1581 = vsel %vm1513, %v1479, %v1547
      %v1582 = vsel %vm1514, %v1480, %v1548
      %v1583 = vsel %vm1515, %v1481, %v1549
      %v1584 = vsel %vm1516, %v1482, %v1550
      %v1585 = vsel %vm1517, %v1483, %v1551
      %v1586 = vsel %vm1518, %v1484, %v1552
      %v1587 = vsel %vm1519, %v1485, %v1553
      %v1588 = vsel %vm1520, %v1486, %v1554
      %v1589 = vsel %vm1521, %v1487, %v1555
      %v1590 = vsel %vm1522, %v1488, %v1556
      %v1591 = vsel %vm1523, %v1489, %v1557
      %v1592 = vsel %vm1524, %v1490, %v1558
      %v1593 = vsel %vm1525, %v1491, %v1559
      %v1594 = vsel %vm1526, %v1492, %v1560
      %v1595 = vsel %vm1527, %v1493, %v1561
      %v1596 = vsel %vm1528, %v1494, %v1562
      %v1597 = vsel %vm1529, %v1495, %v1563
      %v1598 = vsel %vm1530, %v1496, %v1564
      %v1599 = vsel %vm1531, %v1497, %v1565
      %v1600 = vsel %vm1532, %v1498, %v1566
      %v1601 = vsel %vm1533, %v1499, %v1567
      %v1602 = vsel %vm1534, %v1500, %v1568
      %v1603 = vsel %vm1535, %v1501, %v1569
      %v1604 = vsel %vm1536, %v1502, %v1570
      %v1605 = vsel %vm1537, %v1503, %v1571
      %v1606 = vsel %vm1538, %v1504, %v1572
      %v1607 = vsel %vm1539, %v1505, %v1573
      %v1608 = vsel %vm1540, %v1506, %v1574
      %v1609 = vsel %vm1541, %v1507, %v1575
      %v1610 = vsel %vm1542, %v1508, %v1576
      %v1611 = vpack.c.bf16 %v1577, %v1577
      %v1612 = vpack.c.bf16 %v1578, %v1578
      %v1613 = vpack.c.bf16 %v1579, %v1579
      %v1614 = vpack.c.bf16 %v1580, %v1580
      %v1615 = vpack.c.bf16 %v1581, %v1581
      %v1616 = vpack.c.bf16 %v1582, %v1582
      %v1617 = vpack.c.bf16 %v1583, %v1583
      %v1618 = vpack.c.bf16 %v1584, %v1584
      %v1619 = vpack.c.bf16 %v1585, %v1585
      %v1620 = vpack.c.bf16 %v1586, %v1586
      %v1621 = vpack.c.bf16 %v1587, %v1587
      %v1622 = vpack.c.bf16 %v1588, %v1588
      %v1623 = vpack.c.bf16 %v1589, %v1589
      %v1624 = vpack.c.bf16 %v1590, %v1590
      %v1625 = vpack.c.bf16 %v1591, %v1591
      %v1626 = vpack.c.bf16 %v1592, %v1592
      %v1627 = vpack.c.bf16 %v1593, %v1593
      %v1628 = vpack.c.bf16 %v1594, %v1594
      %v1629 = vpack.c.bf16 %v1595, %v1595
      %v1630 = vpack.c.bf16 %v1596, %v1596
      %v1631 = vpack.c.bf16 %v1597, %v1597
      %v1632 = vpack.c.bf16 %v1598, %v1598
      %v1633 = vpack.c.bf16 %v1599, %v1599
      %v1634 = vpack.c.bf16 %v1600, %v1600
      %v1635 = vpack.c.bf16 %v1601, %v1601
      %v1636 = vpack.c.bf16 %v1602, %v1602
      %v1637 = vpack.c.bf16 %v1603, %v1603
      %v1638 = vpack.c.bf16 %v1604, %v1604
      %v1639 = vpack.c.bf16 %v1605, %v1605
      %v1640 = vpack.c.bf16 %v1606, %v1606
      %v1641 = vpack.c.bf16 %v1607, %v1607
      %v1642 = vpack.c.bf16 %v1608, %v1608
      %v1643 = vpack.c.bf16 %v1609, %v1609
      %v1644 = vpack.c.bf16 %v1610, %v1610
      %vm1645 = vcmask 60416
      %1646 = vst.msk [vmem:[%s197] sm:$0xf] %vm1645, %v1611
      %1647 = vst.msk [vmem:[%s197 + $0x4] sm:$0xf] %vm1645, %v1612
      %1648 = vst.msk [vmem:[%s197 + $0x8] sm:$0xf] %vm1645, %v1613
      %1649 = vst.msk [vmem:[%s197 + $0xc] sm:$0xf] %vm1645, %v1614
      %1650 = vst.msk [vmem:[%s197 + $0x10] sm:$0xf] %vm1645, %v1615
      %1651 = vst.msk [vmem:[%s197 + $0x14] sm:$0xf] %vm1645, %v1616
      %1652 = vst.msk [vmem:[%s197 + $0x18] sm:$0xf] %vm1645, %v1617
      %1653 = vst.msk [vmem:[%s197 + $0x1c] sm:$0xf] %vm1645, %v1618
      %1654 = vst.msk [vmem:[%s197 + $0x20] sm:$0xf] %vm1645, %v1619
      %1655 = vst.msk [vmem:[%s197 + $0x24] sm:$0xf] %vm1645, %v1620
      %1656 = vst.msk [vmem:[%s197 + $0x28] sm:$0xf] %vm1645, %v1621
      %1657 = vst.msk [vmem:[%s197 + $0x2c] sm:$0xf] %vm1645, %v1622
      %1658 = vst.msk [vmem:[%s197 + $0x30] sm:$0xf] %vm1645, %v1623
      %1659 = vst.msk [vmem:[%s197 + $0x34] sm:$0xf] %vm1645, %v1624
      %1660 = vst.msk [vmem:[%s197 + $0x38] sm:$0xf] %vm1645, %v1625
      %1661 = vst.msk [vmem:[%s197 + $0x3c] sm:$0xf] %vm1645, %v1626
      %1662 = vst.msk [vmem:[%s197 + $0x40] sm:$0xf] %vm1645, %v1627
      %1663 = vst.msk [vmem:[%s197 + $0x44] sm:$0xf] %vm1645, %v1628
      %1664 = vst.msk [vmem:[%s197 + $0x48] sm:$0xf] %vm1645, %v1629
      %1665 = vst.msk [vmem:[%s197 + $0x4c] sm:$0xf] %vm1645, %v1630
      %1666 = vst.msk [vmem:[%s197 + $0x50] sm:$0xf] %vm1645, %v1631
      %1667 = vst.msk [vmem:[%s197 + $0x54] sm:$0xf] %vm1645, %v1632
      %1668 = vst.msk [vmem:[%s197 + $0x58] sm:$0xf] %vm1645, %v1633
      %1669 = vst.msk [vmem:[%s197 + $0x5c] sm:$0xf] %vm1645, %v1634
      %1670 = vst.msk [vmem:[%s197 + $0x60] sm:$0xf] %vm1645, %v1635
      %1671 = vst.msk [vmem:[%s197 + $0x64] sm:$0xf] %vm1645, %v1636
      %1672 = vst.msk [vmem:[%s197 + $0x68] sm:$0xf] %vm1645, %v1637
      %1673 = vst.msk [vmem:[%s197 + $0x6c] sm:$0xf] %vm1645, %v1638
      %1674 = vst.msk [vmem:[%s197 + $0x70] sm:$0xf] %vm1645, %v1639
      %1675 = vst.msk [vmem:[%s197 + $0x74] sm:$0xf] %vm1645, %v1640
      %1676 = vst.msk [vmem:[%s197 + $0x78] sm:$0xf] %vm1645, %v1641
      %1677 = vst.msk [vmem:[%s197 + $0x7c] sm:$0xf] %vm1645, %v1642
      %1678 = vst.msk [vmem:[%s197 + $0x80] sm:$0xf] %vm1645, %v1643
      %1679 = vst.msk [vmem:[%s197 + $0x84] sm:$0xf] %vm1645, %v1644
      %p1680 = scmp.lt.s32.totalorder %s15, 1
      %s1681 = scalar_select %p1680, %s15, 1
      %s1682 = smul.addr %s1681, 34
      %s1683 = smul.addr %s1682, 4
      %s1684 = scalar_lea.vmem %s4, %s1683
      // Predicated region
      $region37: #{nlayer_discriminator_forward.5} parent=35 // pred_check
        %p1685 = pneg %p122
      $region38: #{nlayer_discriminator_forward.5} parent=35 // pred_check_branch
        %1687 = sbr.rel (%p1685) target = $region40
      $region39: #{nlayer_discriminator_forward.5} parent=35 // pred_region
        _
      $region40: #{nlayer_discriminator_forward.5} parent=35 // pred_fallthru
        _
    $region36: #{nlayer_discriminator_forward.5} parent=5 // pred_fallthru
      _
    %p1688 = scmp.le.s32.totalorder 2, %s10
    // Predicated region
    $region41: #{nlayer_discriminator_forward.5} parent=5 // pred_check
      %p1689 = pneg %p1688
    $region42: #{nlayer_discriminator_forward.5} parent=5 // pred_check_branch
      %1691 = sbr.rel (%p1689) target = $region44
    $region43: #{nlayer_discriminator_forward.5} parent=5 // pred_region
      %s1692 = ssub.s32 %s10, 2
      // Predicated region
      $region45: #{nlayer_discriminator_forward.5} parent=43 // pred_check
        %p1693 = pneg %p128
      $region46: #{nlayer_discriminator_forward.5} parent=43 // pred_check_branch
        %1695 = sbr.rel (%p1693) target = $region48
      $region47: #{nlayer_discriminator_forward.5} parent=43 // pred_region
        %p1696 = scmp.lt.s32.totalorder %s16, 1
        %s1697 = scalar_select %p1696, %s16, 1
        %s1698 = smul.addr %s1697, 34
        %s1699 = smul.addr %s1698, 4
        %s1700 = scalar_lea.vmem %s4, %s1699
      $region48: #{nlayer_discriminator_forward.5} parent=43 // pred_fallthru
        _
    $region44: #{nlayer_discriminator_forward.5} parent=5 // pred_fallthru
      _
  $region6: #{nlayer_discriminator_forward.5} parent=0 // loop_footer
    %s14 = sadd.s32 1, %s10
  $region7: #{nlayer_discriminator_forward.5} parent=0 // loop_footer_branch
    %9 = sbr.rel target = $region3
  $region8: #{nlayer_discriminator_forward.5} parent=0 // loop_exit
    _

// kernel: nlayer_discriminator_forward.6
$region0: #{nlayer_discriminator_forward.6}
  #allocation0 [shape = 'u32[]', space=smem, size = 0x4, offset = 0x4, fixed_abs, tag = 'smem constant byte address 0x4 - core index']
  #allocation1 [shape = 'u32[72,128]{1,0:T(1,128)}', space=vmem, size = 0x9000, scoped, tag = 'internal scratch']
  %s0 = inlined_call_operand.vmem [shape: bf16[2,82,32], index: 0, kind: input, shape index: {}]
  %s1 = inlined_call_operand.vmem [shape: bf16[4,32,16], index: 1, kind: input, shape index: {}]
  %s2 = inlined_call_operand.vmem [shape: f32[1,16], index: 2, kind: input, shape index: {}]
  %s3 = inlined_call_operand.vmem [shape: f32[1,16], index: 3, kind: input, shape index: {}]
  %s4 = inlined_call_operand.vmem [shape: bf16[2,72,16], index: 4, kind: output, shape index: {}]
  %s5 = sld [smem:[#allocation0]]
  $region49: #{nlayer_discriminator_forward.6} parent=0
    _
  %s7 = ssub.s32 1, %s5
  %s8 = scalar_select 0, %s7, %s5
  loop: start=0, step=1, limit=4
  $region2: #{nlayer_discriminator_forward.6} parent=0 // loop_pre_header
    _
  $region3: #{nlayer_discriminator_forward.6} parent=0 // loop_header
    %s10 = sphi 0, %s14
    %p11 = scmp.ge.s32.totalorder %s10, 4
    %s20 = sphi 0, %s22
    %s23 = sphi 0, %s20
    %s24 = sphi 0, %s23
    %s40 = sphi 0, %s24
    %s44 = sphi 0, %s44
    %s46 = sphi 0, %s44
    %s47 = sphi 0, %s46
    %s61 = sphi 0, %s47
    %s65 = sphi 0, %s65
    %s67 = sphi 0, %s65
    %s68 = sphi 0, %s67
    %s82 = sphi 0, %s68
    %s86 = sphi 0, %s86
    %s88 = sphi 0, %s86
    %s89 = sphi 0, %s88
    %s103 = sphi 0, %s89
    %s109 = sphi 0, %s111
    %s112 = sphi 0, %s109
    %s113 = sphi 0, %s112
    %s129 = sphi 0, %s113
  $region4: #{nlayer_discriminator_forward.6} parent=0 // loop_header_branch
    %13 = sbr.rel (%p11) target = $region8
  $region5: #{nlayer_discriminator_forward.6} parent=0 // loop_body
    %s15 = ssub.s32 %s10, 1
    %s16 = ssub.s32 %s10, 2
    %s17 = sadd.s32 %s10, 1
    %s18 = ssub.s32 %s10, %s17
    %p19 = scmp.eq.s32.totalorder %s18, 0
    %s21 = sadd.s32 %s20, 1
    %s22 = scalar_select %p19, %s20, %s21
    %p25 = pneg %p19
    %p26 = scmp.eq.s32.totalorder %s10, 1
    %p27 = por %p25, %p26
    %p28 = scmp.ne.s32.totalorder %s20, %s23
    %p29 = scmp.eq.s32.totalorder %s10, 0
    %p30 = por %p28, %p29
    %p31 = scmp.ne.s32.totalorder %s20, %s23
    %p32 = scmp.eq.s32.totalorder %s15, 1
    %p33 = por %p31, %p32
    %p34 = scmp.ne.s32.totalorder %s23, %s24
    %p35 = scmp.eq.s32.totalorder %s15, 0
    %p36 = por %p34, %p35
    %p37 = scmp.ne.s32.totalorder %s23, %s24
    %p38 = scmp.eq.s32.totalorder %s16, 1
    %p39 = por %p37, %p38
    %p41 = scmp.ne.s32.totalorder %s24, %s40
    %p42 = scmp.eq.s32.totalorder %s16, 0
    %p43 = por %p41, %p42
    %s45 = sadd.s32 %s44, 1
    %p48 = scmp.eq.s32.totalorder %s10, 1
    %p49 = scmp.ne.s32.totalorder %s44, %s46
    %p50 = scmp.eq.s32.totalorder %s10, 0
    %p51 = por %p49, %p50
    %p52 = scmp.ne.s32.totalorder %s44, %s46
    %p53 = scmp.eq.s32.totalorder %s15, 1
    %p54 = por %p52, %p53
    %p55 = scmp.ne.s32.totalorder %s46, %s47
    %p56 = scmp.eq.s32.totalorder %s15, 0
    %p57 = por %p55, %p56
    %p58 = scmp.ne.s32.totalorder %s46, %s47
    %p59 = scmp.eq.s32.totalorder %s16, 1
    %p60 = por %p58, %p59
    %p62 = scmp.ne.s32.totalorder %s47, %s61
    %p63 = scmp.eq.s32.totalorder %s16, 0
    %p64 = por %p62, %p63
    %s66 = sadd.s32 %s65, 1
    %p69 = scmp.eq.s32.totalorder %s10, 1
    %p70 = scmp.ne.s32.totalorder %s65, %s67
    %p71 = scmp.eq.s32.totalorder %s10, 0
    %p72 = por %p70, %p71
    %p73 = scmp.ne.s32.totalorder %s65, %s67
    %p74 = scmp.eq.s32.totalorder %s15, 1
    %p75 = por %p73, %p74
    %p76 = scmp.ne.s32.totalorder %s67, %s68
    %p77 = scmp.eq.s32.totalorder %s15, 0
    %p78 = por %p76, %p77
    %p79 = scmp.ne.s32.totalorder %s67, %s68
    %p80 = scmp.eq.s32.totalorder %s16, 1
    %p81 = por %p79, %p80
    %p83 = scmp.ne.s32.totalorder %s68, %s82
    %p84 = scmp.eq.s32.totalorder %s16, 0
    %p85 = por %p83, %p84
    %s87 = sadd.s32 %s86, 1
    %p90 = scmp.eq.s32.totalorder %s10, 1
    %p91 = scmp.ne.s32.totalorder %s86, %s88
    %p92 = scmp.eq.s32.totalorder %s10, 0
    %p93 = por %p91, %p92
    %p94 = scmp.ne.s32.totalorder %s86, %s88
    %p95 = scmp.eq.s32.totalorder %s15, 1
    %p96 = por %p94, %p95
    %p97 = scmp.ne.s32.totalorder %s88, %s89
    %p98 = scmp.eq.s32.totalorder %s15, 0
    %p99 = por %p97, %p98
    %p100 = scmp.ne.s32.totalorder %s88, %s89
    %p101 = scmp.eq.s32.totalorder %s16, 1
    %p102 = por %p100, %p101
    %p104 = scmp.ne.s32.totalorder %s89, %s103
    %p105 = scmp.eq.s32.totalorder %s16, 0
    %p106 = por %p104, %p105
    %s107 = ssub.s32 %s10, %s17
    %p108 = scmp.eq.s32.totalorder %s107, 0
    %s110 = sadd.s32 %s109, 1
    %s111 = scalar_select %p108, %s109, %s110
    %p114 = pneg %p108
    %p115 = scmp.eq.s32.totalorder %s10, 1
    %p116 = por %p114, %p115
    %p117 = scmp.ne.s32.totalorder %s109, %s112
    %p118 = scmp.eq.s32.totalorder %s10, 0
    %p119 = por %p117, %p118
    %p120 = scmp.ne.s32.totalorder %s109, %s112
    %p121 = scmp.eq.s32.totalorder %s15, 1
    %p122 = por %p120, %p121
    %p123 = scmp.ne.s32.totalorder %s112, %s113
    %p124 = scmp.eq.s32.totalorder %s15, 0
    %p125 = por %p123, %p124
    %p126 = scmp.ne.s32.totalorder %s112, %s113
    %p127 = scmp.eq.s32.totalorder %s16, 1
    %p128 = por %p126, %p127
    %p130 = scmp.ne.s32.totalorder %s113, %s129
    %p131 = scmp.eq.s32.totalorder %s16, 0
    %p132 = por %p130, %p131
    %p133 = scmp.le.s32.totalorder 1, %s10
    %p134 = scmp.lt.s32.totalorder %s10, 3
    %p135 = pnand %p133, %p134
    %p136 = pneg %p135
    // Predicated region
    $region9: #{nlayer_discriminator_forward.6} parent=5 // pred_check
      _
    $region10: #{nlayer_discriminator_forward.6} parent=5 // pred_check_branch
      %138 = sbr.rel (%p135) target = $region12
    $region11: #{nlayer_discriminator_forward.6} parent=5 // pred_region
      %s139 = ssub.s32 %s10, 1
      // Predicated region
      $region13: #{nlayer_discriminator_forward.6} parent=11 // pred_check
        %p140 = pneg %p57
      $region14: #{nlayer_discriminator_forward.6} parent=11 // pred_check_branch
        %142 = sbr.rel (%p140) target = $region16
      $region15: #{nlayer_discriminator_forward.6} parent=11 // pred_region
        _
      $region16: #{nlayer_discriminator_forward.6} parent=11 // pred_fallthru
        _
      // Predicated region
      $region17: #{nlayer_discriminator_forward.6} parent=11 // pred_check
        %p143 = pneg %p78
      $region18: #{nlayer_discriminator_forward.6} parent=11 // pred_check_branch
        %145 = sbr.rel (%p143) target = $region20
      $region19: #{nlayer_discriminator_forward.6} parent=11 // pred_region
        _
      $region20: #{nlayer_discriminator_forward.6} parent=11 // pred_fallthru
        _
      // Predicated region
      $region21: #{nlayer_discriminator_forward.6} parent=11 // pred_check
        %p146 = pneg %p99
      $region22: #{nlayer_discriminator_forward.6} parent=11 // pred_check_branch
        %148 = sbr.rel (%p146) target = $region24
      $region23: #{nlayer_discriminator_forward.6} parent=11 // pred_region
        _
      $region24: #{nlayer_discriminator_forward.6} parent=11 // pred_fallthru
        _
    $region12: #{nlayer_discriminator_forward.6} parent=5 // pred_fallthru
      _
    %p149 = scmp.lt.s32.totalorder %s10, 2
    // Predicated region
    $region25: #{nlayer_discriminator_forward.6} parent=5 // pred_check
      %p150 = pneg %p149
    $region26: #{nlayer_discriminator_forward.6} parent=5 // pred_check_branch
      %152 = sbr.rel (%p150) target = $region28
    $region27: #{nlayer_discriminator_forward.6} parent=5 // pred_region
      // Predicated region
      $region29: #{nlayer_discriminator_forward.6} parent=27 // pred_check
        %p153 = pneg %p30
      $region30: #{nlayer_discriminator_forward.6} parent=27 // pred_check_branch
        %155 = sbr.rel (%p153) target = $region32
      $region31: #{nlayer_discriminator_forward.6} parent=27 // pred_region
        %p156 = scmp.lt.s32.totalorder %s10, 1
        %s157 = scalar_select %p156, %s10, 1
        %s158 = smul.addr %s157, 11
        %s159 = smul.addr %s158, 4
        %s160 = scalar_lea.vmem %s0, %s159
      $region32: #{nlayer_discriminator_forward.6} parent=27 // pred_fallthru
        _
    $region28: #{nlayer_discriminator_forward.6} parent=5 // pred_fallthru
      _
    %p161 = scmp.le.s32.totalorder 1, %s10
    %p162 = scmp.lt.s32.totalorder %s10, 3
    %p163 = pnand %p161, %p162
    %p164 = pneg %p163
    // Predicated region
    $region33: #{nlayer_discriminator_forward.6} parent=5 // pred_check
      _
    $region34: #{nlayer_discriminator_forward.6} parent=5 // pred_check_branch
      %166 = sbr.rel (%p163) target = $region36
    $region35: #{nlayer_discriminator_forward.6} parent=5 // pred_region
      %s167 = ssub.s32 %s10, 1
      %p168 = scmp.lt.s32.totalorder %s15, 1
      %s169 = scalar_select %p168, %s15, 1
      %s170 = smul.addr %s169, 11
      %s171 = smul.addr %s170, 4
      %s172 = scalar_lea.vmem %s0, %s171
      %p173 = pneg %p36
      %p174 = pneg %p33
      %p175 = pneg %p57
      %p176 = pneg %p54
      %p177 = pneg %p78
      %p178 = pneg %p75
      %p179 = pneg %p99
      %p180 = pneg %p96
      %p181 = pneg %p125
      %p182 = pneg %p122
      %p183 = scmp.lt.s32.totalorder %s15, 1
      %s184 = scalar_select %p183, %s15, 1
      %s185 = smul.addr %s184, 9
      %s186 = smul.addr %s185, 4
      %s187 = scalar_lea.vmem %s4, %s186
      %p188 = scmp.lt.s32.totalorder %s15, 1
      %s189 = scalar_select %p188, %s15, 1
      %s190 = smul.addr %s189, 11
      %s191 = smul.addr %s190, 4
      %s192 = scalar_lea.vmem %s0, %s191
      %p193 = scmp.lt.s32.totalorder %s15, 1
      %s194 = scalar_select %p193, %s15, 1
      %s195 = smul.addr %s194, 9
      %s196 = smul.addr %s195, 4
      %s197 = scalar_lea.vmem %s4, %s196
      %v199 = vld [vmem:[%s192] sm:$0xf]
      %v200 = vld [vmem:[%s192 + $0x4] sm:$0xf]
      %v201 = vld [vmem:[%s192 + $0x8] sm:$0xf]
      %v202 = vld [vmem:[%s192 + $0xc] sm:$0xf]
      %v203 = vld [vmem:[%s192 + $0x10] sm:$0xf]
      %v204 = vld [vmem:[%s192 + $0x14] sm:$0xf]
      %v205 = vld [vmem:[%s192 + $0x18] sm:$0xf]
      %v206 = vld [vmem:[%s192 + $0x1c] sm:$0xf]
      %v207 = vld [vmem:[%s192 + $0x20] sm:$0xf]
      %v208 = vld [vmem:[%s1] sm:$0xf]
      %v209 = vld [vmem:[%s1 + $0x4] sm:$0xf]
      %v210 = vld [vmem:[%s1 + $0x8] sm:$0xf]
      %v211 = vld [vmem:[%s1 + $0xc] sm:$0xf]
      %v212 = vld [vmem:[%s192 + $0x24] sm:$0x1]
      %s213 = scalar_lea.vmem %s1, 16
      %v214 = vld [vmem:[%s213] sm:$0xf]
      %v215 = vld [vmem:[%s213 + $0x4] sm:$0xf]
      %v216 = vld [vmem:[%s213 + $0x8] sm:$0xf]
      %v217 = vld [vmem:[%s213 + $0xc] sm:$0xf]
      %v228 = vunpack.c.l.b16 %v199
      %v229 = vunpack.c.l.b16 %v200
      %v230 = vunpack.c.l.b16 %v201
      %v231 = vunpack.c.l.b16 %v202
      %v232 = vunpack.c.l.b16 %v203
      %v233 = vunpack.c.l.b16 %v204
      %v234 = vunpack.c.l.b16 %v205
      %v235 = vunpack.c.l.b16 %v206
      %v236 = vunpack.c.l.b16 %v207
      %v237 = vunpack.c.l.b16 %v212
      %v238 = vpack.c.b16 %v229, %v228
      %v239 = vpack.c.b16 %v231, %v230
      %v240 = vpack.c.b16 %v233, %v232
      %v241 = vpack.c.b16 %v235, %v234
      %v242 = vpack.c.b16 %v237, %v236
      %vm243 = vsmask.f32 7424
      %v245 = vshrl.u32 %v238, 16
      %v247 = vshll.u32 %v238, 16
      %v249 = vrot.slane %v247, 1
      %v250 = vor.u32 %v245, %v249
      %v252 = vshll.u32 %v239, 16
      %v254 = vrot.slane %v252, 1
      %v255 = vsel %vm243, %v250, %v254
      %v256 = vshrl.u32 %v239, 16
      %v258 = vor.u32 %v256, %v254
      %v260 = vshll.u32 %v240, 16
      %v262 = vrot.slane %v260, 1
      %v263 = vsel %vm243, %v258, %v262
      %v264 = vshrl.u32 %v240, 16
      %v266 = vor.u32 %v264, %v262
      %v268 = vshll.u32 %v241, 16
      %v270 = vrot.slane %v268, 1
      %v271 = vsel %vm243, %v266, %v270
      %v272 = vshrl.u32 %v241, 16
      %v274 = vor.u32 %v272, %v270
      %v276 = vshll.u32 %v242, 16
      %v278 = vrot.slane %v276, 1
      %v279 = vsel %vm243, %v274, %v278
      %v280 = vshrl.u32 %v242, 16
      %v282 = vor.u32 %v280, %v278
      %v287 = vunpack.c.l.b16 %v214
      %v288 = vunpack.c.l.b16 %v215
      %v289 = vunpack.c.l.b16 %v216
      %v290 = vunpack.c.l.b16 %v217
      %v291 = vpack.c.b16 %v288, %v287
      %v292 = vpack.c.b16 %v290, %v289
      %vm295 = vcmask 261120
      %v297 = vsel %vm295, %v255, 0
      %v300 = vsel %vm295, %v263, 0
      %v303 = vsel %vm295, %v271, 0
      %v306 = vsel %vm295, %v279, 0
      %v309 = vsel %vm295, %v282, 0
      %311 = vmatpush.bf16.msra.mxu0 0
      %312 = vmatpush.bf16.msra.mxu0 0
      %313 = vmatpush.bf16.msra.mxu0 0
      %314 = vmatpush.bf16.msra.mxu0 0
      %315 = vmatpush.bf16.msra.mxu0 0
      %316 = vmatpush.bf16.msra.mxu0 0
      %317 = vmatpush.bf16.msra.mxu0 %v292
      %318 = vmatpush.bf16.msra.mxu0 %v291
      %319 = vmatmul.bf16.gmra.mxu0 %v297
      %v320 = vpop.f32.mrf.mxu0
      %v321 = vadd.f32 0.0, %v320
      %v322 = vpop.f32.mrf.mxu0
      %v323 = vadd.f32 0.0, %v322
      %324 = vmatmul.bf16.gmra.mxu0 %v300
      %v325 = vpop.f32.mrf.mxu0
      %v326 = vadd.f32 0.0, %v325
      %v327 = vpop.f32.mrf.mxu0
      %v328 = vadd.f32 0.0, %v327
      %329 = vmatmul.bf16.gmra.mxu0 %v303
      %v330 = vpop.f32.mrf.mxu0
      %v331 = vadd.f32 0.0, %v330
      %v332 = vpop.f32.mrf.mxu0
      %v333 = vadd.f32 0.0, %v332
      %334 = vmatmul.bf16.gmra.mxu0 %v306
      %v335 = vpop.f32.mrf.mxu0
      %v336 = vadd.f32 0.0, %v335
      %v337 = vpop.f32.mrf.mxu0
      %v338 = vadd.f32 0.0, %v337
      %339 = vmatmul.bf16.gmra.mxu0 %v309
      %v340 = vpop.f32.mrf.mxu0
      %v341 = vadd.f32 0.0, %v340
      %v342 = vpop.f32.mrf.mxu0
      %343 = vdwg.mxu0
      %v344 = vpack.c.b16 %v236, %v236
      %v349 = vunpack.c.l.b16 %v208
      %v350 = vunpack.c.l.b16 %v209
      %v351 = vunpack.c.l.b16 %v210
      %v352 = vunpack.c.l.b16 %v211
      %v353 = vpack.c.b16 %v350, %v349
      %v354 = vpack.c.b16 %v352, %v351
      %v357 = vsel %vm295, %v238, 0
      %v359 = vsel %vm295, %v239, 0
      %v361 = vsel %vm295, %v240, 0
      %v363 = vsel %vm295, %v241, 0
      %v366 = vsel %vm295, %v344, 0
      %368 = vmatpush.bf16.msra.mxu0 0
      %369 = vmatpush.bf16.msra.mxu0 0
      %370 = vmatpush.bf16.msra.mxu0 0
      %371 = vmatpush.bf16.msra.mxu0 0
      %372 = vmatpush.bf16.msra.mxu0 0
      %373 = vmatpush.bf16.msra.mxu0 0
      %374 = vmatpush.bf16.msra.mxu0 %v354
      %375 = vmatpush.bf16.msra.mxu0 %v353
      %376 = vmatmul.bf16.gmra.mxu0 %v357
      %v377 = vpop.f32.mrf.mxu0
      %v378 = vadd.f32 %v321, %v377
      %v379 = vpop.f32.mrf.mxu0
      %v380 = vadd.f32 %v323, %v379
      %381 = vmatmul.bf16.gmra.mxu0 %v359
      %v382 = vpop.f32.mrf.mxu0
      %v383 = vadd.f32 %v326, %v382
      %v384 = vpop.f32.mrf.mxu0
      %v385 = vadd.f32 %v328, %v384
      %386 = vmatmul.bf16.gmra.mxu0 %v361
      %v387 = vpop.f32.mrf.mxu0
      %v388 = vadd.f32 %v331, %v387
      %v389 = vpop.f32.mrf.mxu0
      %v390 = vadd.f32 %v333, %v389
      %391 = vmatmul.bf16.gmra.mxu0 %v363
      %v392 = vpop.f32.mrf.mxu0
      %v393 = vadd.f32 %v336, %v392
      %v394 = vpop.f32.mrf.mxu0
      %v395 = vadd.f32 %v338, %v394
      %396 = vmatmul.bf16.gmra.mxu0 %v366
      %v397 = vpop.f32.mrf.mxu0
      %v398 = vadd.f32 %v341, %v397
      %v399 = vpop.f32.mrf.mxu0
      %400 = vdwg.mxu0
      %v401 = vld [vmem:[%s192 + $0x4] sm:$0xf]
      %v402 = vld [vmem:[%s192 + $0x8] sm:$0xf]
      %v403 = vld [vmem:[%s192 + $0xc] sm:$0xf]
      %v404 = vld [vmem:[%s192 + $0x10] sm:$0xf]
      %v405 = vld [vmem:[%s192 + $0x14] sm:$0xf]
      %v406 = vld [vmem:[%s192 + $0x18] sm:$0xf]
      %v407 = vld [vmem:[%s192 + $0x1c] sm:$0xf]
      %v408 = vld [vmem:[%s192 + $0x20] sm:$0xf]
      %v409 = vld [vmem:[%s192 + $0x24] sm:$0xf]
      %v410 = vld [vmem:[%s192 + $0x28] sm:$0x1]
      %s411 = scalar_lea.vmem %s1, 32
      %v412 = vld [vmem:[%s411] sm:$0xf]
      %v413 = vld [vmem:[%s411 + $0x4] sm:$0xf]
      %v414 = vld [vmem:[%s411 + $0x8] sm:$0xf]
      %v415 = vld [vmem:[%s411 + $0xc] sm:$0xf]
      %v426 = vunpack.c.l.b16 %v401
      %v427 = vunpack.c.l.b16 %v402
      %v428 = vunpack.c.l.b16 %v403
      %v429 = vunpack.c.l.b16 %v404
      %v430 = vunpack.c.l.b16 %v405
      %v431 = vunpack.c.l.b16 %v406
      %v432 = vunpack.c.l.b16 %v407
      %v433 = vunpack.c.l.b16 %v408
      %v434 = vunpack.c.l.b16 %v409
      %v435 = vunpack.c.l.b16 %v410
      %v436 = vpack.c.b16 %v427, %v426
      %v437 = vpack.c.b16 %v429, %v428
      %v438 = vpack.c.b16 %v431, %v430
      %v439 = vpack.c.b16 %v433, %v432
      %v440 = vpack.c.b16 %v435, %v434
      %v442 = vshrl.u32 %v436, 16
      %v444 = vshll.u32 %v436, 16
      %v446 = vrot.slane %v444, 1
      %v447 = vor.u32 %v442, %v446
      %v449 = vshll.u32 %v437, 16
      %v451 = vrot.slane %v449, 1
      %v452 = vsel %vm243, %v447, %v451
      %v453 = vshrl.u32 %v437, 16
      %v455 = vor.u32 %v453, %v451
      %v457 = vshll.u32 %v438, 16
      %v459 = vrot.slane %v457, 1
      %v460 = vsel %vm243, %v455, %v459
      %v461 = vshrl.u32 %v438, 16
      %v463 = vor.u32 %v461, %v459
      %v465 = vshll.u32 %v439, 16
      %v467 = vrot.slane %v465, 1
      %v468 = vsel %vm243, %v463, %v467
      %v469 = vshrl.u32 %v439, 16
      %v471 = vor.u32 %v469, %v467
      %v473 = vshll.u32 %v440, 16
      %v475 = vrot.slane %v473, 1
      %v476 = vsel %vm243, %v471, %v475
      %v477 = vshrl.u32 %v440, 16
      %v479 = vor.u32 %v477, %v475
      %v484 = vunpack.c.l.b16 %v412
      %v485 = vunpack.c.l.b16 %v413
      %v486 = vunpack.c.l.b16 %v414
      %v487 = vunpack.c.l.b16 %v415
      %v488 = vpack.c.b16 %v485, %v484
      %v489 = vpack.c.b16 %v487, %v486
      %v493 = vsel %vm295, %v452, 0
      %v496 = vsel %vm295, %v460, 0
      %v499 = vsel %vm295, %v468, 0
      %v502 = vsel %vm295, %v476, 0
      %v505 = vsel %vm295, %v479, 0
      %507 = vmatpush.bf16.msra.mxu0 0
      %508 = vmatpush.bf16.msra.mxu0 0
      %509 = vmatpush.bf16.msra.mxu0 0
      %510 = vmatpush.bf16.msra.mxu0 0
      %511 = vmatpush.bf16.msra.mxu0 0
      %512 = vmatpush.bf16.msra.mxu0 0
      %513 = vmatpush.bf16.msra.mxu0 %v489
      %514 = vmatpush.bf16.msra.mxu0 %v488
      %515 = vmatmul.bf16.gmra.mxu0 %v493
      %v516 = vpop.f32.mrf.mxu0
      %v517 = vadd.f32 0.0, %v516
      %v518 = vpop.f32.mrf.mxu0
      %v519 = vadd.f32 0.0, %v518
      %520 = vmatmul.bf16.gmra.mxu0 %v496
      %v521 = vpop.f32.mrf.mxu0
      %v522 = vadd.f32 0.0, %v521
      %v523 = vpop.f32.mrf.mxu0
      %v524 = vadd.f32 0.0, %v523
      %525 = vmatmul.bf16.gmra.mxu0 %v499
      %v526 = vpop.f32.mrf.mxu0
      %v527 = vadd.f32 0.0, %v526
      %v528 = vpop.f32.mrf.mxu0
      %v529 = vadd.f32 0.0, %v528
      %530 = vmatmul.bf16.gmra.mxu0 %v502
      %v531 = vpop.f32.mrf.mxu0
      %v532 = vadd.f32 0.0, %v531
      %v533 = vpop.f32.mrf.mxu0
      %v534 = vadd.f32 0.0, %v533
      %535 = vmatmul.bf16.gmra.mxu0 %v505
      %v536 = vpop.f32.mrf.mxu0
      %v537 = vadd.f32 0.0, %v536
      %v538 = vpop.f32.mrf.mxu0
      %539 = vdwg.mxu0
      %v540 = vadd.f32 %v378, %v517
      %v541 = vadd.f32 %v380, %v519
      %v542 = vadd.f32 %v383, %v522
      %v543 = vadd.f32 %v385, %v524
      %v544 = vadd.f32 %v388, %v527
      %v545 = vadd.f32 %v390, %v529
      %v546 = vadd.f32 %v393, %v532
      %v547 = vadd.f32 %v395, %v534
      %v548 = vadd.f32 %v398, %v537
      %v549 = vld [vmem:[%s192 + $0x4] sm:$0xe]
      %s550 = scalar_lea.vmem %s1, 48
      %v551 = vld [vmem:[%s550] sm:$0xf]
      %v552 = vld [vmem:[%s550 + $0x4] sm:$0xf]
      %v553 = vld [vmem:[%s550 + $0x8] sm:$0xf]
      %v554 = vld [vmem:[%s550 + $0xc] sm:$0xf]
      %v556 = vunpack.c.l.b16 %v549
      %v557 = vpack.c.b16 %v427, %v556
      %vm558 = vcmask 1046528
      %v559 = vrot.slane %v557, 1
      %v560 = vrot.slane %v437, 1
      %v561 = vsel %vm558, %v559, %v560
      %v562 = vrot.slane %v438, 1
      %v563 = vsel %vm558, %v560, %v562
      %v564 = vrot.slane %v439, 1
      %v565 = vsel %vm558, %v562, %v564
      %v566 = vrot.slane %v440, 1
      %v567 = vsel %vm558, %v564, %v566
      %v572 = vunpack.c.l.b16 %v551
      %v573 = vunpack.c.l.b16 %v552
      %v574 = vunpack.c.l.b16 %v553
      %v575 = vunpack.c.l.b16 %v554
      %v576 = vpack.c.b16 %v573, %v572
      %v577 = vpack.c.b16 %v575, %v574
      %v581 = vsel %vm295, %v561, 0
      %v584 = vsel %vm295, %v563, 0
      %v587 = vsel %vm295, %v565, 0
      %v590 = vsel %vm295, %v567, 0
      %v593 = vsel %vm295, %v566, 0
      %595 = vmatpush.bf16.msra.mxu0 0
      %596 = vmatpush.bf16.msra.mxu0 0
      %597 = vmatpush.bf16.msra.mxu0 0
      %598 = vmatpush.bf16.msra.mxu0 0
      %599 = vmatpush.bf16.msra.mxu0 0
      %600 = vmatpush.bf16.msra.mxu0 0
      %601 = vmatpush.bf16.msra.mxu0 %v577
      %602 = vmatpush.bf16.msra.mxu0 %v576
      %603 = vmatmul.bf16.gmra.mxu0 %v581
      %v604 = vpop.f32.mrf.mxu0
      %v605 = vadd.f32 0.0, %v604
      %v606 = vpop.f32.mrf.mxu0
      %v607 = vadd.f32 0.0, %v606
      %608 = vmatmul.bf16.gmra.mxu0 %v584
      %v609 = vpop.f32.mrf.mxu0
      %v610 = vadd.f32 0.0, %v609
      %v611 = vpop.f32.mrf.mxu0
      %v612 = vadd.f32 0.0, %v611
      %613 = vmatmul.bf16.gmra.mxu0 %v587
      %v614 = vpop.f32.mrf.mxu0
      %v615 = vadd.f32 0.0, %v614
      %v616 = vpop.f32.mrf.mxu0
      %v617 = vadd.f32 0.0, %v616
      %618 = vmatmul.bf16.gmra.mxu0 %v590
      %v619 = vpop.f32.mrf.mxu0
      %v620 = vadd.f32 0.0, %v619
      %v621 = vpop.f32.mrf.mxu0
      %v622 = vadd.f32 0.0, %v621
      %623 = vmatmul.bf16.gmra.mxu0 %v593
      %v624 = vpop.f32.mrf.mxu0
      %v625 = vadd.f32 0.0, %v624
      %v626 = vpop.f32.mrf.mxu0
      %627 = vdwg.mxu0
      %v628 = vadd.f32 %v540, %v605
      %v629 = vadd.f32 %v541, %v607
      %v630 = vadd.f32 %v542, %v610
      %v631 = vadd.f32 %v543, %v612
      %v632 = vadd.f32 %v544, %v615
      %v633 = vadd.f32 %v545, %v617
      %v634 = vadd.f32 %v546, %v620
      %v635 = vadd.f32 %v547, %v622
      %v636 = vadd.f32 %v548, %v625
      %v637 = vld [vmem:[%s2] sm:$0x1]
      %v639 = vperm.slane %v637, 0
      %v641 = vmul.f32 %v628, %v639
      %v642 = vmul.f32 %v629, %v639
      %v643 = vmul.f32 %v630, %v639
      %v644 = vmul.f32 %v631, %v639
      %v645 = vmul.f32 %v632, %v639
      %v646 = vmul.f32 %v633, %v639
      %v647 = vmul.f32 %v634, %v639
      %v648 = vmul.f32 %v635, %v639
      %v649 = vmul.f32 %v636, %v639
      %v650 = vld [vmem:[%s3] sm:$0x1]
      %v652 = vperm.slane %v650, 0
      %v654 = vadd.f32 %v641, %v652
      %v655 = vadd.f32 %v642, %v652
      %v656 = vadd.f32 %v643, %v652
      %v657 = vadd.f32 %v644, %v652
      %v658 = vadd.f32 %v645, %v652
      %v659 = vadd.f32 %v646, %v652
      %v660 = vadd.f32 %v647, %v652
      %v661 = vadd.f32 %v648, %v652
      %v662 = vadd.f32 %v649, %v652
      %vm663 = vcmp.ge.f32.partialorder %v654, 0.0
      %vm664 = vcmp.ge.f32.partialorder %v655, 0.0
      %vm665 = vcmp.ge.f32.partialorder %v656, 0.0
      %vm666 = vcmp.ge.f32.partialorder %v657, 0.0
      %vm667 = vcmp.ge.f32.partialorder %v658, 0.0
      %vm668 = vcmp.ge.f32.partialorder %v659, 0.0
      %vm669 = vcmp.ge.f32.partialorder %v660, 0.0
      %vm670 = vcmp.ge.f32.partialorder %v661, 0.0
      %vm671 = vcmp.ge.f32.partialorder %v662, 0.0
      %v672 = vmul.f32 %v654, 0.2
      %v673 = vmul.f32 %v655, 0.2
      %v674 = vmul.f32 %v656, 0.2
      %v675 = vmul.f32 %v657, 0.2
      %v676 = vmul.f32 %v658, 0.2
      %v677 = vmul.f32 %v659, 0.2
      %v678 = vmul.f32 %v660, 0.2
      %v679 = vmul.f32 %v661, 0.2
      %v680 = vmul.f32 %v662, 0.2
      %v681 = vsel %vm663, %v654, %v672
      %v682 = vsel %vm664, %v655, %v673
      %v683 = vsel %vm665, %v656, %v674
      %v684 = vsel %vm666, %v657, %v675
      %v685 = vsel %vm667, %v658, %v676
      %v686 = vsel %vm668, %v659, %v677
      %v687 = vsel %vm669, %v660, %v678
      %v688 = vsel %vm670, %v661, %v679
      %v689 = vsel %vm671, %v662, %v680
      %v690 = vpack.c.bf16 %v681, %v681
      %v691 = vpack.c.bf16 %v682, %v682
      %v692 = vpack.c.bf16 %v683, %v683
      %v693 = vpack.c.bf16 %v684, %v684
      %v694 = vpack.c.bf16 %v685, %v685
      %v695 = vpack.c.bf16 %v686, %v686
      %v696 = vpack.c.bf16 %v687, %v687
      %v697 = vpack.c.bf16 %v688, %v688
      %v698 = vpack.c.bf16 %v689, %v689
      %vm699 = vcmask 125952
      %700 = vst.msk [vmem:[%s197] sm:$0xf] %vm699, %v690
      %701 = vst.msk [vmem:[%s197 + $0x4] sm:$0xf] %vm699, %v691
      %702 = vst.msk [vmem:[%s197 + $0x8] sm:$0xf] %vm699, %v692
      %703 = vst.msk [vmem:[%s197 + $0xc] sm:$0xf] %vm699, %v693
      %704 = vst.msk [vmem:[%s197 + $0x10] sm:$0xf] %vm699, %v694
      %705 = vst.msk [vmem:[%s197 + $0x14] sm:$0xf] %vm699, %v695
      %706 = vst.msk [vmem:[%s197 + $0x18] sm:$0xf] %vm699, %v696
      %707 = vst.msk [vmem:[%s197 + $0x1c] sm:$0xf] %vm699, %v697
      %708 = vst.msk [vmem:[%s197 + $0x20] sm:$0xf] %vm699, %v698
      %p709 = scmp.lt.s32.totalorder %s15, 1
      %s710 = scalar_select %p709, %s15, 1
      %s711 = smul.addr %s710, 9
      %s712 = smul.addr %s711, 4
      %s713 = scalar_lea.vmem %s4, %s712
      // Predicated region
      $region37: #{nlayer_discriminator_forward.6} parent=35 // pred_check
        %p714 = pneg %p122
      $region38: #{nlayer_discriminator_forward.6} parent=35 // pred_check_branch
        %716 = sbr.rel (%p714) target = $region40
      $region39: #{nlayer_discriminator_forward.6} parent=35 // pred_region
        _
      $region40: #{nlayer_discriminator_forward.6} parent=35 // pred_fallthru
        _
    $region36: #{nlayer_discriminator_forward.6} parent=5 // pred_fallthru
      _
    %p717 = scmp.le.s32.totalorder 2, %s10
    // Predicated region
    $region41: #{nlayer_discriminator_forward.6} parent=5 // pred_check
      %p718 = pneg %p717
    $region42: #{nlayer_discriminator_forward.6} parent=5 // pred_check_branch
      %720 = sbr.rel (%p718) target = $region44
    $region43: #{nlayer_discriminator_forward.6} parent=5 // pred_region
      %s721 = ssub.s32 %s10, 2
      // Predicated region
      $region45: #{nlayer_discriminator_forward.6} parent=43 // pred_check
        %p722 = pneg %p128
      $region46: #{nlayer_discriminator_forward.6} parent=43 // pred_check_branch
        %724 = sbr.rel (%p722) target = $region48
      $region47: #{nlayer_discriminator_forward.6} parent=43 // pred_region
        %p725 = scmp.lt.s32.totalorder %s16, 1
        %s726 = scalar_select %p725, %s16, 1
        %s727 = smul.addr %s726, 9
        %s728 = smul.addr %s727, 4
        %s729 = scalar_lea.vmem %s4, %s728
      $region48: #{nlayer_discriminator_forward.6} parent=43 // pred_fallthru
        _
    $region44: #{nlayer_discriminator_forward.6} parent=5 // pred_fallthru
      _
  $region6: #{nlayer_discriminator_forward.6} parent=0 // loop_footer
    %s14 = sadd.s32 1, %s10
  $region7: #{nlayer_discriminator_forward.6} parent=0 // loop_footer_branch
    %9 = sbr.rel target = $region3
  $region8: #{nlayer_discriminator_forward.6} parent=0 // loop_exit
    _

// kernel: nlayer_discriminator_forward.7
$region0: #{nlayer_discriminator_forward.7}
  #allocation0 [shape = 'u32[]', space=smem, size = 0x4, offset = 0x4, fixed_abs, tag = 'smem constant byte address 0x4 - core index']
  #allocation1 [shape = 'u32[72,128]{1,0:T(1,128)}', space=vmem, size = 0x9000, scoped, tag = 'internal scratch']
  %s0 = inlined_call_operand.vmem [shape: bf16[2,26,64], index: 0, kind: input, shape index: {}]
  %s1 = inlined_call_operand.vmem [shape: bf16[4,64,32], index: 1, kind: input, shape index: {}]
  %s2 = inlined_call_operand.vmem [shape: f32[1,32], index: 2, kind: input, shape index: {}]
  %s3 = inlined_call_operand.vmem [shape: f32[1,32], index: 3, kind: input, shape index: {}]
  %s4 = inlined_call_operand.vmem [shape: bf16[2,20,32], index: 4, kind: output, shape index: {}]
  %s5 = sld [smem:[#allocation0]]
  $region49: #{nlayer_discriminator_forward.7} parent=0
    _
  %s7 = ssub.s32 1, %s5
  %s8 = scalar_select 0, %s7, %s5
  loop: start=0, step=1, limit=4
  $region2: #{nlayer_discriminator_forward.7} parent=0 // loop_pre_header
    _
  $region3: #{nlayer_discriminator_forward.7} parent=0 // loop_header
    %s10 = sphi 0, %s14
    %p11 = scmp.ge.s32.totalorder %s10, 4
    %s20 = sphi 0, %s22
    %s23 = sphi 0, %s20
    %s24 = sphi 0, %s23
    %s40 = sphi 0, %s24
    %s44 = sphi 0, %s44
    %s46 = sphi 0, %s44
    %s47 = sphi 0, %s46
    %s61 = sphi 0, %s47
    %s65 = sphi 0, %s65
    %s67 = sphi 0, %s65
    %s68 = sphi 0, %s67
    %s82 = sphi 0, %s68
    %s86 = sphi 0, %s86
    %s88 = sphi 0, %s86
    %s89 = sphi 0, %s88
    %s103 = sphi 0, %s89
    %s109 = sphi 0, %s111
    %s112 = sphi 0, %s109
    %s113 = sphi 0, %s112
    %s129 = sphi 0, %s113
  $region4: #{nlayer_discriminator_forward.7} parent=0 // loop_header_branch
    %13 = sbr.rel (%p11) target = $region8
  $region5: #{nlayer_discriminator_forward.7} parent=0 // loop_body
    %s15 = ssub.s32 %s10, 1
    %s16 = ssub.s32 %s10, 2
    %s17 = sadd.s32 %s10, 1
    %s18 = ssub.s32 %s10, %s17
    %p19 = scmp.eq.s32.totalorder %s18, 0
    %s21 = sadd.s32 %s20, 1
    %s22 = scalar_select %p19, %s20, %s21
    %p25 = pneg %p19
    %p26 = scmp.eq.s32.totalorder %s10, 1
    %p27 = por %p25, %p26
    %p28 = scmp.ne.s32.totalorder %s20, %s23
    %p29 = scmp.eq.s32.totalorder %s10, 0
    %p30 = por %p28, %p29
    %p31 = scmp.ne.s32.totalorder %s20, %s23
    %p32 = scmp.eq.s32.totalorder %s15, 1
    %p33 = por %p31, %p32
    %p34 = scmp.ne.s32.totalorder %s23, %s24
    %p35 = scmp.eq.s32.totalorder %s15, 0
    %p36 = por %p34, %p35
    %p37 = scmp.ne.s32.totalorder %s23, %s24
    %p38 = scmp.eq.s32.totalorder %s16, 1
    %p39 = por %p37, %p38
    %p41 = scmp.ne.s32.totalorder %s24, %s40
    %p42 = scmp.eq.s32.totalorder %s16, 0
    %p43 = por %p41, %p42
    %s45 = sadd.s32 %s44, 1
    %p48 = scmp.eq.s32.totalorder %s10, 1
    %p49 = scmp.ne.s32.totalorder %s44, %s46
    %p50 = scmp.eq.s32.totalorder %s10, 0
    %p51 = por %p49, %p50
    %p52 = scmp.ne.s32.totalorder %s44, %s46
    %p53 = scmp.eq.s32.totalorder %s15, 1
    %p54 = por %p52, %p53
    %p55 = scmp.ne.s32.totalorder %s46, %s47
    %p56 = scmp.eq.s32.totalorder %s15, 0
    %p57 = por %p55, %p56
    %p58 = scmp.ne.s32.totalorder %s46, %s47
    %p59 = scmp.eq.s32.totalorder %s16, 1
    %p60 = por %p58, %p59
    %p62 = scmp.ne.s32.totalorder %s47, %s61
    %p63 = scmp.eq.s32.totalorder %s16, 0
    %p64 = por %p62, %p63
    %s66 = sadd.s32 %s65, 1
    %p69 = scmp.eq.s32.totalorder %s10, 1
    %p70 = scmp.ne.s32.totalorder %s65, %s67
    %p71 = scmp.eq.s32.totalorder %s10, 0
    %p72 = por %p70, %p71
    %p73 = scmp.ne.s32.totalorder %s65, %s67
    %p74 = scmp.eq.s32.totalorder %s15, 1
    %p75 = por %p73, %p74
    %p76 = scmp.ne.s32.totalorder %s67, %s68
    %p77 = scmp.eq.s32.totalorder %s15, 0
    %p78 = por %p76, %p77
    %p79 = scmp.ne.s32.totalorder %s67, %s68
    %p80 = scmp.eq.s32.totalorder %s16, 1
    %p81 = por %p79, %p80
    %p83 = scmp.ne.s32.totalorder %s68, %s82
    %p84 = scmp.eq.s32.totalorder %s16, 0
    %p85 = por %p83, %p84
    %s87 = sadd.s32 %s86, 1
    %p90 = scmp.eq.s32.totalorder %s10, 1
    %p91 = scmp.ne.s32.totalorder %s86, %s88
    %p92 = scmp.eq.s32.totalorder %s10, 0
    %p93 = por %p91, %p92
    %p94 = scmp.ne.s32.totalorder %s86, %s88
    %p95 = scmp.eq.s32.totalorder %s15, 1
    %p96 = por %p94, %p95
    %p97 = scmp.ne.s32.totalorder %s88, %s89
    %p98 = scmp.eq.s32.totalorder %s15, 0
    %p99 = por %p97, %p98
    %p100 = scmp.ne.s32.totalorder %s88, %s89
    %p101 = scmp.eq.s32.totalorder %s16, 1
    %p102 = por %p100, %p101
    %p104 = scmp.ne.s32.totalorder %s89, %s103
    %p105 = scmp.eq.s32.totalorder %s16, 0
    %p106 = por %p104, %p105
    %s107 = ssub.s32 %s10, %s17
    %p108 = scmp.eq.s32.totalorder %s107, 0
    %s110 = sadd.s32 %s109, 1
    %s111 = scalar_select %p108, %s109, %s110
    %p114 = pneg %p108
    %p115 = scmp.eq.s32.totalorder %s10, 1
    %p116 = por %p114, %p115
    %p117 = scmp.ne.s32.totalorder %s109, %s112
    %p118 = scmp.eq.s32.totalorder %s10, 0
    %p119 = por %p117, %p118
    %p120 = scmp.ne.s32.totalorder %s109, %s112
    %p121 = scmp.eq.s32.totalorder %s15, 1
    %p122 = por %p120, %p121
    %p123 = scmp.ne.s32.totalorder %s112, %s113
    %p124 = scmp.eq.s32.totalorder %s15, 0
    %p125 = por %p123, %p124
    %p126 = scmp.ne.s32.totalorder %s112, %s113
    %p127 = scmp.eq.s32.totalorder %s16, 1
    %p128 = por %p126, %p127
    %p130 = scmp.ne.s32.totalorder %s113, %s129
    %p131 = scmp.eq.s32.totalorder %s16, 0
    %p132 = por %p130, %p131
    %p133 = scmp.le.s32.totalorder 1, %s10
    %p134 = scmp.lt.s32.totalorder %s10, 3
    %p135 = pnand %p133, %p134
    %p136 = pneg %p135
    // Predicated region
    $region9: #{nlayer_discriminator_forward.7} parent=5 // pred_check
      _
    $region10: #{nlayer_discriminator_forward.7} parent=5 // pred_check_branch
      %138 = sbr.rel (%p135) target = $region12
    $region11: #{nlayer_discriminator_forward.7} parent=5 // pred_region
      %s139 = ssub.s32 %s10, 1
      // Predicated region
      $region13: #{nlayer_discriminator_forward.7} parent=11 // pred_check
        %p140 = pneg %p57
      $region14: #{nlayer_discriminator_forward.7} parent=11 // pred_check_branch
        %142 = sbr.rel (%p140) target = $region16
      $region15: #{nlayer_discriminator_forward.7} parent=11 // pred_region
        _
      $region16: #{nlayer_discriminator_forward.7} parent=11 // pred_fallthru
        _
      // Predicated region
      $region17: #{nlayer_discriminator_forward.7} parent=11 // pred_check
        %p143 = pneg %p78
      $region18: #{nlayer_discriminator_forward.7} parent=11 // pred_check_branch
        %145 = sbr.rel (%p143) target = $region20
      $region19: #{nlayer_discriminator_forward.7} parent=11 // pred_region
        _
      $region20: #{nlayer_discriminator_forward.7} parent=11 // pred_fallthru
        _
      // Predicated region
      $region21: #{nlayer_discriminator_forward.7} parent=11 // pred_check
        %p146 = pneg %p99
      $region22: #{nlayer_discriminator_forward.7} parent=11 // pred_check_branch
        %148 = sbr.rel (%p146) target = $region24
      $region23: #{nlayer_discriminator_forward.7} parent=11 // pred_region
        _
      $region24: #{nlayer_discriminator_forward.7} parent=11 // pred_fallthru
        _
    $region12: #{nlayer_discriminator_forward.7} parent=5 // pred_fallthru
      _
    %p149 = scmp.lt.s32.totalorder %s10, 2
    // Predicated region
    $region25: #{nlayer_discriminator_forward.7} parent=5 // pred_check
      %p150 = pneg %p149
    $region26: #{nlayer_discriminator_forward.7} parent=5 // pred_check_branch
      %152 = sbr.rel (%p150) target = $region28
    $region27: #{nlayer_discriminator_forward.7} parent=5 // pred_region
      // Predicated region
      $region29: #{nlayer_discriminator_forward.7} parent=27 // pred_check
        %p153 = pneg %p30
      $region30: #{nlayer_discriminator_forward.7} parent=27 // pred_check_branch
        %155 = sbr.rel (%p153) target = $region32
      $region31: #{nlayer_discriminator_forward.7} parent=27 // pred_region
        %p156 = scmp.lt.s32.totalorder %s10, 1
        %s157 = scalar_select %p156, %s10, 1
        %s158 = smul.addr %s157, 4
        %s159 = smul.addr %s158, 4
        %s160 = scalar_lea.vmem %s0, %s159
      $region32: #{nlayer_discriminator_forward.7} parent=27 // pred_fallthru
        _
    $region28: #{nlayer_discriminator_forward.7} parent=5 // pred_fallthru
      _
    %p161 = scmp.le.s32.totalorder 1, %s10
    %p162 = scmp.lt.s32.totalorder %s10, 3
    %p163 = pnand %p161, %p162
    %p164 = pneg %p163
    // Predicated region
    $region33: #{nlayer_discriminator_forward.7} parent=5 // pred_check
      _
    $region34: #{nlayer_discriminator_forward.7} parent=5 // pred_check_branch
      %166 = sbr.rel (%p163) target = $region36
    $region35: #{nlayer_discriminator_forward.7} parent=5 // pred_region
      %s167 = ssub.s32 %s10, 1
      %p168 = scmp.lt.s32.totalorder %s15, 1
      %s169 = scalar_select %p168, %s15, 1
      %s170 = smul.addr %s169, 4
      %s171 = smul.addr %s170, 4
      %s172 = scalar_lea.vmem %s0, %s171
      %p173 = pneg %p36
      %p174 = pneg %p33
      %p175 = pneg %p57
      %p176 = pneg %p54
      %p177 = pneg %p78
      %p178 = pneg %p75
      %p179 = pneg %p99
      %p180 = pneg %p96
      %p181 = pneg %p125
      %p182 = pneg %p122
      %p183 = scmp.lt.s32.totalorder %s15, 1
      %s184 = scalar_select %p183, %s15, 1
      %s185 = smul.addr %s184, 3
      %s186 = smul.addr %s185, 4
      %s187 = scalar_lea.vmem %s4, %s186
      %p188 = scmp.lt.s32.totalorder %s15, 1
      %s189 = scalar_select %p188, %s15, 1
      %s190 = smul.addr %s189, 4
      %s191 = smul.addr %s190, 4
      %s192 = scalar_lea.vmem %s0, %s191
      %p193 = scmp.lt.s32.totalorder %s15, 1
      %s194 = scalar_select %p193, %s15, 1
      %s195 = smul.addr %s194, 3
      %s196 = smul.addr %s195, 4
      %s197 = scalar_lea.vmem %s4, %s196
      %v199 = vld [vmem:[%s192] sm:$0xf]
      %v200 = vld [vmem:[%s192 + $0x4] sm:$0xf]
      %v201 = vld [vmem:[%s192 + $0x8] sm:$0x3]
      %v202 = vld [vmem:[%s1] sm:$0xf]
      %v203 = vld [vmem:[%s1 + $0x4] sm:$0xf]
      %v204 = vld [vmem:[%s1 + $0x8] sm:$0xf]
      %v205 = vld [vmem:[%s1 + $0xc] sm:$0xf]
      %v206 = vld [vmem:[%s1 + $0x10] sm:$0xf]
      %v207 = vld [vmem:[%s1 + $0x14] sm:$0xf]
      %v208 = vld [vmem:[%s1 + $0x18] sm:$0xf]
      %v209 = vld [vmem:[%s1 + $0x1c] sm:$0xf]
      %v210 = vld [vmem:[%s192 + $0x8] sm:$0x7]
      %s211 = scalar_lea.vmem %s1, 32
      %v212 = vld [vmem:[%s211] sm:$0xf]
      %v213 = vld [vmem:[%s211 + $0x4] sm:$0xf]
      %v214 = vld [vmem:[%s211 + $0x8] sm:$0xf]
      %v215 = vld [vmem:[%s211 + $0xc] sm:$0xf]
      %v216 = vld [vmem:[%s211 + $0x10] sm:$0xf]
      %v217 = vld [vmem:[%s211 + $0x14] sm:$0xf]
      %v218 = vld [vmem:[%s211 + $0x18] sm:$0xf]
      %v219 = vld [vmem:[%s211 + $0x1c] sm:$0xf]
      %v223 = vunpack.c.l.b16 %v199
      %v224 = vunpack.c.l.b16 %v200
      %v225 = vunpack.c.l.b16 %v210
      %v226 = vpack.c.b16 %v224, %v223
      %v227 = vpack.c.b16 %v225, %v225
      %vm228 = vsmask.f32 7424
      %v230 = vshrl.u32 %v226, 16
      %v232 = vshll.u32 %v226, 16
      %v234 = vrot.slane %v232, 1
      %v235 = vor.u32 %v230, %v234
      %v237 = vshll.u32 %v227, 16
      %v239 = vrot.slane %v237, 1
      %v240 = vsel %vm228, %v235, %v239
      %v241 = vshrl.u32 %v227, 16
      %v243 = vor.u32 %v241, %v239
      %v252 = vunpack.c.l.b16 %v212
      %v253 = vunpack.c.l.b16 %v213
      %v254 = vunpack.c.l.b16 %v214
      %v255 = vunpack.c.l.b16 %v215
      %v256 = vunpack.c.l.b16 %v216
      %v257 = vunpack.c.l.b16 %v217
      %v258 = vunpack.c.l.b16 %v218
      %v259 = vunpack.c.l.b16 %v219
      %v260 = vpack.c.b16 %v253, %v252
      %v261 = vpack.c.b16 %v255, %v254
      %v262 = vpack.c.b16 %v257, %v256
      %v263 = vpack.c.b16 %v259, %v258
      %vm268 = vcmask 523264
      %v270 = vsel %vm268, %v240, 0
      %v273 = vsel %vm268, %v243, 0
      %275 = vmatpush.bf16.msra.mxu0 0
      %276 = vmatpush.bf16.msra.mxu0 0
      %277 = vmatpush.bf16.msra.mxu0 0
      %278 = vmatpush.bf16.msra.mxu0 0
      %279 = vmatpush.bf16.msra.mxu0 %v263
      %280 = vmatpush.bf16.msra.mxu0 %v262
      %281 = vmatpush.bf16.msra.mxu0 %v261
      %282 = vmatpush.bf16.msra.mxu0 %v260
      %283 = vmatmul.bf16.gmra.mxu0 %v270
      %v284 = vpop.f32.mrf.mxu0
      %v285 = vadd.f32 0.0, %v284
      %v286 = vpop.f32.mrf.mxu0
      %v287 = vadd.f32 0.0, %v286
      %288 = vmatmul.bf16.gmra.mxu0 %v273
      %v289 = vpop.f32.mrf.mxu0
      %v290 = vadd.f32 0.0, %v289
      %v291 = vpop.f32.mrf.mxu0
      %292 = vdwg.mxu0
      %v294 = vunpack.c.l.b16 %v201
      %v295 = vpack.c.b16 %v294, %v294
      %v304 = vunpack.c.l.b16 %v202
      %v305 = vunpack.c.l.b16 %v203
      %v306 = vunpack.c.l.b16 %v204
      %v307 = vunpack.c.l.b16 %v205
      %v308 = vunpack.c.l.b16 %v206
      %v309 = vunpack.c.l.b16 %v207
      %v310 = vunpack.c.l.b16 %v208
      %v311 = vunpack.c.l.b16 %v209
      %v312 = vpack.c.b16 %v305, %v304
      %v313 = vpack.c.b16 %v307, %v306
      %v314 = vpack.c.b16 %v309, %v308
      %v315 = vpack.c.b16 %v311, %v310
      %v320 = vsel %vm268, %v226, 0
      %v323 = vsel %vm268, %v295, 0
      %325 = vmatpush.bf16.msra.mxu0 0
      %326 = vmatpush.bf16.msra.mxu0 0
      %327 = vmatpush.bf16.msra.mxu0 0
      %328 = vmatpush.bf16.msra.mxu0 0
      %329 = vmatpush.bf16.msra.mxu0 %v315
      %330 = vmatpush.bf16.msra.mxu0 %v314
      %331 = vmatpush.bf16.msra.mxu0 %v313
      %332 = vmatpush.bf16.msra.mxu0 %v312
      %333 = vmatmul.bf16.gmra.mxu0 %v320
      %v334 = vpop.f32.mrf.mxu0
      %v335 = vadd.f32 %v285, %v334
      %v336 = vpop.f32.mrf.mxu0
      %v337 = vadd.f32 %v287, %v336
      %338 = vmatmul.bf16.gmra.mxu0 %v323
      %v339 = vpop.f32.mrf.mxu0
      %v340 = vadd.f32 %v290, %v339
      %v341 = vpop.f32.mrf.mxu0
      %342 = vdwg.mxu0
      %v343 = vld [vmem:[%s192] sm:$0xc]
      %v344 = vld [vmem:[%s192 + $0x4] sm:$0xf]
      %v345 = vld [vmem:[%s192 + $0x8] sm:$0xf]
      %v346 = vld [vmem:[%s192 + $0xc] sm:$0x1]
      %s347 = scalar_lea.vmem %s1, 64
      %v348 = vld [vmem:[%s347] sm:$0xf]
      %v349 = vld [vmem:[%s347 + $0x4] sm:$0xf]
      %v350 = vld [vmem:[%s347 + $0x8] sm:$0xf]
      %v351 = vld [vmem:[%s347 + $0xc] sm:$0xf]
      %v352 = vld [vmem:[%s347 + $0x10] sm:$0xf]
      %v353 = vld [vmem:[%s347 + $0x14] sm:$0xf]
      %v354 = vld [vmem:[%s347 + $0x18] sm:$0xf]
      %v355 = vld [vmem:[%s347 + $0x1c] sm:$0xf]
      %v360 = vunpack.c.l.b16 %v343
      %v361 = vunpack.c.l.b16 %v344
      %v362 = vunpack.c.l.b16 %v345
      %v363 = vunpack.c.l.b16 %v346
      %v364 = vpack.c.b16 %v361, %v360
      %v365 = vpack.c.b16 %v363, %v362
      %vm366 = vsmask.f32 5376
      %v368 = vshrl.u32 %v364, 16
      %v370 = vrot.slane %v368, 2
      %v371 = vshll.u32 %v364, 16
      %v373 = vrot.slane %v371, 3
      %v374 = vor.u32 %v370, %v373
      %v376 = vshrl.u32 %v365, 16
      %v378 = vrot.slane %v376, 2
      %v379 = vshll.u32 %v365, 16
      %v381 = vrot.slane %v379, 3
      %v382 = vor.u32 %v378, %v381
      %v383 = vsel %vm366, %v374, %v382
      %v392 = vunpack.c.l.b16 %v348
      %v393 = vunpack.c.l.b16 %v349
      %v394 = vunpack.c.l.b16 %v350
      %v395 = vunpack.c.l.b16 %v351
      %v396 = vunpack.c.l.b16 %v352
      %v397 = vunpack.c.l.b16 %v353
      %v398 = vunpack.c.l.b16 %v354
      %v399 = vunpack.c.l.b16 %v355
      %v400 = vpack.c.b16 %v393, %v392
      %v401 = vpack.c.b16 %v395, %v394
      %v402 = vpack.c.b16 %v397, %v396
      %v403 = vpack.c.b16 %v399, %v398
      %v409 = vsel %vm268, %v383, 0
      %v412 = vsel %vm268, %v382, 0
      %414 = vmatpush.bf16.msra.mxu0 0
      %415 = vmatpush.bf16.msra.mxu0 0
      %416 = vmatpush.bf16.msra.mxu0 0
      %417 = vmatpush.bf16.msra.mxu0 0
      %418 = vmatpush.bf16.msra.mxu0 %v403
      %419 = vmatpush.bf16.msra.mxu0 %v402
      %420 = vmatpush.bf16.msra.mxu0 %v401
      %421 = vmatpush.bf16.msra.mxu0 %v400
      %422 = vmatmul.bf16.gmra.mxu0 %v409
      %v423 = vpop.f32.mrf.mxu0
      %v424 = vadd.f32 0.0, %v423
      %v425 = vpop.f32.mrf.mxu0
      %v426 = vadd.f32 0.0, %v425
      %427 = vmatmul.bf16.gmra.mxu0 %v412
      %v428 = vpop.f32.mrf.mxu0
      %v429 = vadd.f32 0.0, %v428
      %v430 = vpop.f32.mrf.mxu0
      %431 = vdwg.mxu0
      %v432 = vadd.f32 %v335, %v424
      %v433 = vadd.f32 %v337, %v426
      %v434 = vadd.f32 %v340, %v429
      %v435 = vld [vmem:[%s192] sm:$0x8]
      %s436 = scalar_lea.vmem %s1, 96
      %v437 = vld [vmem:[%s436] sm:$0xf]
      %v438 = vld [vmem:[%s436 + $0x4] sm:$0xf]
      %v439 = vld [vmem:[%s436 + $0x8] sm:$0xf]
      %v440 = vld [vmem:[%s436 + $0xc] sm:$0xf]
      %v441 = vld [vmem:[%s436 + $0x10] sm:$0xf]
      %v442 = vld [vmem:[%s436 + $0x14] sm:$0xf]
      %v443 = vld [vmem:[%s436 + $0x18] sm:$0xf]
      %v444 = vld [vmem:[%s436 + $0x1c] sm:$0xf]
      %v446 = vunpack.c.l.b16 %v435
      %v447 = vpack.c.b16 %v361, %v446
      %vm448 = vcmask 1044480
      %v449 = vrot.slane %v447, 3
      %v450 = vrot.slane %v365, 3
      %v451 = vsel %vm448, %v449, %v450
      %v460 = vunpack.c.l.b16 %v437
      %v461 = vunpack.c.l.b16 %v438
      %v462 = vunpack.c.l.b16 %v439
      %v463 = vunpack.c.l.b16 %v440
      %v464 = vunpack.c.l.b16 %v441
      %v465 = vunpack.c.l.b16 %v442
      %v466 = vunpack.c.l.b16 %v443
      %v467 = vunpack.c.l.b16 %v444
      %v468 = vpack.c.b16 %v461, %v460
      %v469 = vpack.c.b16 %v463, %v462
      %v470 = vpack.c.b16 %v465, %v464
      %v471 = vpack.c.b16 %v467, %v466
      %v477 = vsel %vm268, %v451, 0
      %v480 = vsel %vm268, %v450, 0
      %482 = vmatpush.bf16.msra.mxu0 0
      %483 = vmatpush.bf16.msra.mxu0 0
      %484 = vmatpush.bf16.msra.mxu0 0
      %485 = vmatpush.bf16.msra.mxu0 0
      %486 = vmatpush.bf16.msra.mxu0 %v471
      %487 = vmatpush.bf16.msra.mxu0 %v470
      %488 = vmatpush.bf16.msra.mxu0 %v469
      %489 = vmatpush.bf16.msra.mxu0 %v468
      %490 = vmatmul.bf16.gmra.mxu0 %v477
      %v491 = vpop.f32.mrf.mxu0
      %v492 = vadd.f32 0.0, %v491
      %v493 = vpop.f32.mrf.mxu0
      %v494 = vadd.f32 0.0, %v493
      %495 = vmatmul.bf16.gmra.mxu0 %v480
      %v496 = vpop.f32.mrf.mxu0
      %v497 = vadd.f32 0.0, %v496
      %v498 = vpop.f32.mrf.mxu0
      %499 = vdwg.mxu0
      %v500 = vadd.f32 %v432, %v492
      %v501 = vadd.f32 %v433, %v494
      %v502 = vadd.f32 %v434, %v497
      %v503 = vld [vmem:[%s2] sm:$0x1]
      %v505 = vperm.slane %v503, 0
      %v507 = vmul.f32 %v500, %v505
      %v508 = vmul.f32 %v501, %v505
      %v509 = vmul.f32 %v502, %v505
      %v510 = vld [vmem:[%s3] sm:$0x1]
      %v512 = vperm.slane %v510, 0
      %v514 = vadd.f32 %v507, %v512
      %v515 = vadd.f32 %v508, %v512
      %v516 = vadd.f32 %v509, %v512
      %vm517 = vcmp.ge.f32.partialorder %v514, 0.0
      %vm518 = vcmp.ge.f32.partialorder %v515, 0.0
      %vm519 = vcmp.ge.f32.partialorder %v516, 0.0
      %v520 = vmul.f32 %v514, 0.2
      %v521 = vmul.f32 %v515, 0.2
      %v522 = vmul.f32 %v516, 0.2
      %v523 = vsel %vm517, %v514, %v520
      %v524 = vsel %vm518, %v515, %v521
      %v525 = vsel %vm519, %v516, %v522
      %v526 = vpack.c.bf16 %v523, %v523
      %v527 = vpack.c.bf16 %v524, %v524
      %v528 = vpack.c.bf16 %v525, %v525
      %vm529 = vcmask 257024
      %530 = vst.msk [vmem:[%s197] sm:$0xf] %vm529, %v526
      %531 = vst.msk [vmem:[%s197 + $0x4] sm:$0xf] %vm529, %v527
      %vm532 = vcmask 254976
      %533 = vst.msk [vmem:[%s197 + $0x8] sm:$0x3] %vm532, %v528
      %p534 = scmp.lt.s32.totalorder %s15, 1
      %s535 = scalar_select %p534, %s15, 1
      %s536 = smul.addr %s535, 3
      %s537 = smul.addr %s536, 4
      %s538 = scalar_lea.vmem %s4, %s537
      // Predicated region
      $region37: #{nlayer_discriminator_forward.7} parent=35 // pred_check
        %p539 = pneg %p122
      $region38: #{nlayer_discriminator_forward.7} parent=35 // pred_check_branch
        %541 = sbr.rel (%p539) target = $region40
      $region39: #{nlayer_discriminator_forward.7} parent=35 // pred_region
        _
      $region40: #{nlayer_discriminator_forward.7} parent=35 // pred_fallthru
        _
    $region36: #{nlayer_discriminator_forward.7} parent=5 // pred_fallthru
      _
    %p542 = scmp.le.s32.totalorder 2, %s10
    // Predicated region
    $region41: #{nlayer_discriminator_forward.7} parent=5 // pred_check
      %p543 = pneg %p542
    $region42: #{nlayer_discriminator_forward.7} parent=5 // pred_check_branch
      %545 = sbr.rel (%p543) target = $region44
    $region43: #{nlayer_discriminator_forward.7} parent=5 // pred_region
      %s546 = ssub.s32 %s10, 2
      // Predicated region
      $region45: #{nlayer_discriminator_forward.7} parent=43 // pred_check
        %p547 = pneg %p128
      $region46: #{nlayer_discriminator_forward.7} parent=43 // pred_check_branch
        %549 = sbr.rel (%p547) target = $region48
      $region47: #{nlayer_discriminator_forward.7} parent=43 // pred_region
        %p550 = scmp.lt.s32.totalorder %s16, 1
        %s551 = scalar_select %p550, %s16, 1
        %s552 = smul.addr %s551, 3
        %s553 = smul.addr %s552, 4
        %s554 = scalar_lea.vmem %s4, %s553
      $region48: #{nlayer_discriminator_forward.7} parent=43 // pred_fallthru
        _
    $region44: #{nlayer_discriminator_forward.7} parent=5 // pred_fallthru
      _
  $region6: #{nlayer_discriminator_forward.7} parent=0 // loop_footer
    %s14 = sadd.s32 1, %s10
  $region7: #{nlayer_discriminator_forward.7} parent=0 // loop_footer_branch
    %9 = sbr.rel target = $region3
  $region8: #{nlayer_discriminator_forward.7} parent=0 // loop_exit
    _

// kernel: nlayer_discriminator_forward.8
$region0: #{nlayer_discriminator_forward.8}
  #allocation0 [shape = 'u32[]', space=smem, size = 0x4, offset = 0x4, fixed_abs, tag = 'smem constant byte address 0x4 - core index']
  #allocation1 [shape = 'u32[72,128]{1,0:T(1,128)}', space=vmem, size = 0x9000, scoped, tag = 'internal scratch']
  %s0 = inlined_call_operand.vmem [shape: bf16[2,39,32], index: 0, kind: input, shape index: {}]
  %s1 = inlined_call_operand.vmem [shape: bf16[16,32,64], index: 1, kind: input, shape index: {}]
  %s2 = inlined_call_operand.vmem [shape: f32[1,64], index: 2, kind: input, shape index: {}]
  %s3 = inlined_call_operand.vmem [shape: f32[1,64], index: 3, kind: input, shape index: {}]
  %s4 = inlined_call_operand.vmem [shape: bf16[2,18,64], index: 4, kind: output, shape index: {}]
  %s5 = sld [smem:[#allocation0]]
  $region49: #{nlayer_discriminator_forward.8} parent=0
    _
  %s7 = ssub.s32 1, %s5
  %s8 = scalar_select 0, %s7, %s5
  loop: start=0, step=1, limit=4
  $region2: #{nlayer_discriminator_forward.8} parent=0 // loop_pre_header
    _
  $region3: #{nlayer_discriminator_forward.8} parent=0 // loop_header
    %s10 = sphi 0, %s14
    %p11 = scmp.ge.s32.totalorder %s10, 4
    %s20 = sphi 0, %s22
    %s23 = sphi 0, %s20
    %s24 = sphi 0, %s23
    %s40 = sphi 0, %s24
    %s44 = sphi 0, %s44
    %s46 = sphi 0, %s44
    %s47 = sphi 0, %s46
    %s61 = sphi 0, %s47
    %s65 = sphi 0, %s65
    %s67 = sphi 0, %s65
    %s68 = sphi 0, %s67
    %s82 = sphi 0, %s68
    %s86 = sphi 0, %s86
    %s88 = sphi 0, %s86
    %s89 = sphi 0, %s88
    %s103 = sphi 0, %s89
    %s109 = sphi 0, %s111
    %s112 = sphi 0, %s109
    %s113 = sphi 0, %s112
    %s129 = sphi 0, %s113
  $region4: #{nlayer_discriminator_forward.8} parent=0 // loop_header_branch
    %13 = sbr.rel (%p11) target = $region8
  $region5: #{nlayer_discriminator_forward.8} parent=0 // loop_body
    %s15 = ssub.s32 %s10, 1
    %s16 = ssub.s32 %s10, 2
    %s17 = sadd.s32 %s10, 1
    %s18 = ssub.s32 %s10, %s17
    %p19 = scmp.eq.s32.totalorder %s18, 0
    %s21 = sadd.s32 %s20, 1
    %s22 = scalar_select %p19, %s20, %s21
    %p25 = pneg %p19
    %p26 = scmp.eq.s32.totalorder %s10, 1
    %p27 = por %p25, %p26
    %p28 = scmp.ne.s32.totalorder %s20, %s23
    %p29 = scmp.eq.s32.totalorder %s10, 0
    %p30 = por %p28, %p29
    %p31 = scmp.ne.s32.totalorder %s20, %s23
    %p32 = scmp.eq.s32.totalorder %s15, 1
    %p33 = por %p31, %p32
    %p34 = scmp.ne.s32.totalorder %s23, %s24
    %p35 = scmp.eq.s32.totalorder %s15, 0
    %p36 = por %p34, %p35
    %p37 = scmp.ne.s32.totalorder %s23, %s24
    %p38 = scmp.eq.s32.totalorder %s16, 1
    %p39 = por %p37, %p38
    %p41 = scmp.ne.s32.totalorder %s24, %s40
    %p42 = scmp.eq.s32.totalorder %s16, 0
    %p43 = por %p41, %p42
    %s45 = sadd.s32 %s44, 1
    %p48 = scmp.eq.s32.totalorder %s10, 1
    %p49 = scmp.ne.s32.totalorder %s44, %s46
    %p50 = scmp.eq.s32.totalorder %s10, 0
    %p51 = por %p49, %p50
    %p52 = scmp.ne.s32.totalorder %s44, %s46
    %p53 = scmp.eq.s32.totalorder %s15, 1
    %p54 = por %p52, %p53
    %p55 = scmp.ne.s32.totalorder %s46, %s47
    %p56 = scmp.eq.s32.totalorder %s15, 0
    %p57 = por %p55, %p56
    %p58 = scmp.ne.s32.totalorder %s46, %s47
    %p59 = scmp.eq.s32.totalorder %s16, 1
    %p60 = por %p58, %p59
    %p62 = scmp.ne.s32.totalorder %s47, %s61
    %p63 = scmp.eq.s32.totalorder %s16, 0
    %p64 = por %p62, %p63
    %s66 = sadd.s32 %s65, 1
    %p69 = scmp.eq.s32.totalorder %s10, 1
    %p70 = scmp.ne.s32.totalorder %s65, %s67
    %p71 = scmp.eq.s32.totalorder %s10, 0
    %p72 = por %p70, %p71
    %p73 = scmp.ne.s32.totalorder %s65, %s67
    %p74 = scmp.eq.s32.totalorder %s15, 1
    %p75 = por %p73, %p74
    %p76 = scmp.ne.s32.totalorder %s67, %s68
    %p77 = scmp.eq.s32.totalorder %s15, 0
    %p78 = por %p76, %p77
    %p79 = scmp.ne.s32.totalorder %s67, %s68
    %p80 = scmp.eq.s32.totalorder %s16, 1
    %p81 = por %p79, %p80
    %p83 = scmp.ne.s32.totalorder %s68, %s82
    %p84 = scmp.eq.s32.totalorder %s16, 0
    %p85 = por %p83, %p84
    %s87 = sadd.s32 %s86, 1
    %p90 = scmp.eq.s32.totalorder %s10, 1
    %p91 = scmp.ne.s32.totalorder %s86, %s88
    %p92 = scmp.eq.s32.totalorder %s10, 0
    %p93 = por %p91, %p92
    %p94 = scmp.ne.s32.totalorder %s86, %s88
    %p95 = scmp.eq.s32.totalorder %s15, 1
    %p96 = por %p94, %p95
    %p97 = scmp.ne.s32.totalorder %s88, %s89
    %p98 = scmp.eq.s32.totalorder %s15, 0
    %p99 = por %p97, %p98
    %p100 = scmp.ne.s32.totalorder %s88, %s89
    %p101 = scmp.eq.s32.totalorder %s16, 1
    %p102 = por %p100, %p101
    %p104 = scmp.ne.s32.totalorder %s89, %s103
    %p105 = scmp.eq.s32.totalorder %s16, 0
    %p106 = por %p104, %p105
    %s107 = ssub.s32 %s10, %s17
    %p108 = scmp.eq.s32.totalorder %s107, 0
    %s110 = sadd.s32 %s109, 1
    %s111 = scalar_select %p108, %s109, %s110
    %p114 = pneg %p108
    %p115 = scmp.eq.s32.totalorder %s10, 1
    %p116 = por %p114, %p115
    %p117 = scmp.ne.s32.totalorder %s109, %s112
    %p118 = scmp.eq.s32.totalorder %s10, 0
    %p119 = por %p117, %p118
    %p120 = scmp.ne.s32.totalorder %s109, %s112
    %p121 = scmp.eq.s32.totalorder %s15, 1
    %p122 = por %p120, %p121
    %p123 = scmp.ne.s32.totalorder %s112, %s113
    %p124 = scmp.eq.s32.totalorder %s15, 0
    %p125 = por %p123, %p124
    %p126 = scmp.ne.s32.totalorder %s112, %s113
    %p127 = scmp.eq.s32.totalorder %s16, 1
    %p128 = por %p126, %p127
    %p130 = scmp.ne.s32.totalorder %s113, %s129
    %p131 = scmp.eq.s32.totalorder %s16, 0
    %p132 = por %p130, %p131
    %p133 = scmp.le.s32.totalorder 1, %s10
    %p134 = scmp.lt.s32.totalorder %s10, 3
    %p135 = pnand %p133, %p134
    %p136 = pneg %p135
    // Predicated region
    $region9: #{nlayer_discriminator_forward.8} parent=5 // pred_check
      _
    $region10: #{nlayer_discriminator_forward.8} parent=5 // pred_check_branch
      %138 = sbr.rel (%p135) target = $region12
    $region11: #{nlayer_discriminator_forward.8} parent=5 // pred_region
      %s139 = ssub.s32 %s10, 1
      // Predicated region
      $region13: #{nlayer_discriminator_forward.8} parent=11 // pred_check
        %p140 = pneg %p57
      $region14: #{nlayer_discriminator_forward.8} parent=11 // pred_check_branch
        %142 = sbr.rel (%p140) target = $region16
      $region15: #{nlayer_discriminator_forward.8} parent=11 // pred_region
        _
      $region16: #{nlayer_discriminator_forward.8} parent=11 // pred_fallthru
        _
      // Predicated region
      $region17: #{nlayer_discriminator_forward.8} parent=11 // pred_check
        %p143 = pneg %p78
      $region18: #{nlayer_discriminator_forward.8} parent=11 // pred_check_branch
        %145 = sbr.rel (%p143) target = $region20
      $region19: #{nlayer_discriminator_forward.8} parent=11 // pred_region
        _
      $region20: #{nlayer_discriminator_forward.8} parent=11 // pred_fallthru
        _
      // Predicated region
      $region21: #{nlayer_discriminator_forward.8} parent=11 // pred_check
        %p146 = pneg %p99
      $region22: #{nlayer_discriminator_forward.8} parent=11 // pred_check_branch
        %148 = sbr.rel (%p146) target = $region24
      $region23: #{nlayer_discriminator_forward.8} parent=11 // pred_region
        _
      $region24: #{nlayer_discriminator_forward.8} parent=11 // pred_fallthru
        _
    $region12: #{nlayer_discriminator_forward.8} parent=5 // pred_fallthru
      _
    %p149 = scmp.lt.s32.totalorder %s10, 2
    // Predicated region
    $region25: #{nlayer_discriminator_forward.8} parent=5 // pred_check
      %p150 = pneg %p149
    $region26: #{nlayer_discriminator_forward.8} parent=5 // pred_check_branch
      %152 = sbr.rel (%p150) target = $region28
    $region27: #{nlayer_discriminator_forward.8} parent=5 // pred_region
      // Predicated region
      $region29: #{nlayer_discriminator_forward.8} parent=27 // pred_check
        %p153 = pneg %p30
      $region30: #{nlayer_discriminator_forward.8} parent=27 // pred_check_branch
        %155 = sbr.rel (%p153) target = $region32
      $region31: #{nlayer_discriminator_forward.8} parent=27 // pred_region
        %p156 = scmp.lt.s32.totalorder %s10, 1
        %s157 = scalar_select %p156, %s10, 1
        %s158 = smul.addr %s157, 5
        %s159 = smul.addr %s158, 4
        %s160 = scalar_lea.vmem %s0, %s159
      $region32: #{nlayer_discriminator_forward.8} parent=27 // pred_fallthru
        _
    $region28: #{nlayer_discriminator_forward.8} parent=5 // pred_fallthru
      _
    %p161 = scmp.le.s32.totalorder 1, %s10
    %p162 = scmp.lt.s32.totalorder %s10, 3
    %p163 = pnand %p161, %p162
    %p164 = pneg %p163
    // Predicated region
    $region33: #{nlayer_discriminator_forward.8} parent=5 // pred_check
      _
    $region34: #{nlayer_discriminator_forward.8} parent=5 // pred_check_branch
      %166 = sbr.rel (%p163) target = $region36
    $region35: #{nlayer_discriminator_forward.8} parent=5 // pred_region
      %s167 = ssub.s32 %s10, 1
      %p168 = scmp.lt.s32.totalorder %s15, 1
      %s169 = scalar_select %p168, %s15, 1
      %s170 = smul.addr %s169, 5
      %s171 = smul.addr %s170, 4
      %s172 = scalar_lea.vmem %s0, %s171
      %p173 = pneg %p36
      %p174 = pneg %p33
      %p175 = pneg %p57
      %p176 = pneg %p54
      %p177 = pneg %p78
      %p178 = pneg %p75
      %p179 = pneg %p99
      %p180 = pneg %p96
      %p181 = pneg %p125
      %p182 = pneg %p122
      %p183 = scmp.lt.s32.totalorder %s15, 1
      %s184 = scalar_select %p183, %s15, 1
      %s185 = smul.addr %s184, 3
      %s186 = smul.addr %s185, 4
      %s187 = scalar_lea.vmem %s4, %s186
      %p188 = scmp.lt.s32.totalorder %s15, 1
      %s189 = scalar_select %p188, %s15, 1
      %s190 = smul.addr %s189, 5
      %s191 = smul.addr %s190, 4
      %s192 = scalar_lea.vmem %s0, %s191
      %p193 = scmp.lt.s32.totalorder %s15, 1
      %s194 = scalar_select %p193, %s15, 1
      %s195 = smul.addr %s194, 3
      %s196 = smul.addr %s195, 4
      %s197 = scalar_lea.vmem %s4, %s196
      %v199 = vld [vmem:[%s192] sm:$0xf]
      %v200 = vld [vmem:[%s192 + $0x4] sm:$0xf]
      %v201 = vld [vmem:[%s192 + $0x8] sm:$0x1]
      %v202 = vld [vmem:[%s1] sm:$0xf]
      %v203 = vld [vmem:[%s1 + $0x4] sm:$0xf]
      %v204 = vld [vmem:[%s1 + $0x8] sm:$0xf]
      %v205 = vld [vmem:[%s1 + $0xc] sm:$0xf]
      %v206 = vld [vmem:[%s192 + $0x8] sm:$0x3]
      %s207 = scalar_lea.vmem %s1, 16
      %v208 = vld [vmem:[%s207] sm:$0xf]
      %v209 = vld [vmem:[%s207 + $0x4] sm:$0xf]
      %v210 = vld [vmem:[%s207 + $0x8] sm:$0xf]
      %v211 = vld [vmem:[%s207 + $0xc] sm:$0xf]
      %v215 = vunpack.c.l.b16 %v199
      %v216 = vunpack.c.l.b16 %v200
      %v217 = vunpack.c.l.b16 %v206
      %v218 = vpack.c.b16 %v216, %v215
      %v219 = vpack.c.b16 %v217, %v217
      %vm220 = vsmask.f32 7424
      %v222 = vshrl.u32 %v218, 16
      %v224 = vshll.u32 %v218, 16
      %v226 = vrot.slane %v224, 1
      %v227 = vor.u32 %v222, %v226
      %v229 = vshll.u32 %v219, 16
      %v231 = vrot.slane %v229, 1
      %v232 = vsel %vm220, %v227, %v231
      %v233 = vshrl.u32 %v219, 16
      %v235 = vor.u32 %v233, %v231
      %v240 = vunpack.c.l.b16 %v208
      %v241 = vunpack.c.l.b16 %v209
      %v242 = vunpack.c.l.b16 %v210
      %v243 = vunpack.c.l.b16 %v211
      %v244 = vpack.c.b16 %v241, %v240
      %v245 = vpack.c.b16 %v243, %v242
      %vm248 = vcmask 261120
      %v250 = vsel %vm248, %v232, 0
      %v253 = vsel %vm248, %v235, 0
      %255 = vmatpush.bf16.msra.mxu0 0
      %256 = vmatpush.bf16.msra.mxu0 0
      %257 = vmatpush.bf16.msra.mxu0 0
      %258 = vmatpush.bf16.msra.mxu0 0
      %259 = vmatpush.bf16.msra.mxu0 0
      %260 = vmatpush.bf16.msra.mxu0 0
      %261 = vmatpush.bf16.msra.mxu0 %v245
      %262 = vmatpush.bf16.msra.mxu0 %v244
      %263 = vmatmul.bf16.gmra.mxu0 %v250
      %v264 = vpop.f32.mrf.mxu0
      %v265 = vadd.f32 0.0, %v264
      %v266 = vpop.f32.mrf.mxu0
      %v267 = vadd.f32 0.0, %v266
      %268 = vmatmul.bf16.gmra.mxu0 %v253
      %v269 = vpop.f32.mrf.mxu0
      %v270 = vadd.f32 0.0, %v269
      %v271 = vpop.f32.mrf.mxu0
      %272 = vdwg.mxu0
      %v274 = vunpack.c.l.b16 %v201
      %v275 = vpack.c.b16 %v274, %v274
      %v280 = vunpack.c.l.b16 %v202
      %v281 = vunpack.c.l.b16 %v203
      %v282 = vunpack.c.l.b16 %v204
      %v283 = vunpack.c.l.b16 %v205
      %v284 = vpack.c.b16 %v281, %v280
      %v285 = vpack.c.b16 %v283, %v282
      %v288 = vsel %vm248, %v218, 0
      %v291 = vsel %vm248, %v275, 0
      %293 = vmatpush.bf16.msra.mxu0 0
      %294 = vmatpush.bf16.msra.mxu0 0
      %295 = vmatpush.bf16.msra.mxu0 0
      %296 = vmatpush.bf16.msra.mxu0 0
      %297 = vmatpush.bf16.msra.mxu0 0
      %298 = vmatpush.bf16.msra.mxu0 0
      %299 = vmatpush.bf16.msra.mxu0 %v285
      %300 = vmatpush.bf16.msra.mxu0 %v284
      %301 = vmatmul.bf16.gmra.mxu0 %v288
      %v302 = vpop.f32.mrf.mxu0
      %v303 = vadd.f32 %v265, %v302
      %v304 = vpop.f32.mrf.mxu0
      %v305 = vadd.f32 %v267, %v304
      %306 = vmatmul.bf16.gmra.mxu0 %v291
      %v307 = vpop.f32.mrf.mxu0
      %v308 = vadd.f32 %v270, %v307
      %v309 = vpop.f32.mrf.mxu0
      %310 = vdwg.mxu0
      %v311 = vld [vmem:[%s192] sm:$0xe]
      %s312 = scalar_lea.vmem %s1, 32
      %v313 = vld [vmem:[%s312] sm:$0xf]
      %v314 = vld [vmem:[%s312 + $0x4] sm:$0xf]
      %v315 = vld [vmem:[%s312 + $0x8] sm:$0xf]
      %v316 = vld [vmem:[%s312 + $0xc] sm:$0xf]
      %v318 = vunpack.c.l.b16 %v311
      %v319 = vpack.c.b16 %v216, %v318
      %vm320 = vcmask 1046528
      %v321 = vrot.slane %v319, 1
      %v322 = vrot.slane %v219, 1
      %v323 = vsel %vm320, %v321, %v322
      %v328 = vunpack.c.l.b16 %v313
      %v329 = vunpack.c.l.b16 %v314
      %v330 = vunpack.c.l.b16 %v315
      %v331 = vunpack.c.l.b16 %v316
      %v332 = vpack.c.b16 %v329, %v328
      %v333 = vpack.c.b16 %v331, %v330
      %v337 = vsel %vm248, %v323, 0
      %v340 = vsel %vm248, %v322, 0
      %342 = vmatpush.bf16.msra.mxu0 0
      %343 = vmatpush.bf16.msra.mxu0 0
      %344 = vmatpush.bf16.msra.mxu0 0
      %345 = vmatpush.bf16.msra.mxu0 0
      %346 = vmatpush.bf16.msra.mxu0 0
      %347 = vmatpush.bf16.msra.mxu0 0
      %348 = vmatpush.bf16.msra.mxu0 %v333
      %349 = vmatpush.bf16.msra.mxu0 %v332
      %350 = vmatmul.bf16.gmra.mxu0 %v337
      %v351 = vpop.f32.mrf.mxu0
      %v352 = vadd.f32 0.0, %v351
      %v353 = vpop.f32.mrf.mxu0
      %v354 = vadd.f32 0.0, %v353
      %355 = vmatmul.bf16.gmra.mxu0 %v340
      %v356 = vpop.f32.mrf.mxu0
      %v357 = vadd.f32 0.0, %v356
      %v358 = vpop.f32.mrf.mxu0
      %359 = vdwg.mxu0
      %v360 = vadd.f32 %v303, %v352
      %v361 = vadd.f32 %v305, %v354
      %v362 = vadd.f32 %v308, %v357
      %v363 = vld [vmem:[%s192 + $0x8] sm:$0x7]
      %s364 = scalar_lea.vmem %s1, 48
      %v365 = vld [vmem:[%s364] sm:$0xf]
      %v366 = vld [vmem:[%s364 + $0x4] sm:$0xf]
      %v367 = vld [vmem:[%s364 + $0x8] sm:$0xf]
      %v368 = vld [vmem:[%s364 + $0xc] sm:$0xf]
      %v370 = vunpack.c.l.b16 %v363
      %v371 = vpack.c.b16 %v370, %v370
      %vm372 = vsmask.f32 6400
      %v374 = vshrl.u32 %v319, 16
      %v376 = vrot.slane %v374, 1
      %v377 = vshll.u32 %v319, 16
      %v379 = vrot.slane %v377, 2
      %v380 = vor.u32 %v376, %v379
      %v382 = vshrl.u32 %v371, 16
      %v384 = vrot.slane %v382, 1
      %v385 = vshll.u32 %v371, 16
      %v387 = vrot.slane %v385, 2
      %v388 = vor.u32 %v384, %v387
      %v389 = vsel %vm372, %v380, %v388
      %v394 = vunpack.c.l.b16 %v365
      %v395 = vunpack.c.l.b16 %v366
      %v396 = vunpack.c.l.b16 %v367
      %v397 = vunpack.c.l.b16 %v368
      %v398 = vpack.c.b16 %v395, %v394
      %v399 = vpack.c.b16 %v397, %v396
      %v403 = vsel %vm248, %v389, 0
      %v406 = vsel %vm248, %v388, 0
      %408 = vmatpush.bf16.msra.mxu0 0
      %409 = vmatpush.bf16.msra.mxu0 0
      %410 = vmatpush.bf16.msra.mxu0 0
      %411 = vmatpush.bf16.msra.mxu0 0
      %412 = vmatpush.bf16.msra.mxu0 0
      %413 = vmatpush.bf16.msra.mxu0 0
      %414 = vmatpush.bf16.msra.mxu0 %v399
      %415 = vmatpush.bf16.msra.mxu0 %v398
      %416 = vmatmul.bf16.gmra.mxu0 %v403
      %v417 = vpop.f32.mrf.mxu0
      %v418 = vadd.f32 0.0, %v417
      %v419 = vpop.f32.mrf.mxu0
      %v420 = vadd.f32 0.0, %v419
      %421 = vmatmul.bf16.gmra.mxu0 %v406
      %v422 = vpop.f32.mrf.mxu0
      %v423 = vadd.f32 0.0, %v422
      %v424 = vpop.f32.mrf.mxu0
      %425 = vdwg.mxu0
      %v426 = vadd.f32 %v360, %v418
      %v427 = vadd.f32 %v361, %v420
      %v428 = vadd.f32 %v362, %v423
      %v429 = vld [vmem:[%s192] sm:$0x8]
      %v430 = vld [vmem:[%s192 + $0x8] sm:$0xf]
      %s431 = scalar_lea.vmem %s1, 64
      %v432 = vld [vmem:[%s431] sm:$0xf]
      %v433 = vld [vmem:[%s431 + $0x4] sm:$0xf]
      %v434 = vld [vmem:[%s431 + $0x8] sm:$0xf]
      %v435 = vld [vmem:[%s431 + $0xc] sm:$0xf]
      %v438 = vunpack.c.l.b16 %v429
      %v439 = vunpack.c.l.b16 %v430
      %v440 = vpack.c.b16 %v216, %v438
      %v441 = vpack.c.b16 %v439, %v439
      %vm442 = vcmask 1044480
      %v443 = vrot.slane %v440, 3
      %v444 = vrot.slane %v441, 3
      %v445 = vsel %vm442, %v443, %v444
      %v450 = vunpack.c.l.b16 %v432
      %v451 = vunpack.c.l.b16 %v433
      %v452 = vunpack.c.l.b16 %v434
      %v453 = vunpack.c.l.b16 %v435
      %v454 = vpack.c.b16 %v451, %v450
      %v455 = vpack.c.b16 %v453, %v452
      %v459 = vsel %vm248, %v445, 0
      %v462 = vsel %vm248, %v444, 0
      %464 = vmatpush.bf16.msra.mxu0 0
      %465 = vmatpush.bf16.msra.mxu0 0
      %466 = vmatpush.bf16.msra.mxu0 0
      %467 = vmatpush.bf16.msra.mxu0 0
      %468 = vmatpush.bf16.msra.mxu0 0
      %469 = vmatpush.bf16.msra.mxu0 0
      %470 = vmatpush.bf16.msra.mxu0 %v455
      %471 = vmatpush.bf16.msra.mxu0 %v454
      %472 = vmatmul.bf16.gmra.mxu0 %v459
      %v473 = vpop.f32.mrf.mxu0
      %v474 = vadd.f32 0.0, %v473
      %v475 = vpop.f32.mrf.mxu0
      %v476 = vadd.f32 0.0, %v475
      %477 = vmatmul.bf16.gmra.mxu0 %v462
      %v478 = vpop.f32.mrf.mxu0
      %v479 = vadd.f32 0.0, %v478
      %v480 = vpop.f32.mrf.mxu0
      %481 = vdwg.mxu0
      %v482 = vadd.f32 %v426, %v474
      %v483 = vadd.f32 %v427, %v476
      %v484 = vadd.f32 %v428, %v479
      %v485 = vld [vmem:[%s192] sm:$0x8]
      %v486 = vld [vmem:[%s192 + $0x4] sm:$0xf]
      %v487 = vld [vmem:[%s192 + $0x8] sm:$0xf]
      %v488 = vld [vmem:[%s192 + $0xc] sm:$0x1]
      %s489 = scalar_lea.vmem %s1, 80
      %v490 = vld [vmem:[%s489] sm:$0xf]
      %v491 = vld [vmem:[%s489 + $0x4] sm:$0xf]
      %v492 = vld [vmem:[%s489 + $0x8] sm:$0xf]
      %v493 = vld [vmem:[%s489 + $0xc] sm:$0xf]
      %v498 = vunpack.c.l.b16 %v485
      %v499 = vunpack.c.l.b16 %v486
      %v500 = vunpack.c.l.b16 %v487
      %v501 = vunpack.c.l.b16 %v488
      %v502 = vpack.c.b16 %v499, %v498
      %v503 = vpack.c.b16 %v501, %v500
      %vm504 = vsmask.f32 4352
      %v506 = vshrl.u32 %v502, 16
      %v508 = vrot.slane %v506, 3
      %v509 = vshll.u32 %v502, 16
      %v511 = vrot.slane %v509, 4
      %v512 = vor.u32 %v508, %v511
      %v514 = vshrl.u32 %v503, 16
      %v516 = vrot.slane %v514, 3
      %v517 = vshll.u32 %v503, 16
      %v519 = vrot.slane %v517, 4
      %v520 = vor.u32 %v516, %v519
      %v521 = vsel %vm504, %v512, %v520
      %v526 = vunpack.c.l.b16 %v490
      %v527 = vunpack.c.l.b16 %v491
      %v528 = vunpack.c.l.b16 %v492
      %v529 = vunpack.c.l.b16 %v493
      %v530 = vpack.c.b16 %v527, %v526
      %v531 = vpack.c.b16 %v529, %v528
      %v535 = vsel %vm248, %v521, 0
      %v538 = vsel %vm248, %v520, 0
      %540 = vmatpush.bf16.msra.mxu0 0
      %541 = vmatpush.bf16.msra.mxu0 0
      %542 = vmatpush.bf16.msra.mxu0 0
      %543 = vmatpush.bf16.msra.mxu0 0
      %544 = vmatpush.bf16.msra.mxu0 0
      %545 = vmatpush.bf16.msra.mxu0 0
      %546 = vmatpush.bf16.msra.mxu0 %v531
      %547 = vmatpush.bf16.msra.mxu0 %v530
      %548 = vmatmul.bf16.gmra.mxu0 %v535
      %v549 = vpop.f32.mrf.mxu0
      %v550 = vadd.f32 0.0, %v549
      %v551 = vpop.f32.mrf.mxu0
      %v552 = vadd.f32 0.0, %v551
      %553 = vmatmul.bf16.gmra.mxu0 %v538
      %v554 = vpop.f32.mrf.mxu0
      %v555 = vadd.f32 0.0, %v554
      %v556 = vpop.f32.mrf.mxu0
      %557 = vdwg.mxu0
      %v558 = vadd.f32 %v482, %v550
      %v559 = vadd.f32 %v483, %v552
      %v560 = vadd.f32 %v484, %v555
      %s561 = scalar_lea.vmem %s1, 96
      %v562 = vld [vmem:[%s561] sm:$0xf]
      %v563 = vld [vmem:[%s561 + $0x4] sm:$0xf]
      %v564 = vld [vmem:[%s561 + $0x8] sm:$0xf]
      %v565 = vld [vmem:[%s561 + $0xc] sm:$0xf]
      %v566 = vpack.c.b16 %v500, %v499
      %v567 = vpack.c.b16 %v501, %v501
      %v572 = vunpack.c.l.b16 %v562
      %v573 = vunpack.c.l.b16 %v563
      %v574 = vunpack.c.l.b16 %v564
      %v575 = vunpack.c.l.b16 %v565
      %v576 = vpack.c.b16 %v573, %v572
      %v577 = vpack.c.b16 %v575, %v574
      %v581 = vsel %vm248, %v566, 0
      %v584 = vsel %vm248, %v567, 0
      %586 = vmatpush.bf16.msra.mxu0 0
      %587 = vmatpush.bf16.msra.mxu0 0
      %588 = vmatpush.bf16.msra.mxu0 0
      %589 = vmatpush.bf16.msra.mxu0 0
      %590 = vmatpush.bf16.msra.mxu0 0
      %591 = vmatpush.bf16.msra.mxu0 0
      %592 = vmatpush.bf16.msra.mxu0 %v577
      %593 = vmatpush.bf16.msra.mxu0 %v576
      %594 = vmatmul.bf16.gmra.mxu0 %v581
      %v595 = vpop.f32.mrf.mxu0
      %v596 = vadd.f32 0.0, %v595
      %v597 = vpop.f32.mrf.mxu0
      %v598 = vadd.f32 0.0, %v597
      %599 = vmatmul.bf16.gmra.mxu0 %v584
      %v600 = vpop.f32.mrf.mxu0
      %v601 = vadd.f32 0.0, %v600
      %v602 = vpop.f32.mrf.mxu0
      %603 = vdwg.mxu0
      %v604 = vadd.f32 %v558, %v596
      %v605 = vadd.f32 %v559, %v598
      %v606 = vadd.f32 %v560, %v601
      %v607 = vld [vmem:[%s192 + $0xc] sm:$0x3]
      %s608 = scalar_lea.vmem %s1, 112
      %v609 = vld [vmem:[%s608] sm:$0xf]
      %v610 = vld [vmem:[%s608 + $0x4] sm:$0xf]
      %v611 = vld [vmem:[%s608 + $0x8] sm:$0xf]
      %v612 = vld [vmem:[%s608 + $0xc] sm:$0xf]
      %v614 = vunpack.c.l.b16 %v607
      %v615 = vpack.c.b16 %v614, %v614
      %v616 = vshrl.u32 %v566, 16
      %v618 = vshll.u32 %v566, 16
      %v620 = vrot.slane %v618, 1
      %v621 = vor.u32 %v616, %v620
      %v623 = vshll.u32 %v615, 16
      %v625 = vrot.slane %v623, 1
      %v626 = vsel %vm220, %v621, %v625
      %v627 = vshrl.u32 %v615, 16
      %v629 = vor.u32 %v627, %v625
      %v634 = vunpack.c.l.b16 %v609
      %v635 = vunpack.c.l.b16 %v610
      %v636 = vunpack.c.l.b16 %v611
      %v637 = vunpack.c.l.b16 %v612
      %v638 = vpack.c.b16 %v635, %v634
      %v639 = vpack.c.b16 %v637, %v636
      %v643 = vsel %vm248, %v626, 0
      %v646 = vsel %vm248, %v629, 0
      %648 = vmatpush.bf16.msra.mxu0 0
      %649 = vmatpush.bf16.msra.mxu0 0
      %650 = vmatpush.bf16.msra.mxu0 0
      %651 = vmatpush.bf16.msra.mxu0 0
      %652 = vmatpush.bf16.msra.mxu0 0
      %653 = vmatpush.bf16.msra.mxu0 0
      %654 = vmatpush.bf16.msra.mxu0 %v639
      %655 = vmatpush.bf16.msra.mxu0 %v638
      %656 = vmatmul.bf16.gmra.mxu0 %v643
      %v657 = vpop.f32.mrf.mxu0
      %v658 = vadd.f32 0.0, %v657
      %v659 = vpop.f32.mrf.mxu0
      %v660 = vadd.f32 0.0, %v659
      %661 = vmatmul.bf16.gmra.mxu0 %v646
      %v662 = vpop.f32.mrf.mxu0
      %v663 = vadd.f32 0.0, %v662
      %v664 = vpop.f32.mrf.mxu0
      %665 = vdwg.mxu0
      %v666 = vadd.f32 %v604, %v658
      %v667 = vadd.f32 %v605, %v660
      %v668 = vadd.f32 %v606, %v663
      %v669 = vld [vmem:[%s192 + $0x4] sm:$0xc]
      %v670 = vld [vmem:[%s192 + $0xc] sm:$0x7]
      %s671 = scalar_lea.vmem %s1, 128
      %v672 = vld [vmem:[%s671] sm:$0xf]
      %v673 = vld [vmem:[%s671 + $0x4] sm:$0xf]
      %v674 = vld [vmem:[%s671 + $0x8] sm:$0xf]
      %v675 = vld [vmem:[%s671 + $0xc] sm:$0xf]
      %v678 = vunpack.c.l.b16 %v669
      %v679 = vunpack.c.l.b16 %v670
      %v680 = vpack.c.b16 %v500, %v678
      %v681 = vpack.c.b16 %v679, %v679
      %vm682 = vcmask 1045504
      %v683 = vrot.slane %v680, 2
      %v684 = vrot.slane %v681, 2
      %v685 = vsel %vm682, %v683, %v684
      %v690 = vunpack.c.l.b16 %v672
      %v691 = vunpack.c.l.b16 %v673
      %v692 = vunpack.c.l.b16 %v674
      %v693 = vunpack.c.l.b16 %v675
      %v694 = vpack.c.b16 %v691, %v690
      %v695 = vpack.c.b16 %v693, %v692
      %v699 = vsel %vm248, %v685, 0
      %v702 = vsel %vm248, %v684, 0
      %704 = vmatpush.bf16.msra.mxu0 0
      %705 = vmatpush.bf16.msra.mxu0 0
      %706 = vmatpush.bf16.msra.mxu0 0
      %707 = vmatpush.bf16.msra.mxu0 0
      %708 = vmatpush.bf16.msra.mxu0 0
      %709 = vmatpush.bf16.msra.mxu0 0
      %710 = vmatpush.bf16.msra.mxu0 %v695
      %711 = vmatpush.bf16.msra.mxu0 %v694
      %712 = vmatmul.bf16.gmra.mxu0 %v699
      %v713 = vpop.f32.mrf.mxu0
      %v714 = vadd.f32 0.0, %v713
      %v715 = vpop.f32.mrf.mxu0
      %v716 = vadd.f32 0.0, %v715
      %717 = vmatmul.bf16.gmra.mxu0 %v702
      %v718 = vpop.f32.mrf.mxu0
      %v719 = vadd.f32 0.0, %v718
      %v720 = vpop.f32.mrf.mxu0
      %721 = vdwg.mxu0
      %v722 = vadd.f32 %v666, %v714
      %v723 = vadd.f32 %v667, %v716
      %v724 = vadd.f32 %v668, %v719
      %v725 = vld [vmem:[%s192 + $0xc] sm:$0xf]
      %s726 = scalar_lea.vmem %s1, 144
      %v727 = vld [vmem:[%s726] sm:$0xf]
      %v728 = vld [vmem:[%s726 + $0x4] sm:$0xf]
      %v729 = vld [vmem:[%s726 + $0x8] sm:$0xf]
      %v730 = vld [vmem:[%s726 + $0xc] sm:$0xf]
      %v732 = vunpack.c.l.b16 %v725
      %v733 = vpack.c.b16 %v732, %v732
      %vm734 = vsmask.f32 5376
      %v736 = vshrl.u32 %v680, 16
      %v738 = vrot.slane %v736, 2
      %v739 = vshll.u32 %v680, 16
      %v741 = vrot.slane %v739, 3
      %v742 = vor.u32 %v738, %v741
      %v744 = vshrl.u32 %v733, 16
      %v746 = vrot.slane %v744, 2
      %v747 = vshll.u32 %v733, 16
      %v749 = vrot.slane %v747, 3
      %v750 = vor.u32 %v746, %v749
      %v751 = vsel %vm734, %v742, %v750
      %v756 = vunpack.c.l.b16 %v727
      %v757 = vunpack.c.l.b16 %v728
      %v758 = vunpack.c.l.b16 %v729
      %v759 = vunpack.c.l.b16 %v730
      %v760 = vpack.c.b16 %v757, %v756
      %v761 = vpack.c.b16 %v759, %v758
      %v765 = vsel %vm248, %v751, 0
      %v768 = vsel %vm248, %v750, 0
      %770 = vmatpush.bf16.msra.mxu0 0
      %771 = vmatpush.bf16.msra.mxu0 0
      %772 = vmatpush.bf16.msra.mxu0 0
      %773 = vmatpush.bf16.msra.mxu0 0
      %774 = vmatpush.bf16.msra.mxu0 0
      %775 = vmatpush.bf16.msra.mxu0 0
      %776 = vmatpush.bf16.msra.mxu0 %v761
      %777 = vmatpush.bf16.msra.mxu0 %v760
      %778 = vmatmul.bf16.gmra.mxu0 %v765
      %v779 = vpop.f32.mrf.mxu0
      %v780 = vadd.f32 0.0, %v779
      %v781 = vpop.f32.mrf.mxu0
      %v782 = vadd.f32 0.0, %v781
      %783 = vmatmul.bf16.gmra.mxu0 %v768
      %v784 = vpop.f32.mrf.mxu0
      %v785 = vadd.f32 0.0, %v784
      %v786 = vpop.f32.mrf.mxu0
      %787 = vdwg.mxu0
      %v788 = vadd.f32 %v722, %v780
      %v789 = vadd.f32 %v723, %v782
      %v790 = vadd.f32 %v724, %v785
      %v791 = vld [vmem:[%s192 + $0x4] sm:$0x8]
      %s792 = scalar_lea.vmem %s1, 160
      %v793 = vld [vmem:[%s792] sm:$0xf]
      %v794 = vld [vmem:[%s792 + $0x4] sm:$0xf]
      %v795 = vld [vmem:[%s792 + $0x8] sm:$0xf]
      %v796 = vld [vmem:[%s792 + $0xc] sm:$0xf]
      %v798 = vunpack.c.l.b16 %v791
      %v799 = vpack.c.b16 %v500, %v798
      %v800 = vrot.slane %v799, 3
      %v801 = vrot.slane %v733, 3
      %v802 = vsel %vm442, %v800, %v801
      %v807 = vunpack.c.l.b16 %v793
      %v808 = vunpack.c.l.b16 %v794
      %v809 = vunpack.c.l.b16 %v795
      %v810 = vunpack.c.l.b16 %v796
      %v811 = vpack.c.b16 %v808, %v807
      %v812 = vpack.c.b16 %v810, %v809
      %v816 = vsel %vm248, %v802, 0
      %v819 = vsel %vm248, %v801, 0
      %821 = vmatpush.bf16.msra.mxu0 0
      %822 = vmatpush.bf16.msra.mxu0 0
      %823 = vmatpush.bf16.msra.mxu0 0
      %824 = vmatpush.bf16.msra.mxu0 0
      %825 = vmatpush.bf16.msra.mxu0 0
      %826 = vmatpush.bf16.msra.mxu0 0
      %827 = vmatpush.bf16.msra.mxu0 %v812
      %828 = vmatpush.bf16.msra.mxu0 %v811
      %829 = vmatmul.bf16.gmra.mxu0 %v816
      %v830 = vpop.f32.mrf.mxu0
      %v831 = vadd.f32 0.0, %v830
      %v832 = vpop.f32.mrf.mxu0
      %v833 = vadd.f32 0.0, %v832
      %834 = vmatmul.bf16.gmra.mxu0 %v819
      %v835 = vpop.f32.mrf.mxu0
      %v836 = vadd.f32 0.0, %v835
      %v837 = vpop.f32.mrf.mxu0
      %838 = vdwg.mxu0
      %v839 = vadd.f32 %v788, %v831
      %v840 = vadd.f32 %v789, %v833
      %v841 = vadd.f32 %v790, %v836
      %v842 = vld [vmem:[%s192 + $0x4] sm:$0x8]
      %v843 = vld [vmem:[%s192 + $0x8] sm:$0xf]
      %v844 = vld [vmem:[%s192 + $0xc] sm:$0xf]
      %v845 = vld [vmem:[%s192 + $0x10] sm:$0x1]
      %s846 = scalar_lea.vmem %s1, 176
      %v847 = vld [vmem:[%s846] sm:$0xf]
      %v848 = vld [vmem:[%s846 + $0x4] sm:$0xf]
      %v849 = vld [vmem:[%s846 + $0x8] sm:$0xf]
      %v850 = vld [vmem:[%s846 + $0xc] sm:$0xf]
      %v855 = vunpack.c.l.b16 %v842
      %v856 = vunpack.c.l.b16 %v843
      %v857 = vunpack.c.l.b16 %v844
      %v858 = vunpack.c.l.b16 %v845
      %v859 = vpack.c.b16 %v856, %v855
      %v860 = vpack.c.b16 %v858, %v857
      %v862 = vshrl.u32 %v859, 16
      %v864 = vrot.slane %v862, 3
      %v865 = vshll.u32 %v859, 16
      %v867 = vrot.slane %v865, 4
      %v868 = vor.u32 %v864, %v867
      %v870 = vshrl.u32 %v860, 16
      %v872 = vrot.slane %v870, 3
      %v873 = vshll.u32 %v860, 16
      %v875 = vrot.slane %v873, 4
      %v876 = vor.u32 %v872, %v875
      %v877 = vsel %vm504, %v868, %v876
      %v882 = vunpack.c.l.b16 %v847
      %v883 = vunpack.c.l.b16 %v848
      %v884 = vunpack.c.l.b16 %v849
      %v885 = vunpack.c.l.b16 %v850
      %v886 = vpack.c.b16 %v883, %v882
      %v887 = vpack.c.b16 %v885, %v884
      %v891 = vsel %vm248, %v877, 0
      %v894 = vsel %vm248, %v876, 0
      %896 = vmatpush.bf16.msra.mxu0 0
      %897 = vmatpush.bf16.msra.mxu0 0
      %898 = vmatpush.bf16.msra.mxu0 0
      %899 = vmatpush.bf16.msra.mxu0 0
      %900 = vmatpush.bf16.msra.mxu0 0
      %901 = vmatpush.bf16.msra.mxu0 0
      %902 = vmatpush.bf16.msra.mxu0 %v887
      %903 = vmatpush.bf16.msra.mxu0 %v886
      %904 = vmatmul.bf16.gmra.mxu0 %v891
      %v905 = vpop.f32.mrf.mxu0
      %v906 = vadd.f32 0.0, %v905
      %v907 = vpop.f32.mrf.mxu0
      %v908 = vadd.f32 0.0, %v907
      %909 = vmatmul.bf16.gmra.mxu0 %v894
      %v910 = vpop.f32.mrf.mxu0
      %v911 = vadd.f32 0.0, %v910
      %v912 = vpop.f32.mrf.mxu0
      %913 = vdwg.mxu0
      %v914 = vadd.f32 %v839, %v906
      %v915 = vadd.f32 %v840, %v908
      %v916 = vadd.f32 %v841, %v911
      %v917 = vld [vmem:[%s192 + $0x8] sm:$0xe]
      %v918 = vld [vmem:[%s192 + $0x10] sm:$0x3]
      %s919 = scalar_lea.vmem %s1, 192
      %v920 = vld [vmem:[%s919] sm:$0xf]
      %v921 = vld [vmem:[%s919 + $0x4] sm:$0xf]
      %v922 = vld [vmem:[%s919 + $0x8] sm:$0xf]
      %v923 = vld [vmem:[%s919 + $0xc] sm:$0xf]
      %v926 = vunpack.c.l.b16 %v917
      %v927 = vunpack.c.l.b16 %v918
      %v928 = vpack.c.b16 %v857, %v926
      %v929 = vpack.c.b16 %v927, %v927
      %v930 = vrot.slane %v928, 1
      %v931 = vrot.slane %v929, 1
      %v932 = vsel %vm320, %v930, %v931
      %v937 = vunpack.c.l.b16 %v920
      %v938 = vunpack.c.l.b16 %v921
      %v939 = vunpack.c.l.b16 %v922
      %v940 = vunpack.c.l.b16 %v923
      %v941 = vpack.c.b16 %v938, %v937
      %v942 = vpack.c.b16 %v940, %v939
      %v946 = vsel %vm248, %v932, 0
      %v949 = vsel %vm248, %v931, 0
      %951 = vmatpush.bf16.msra.mxu0 0
      %952 = vmatpush.bf16.msra.mxu0 0
      %953 = vmatpush.bf16.msra.mxu0 0
      %954 = vmatpush.bf16.msra.mxu0 0
      %955 = vmatpush.bf16.msra.mxu0 0
      %956 = vmatpush.bf16.msra.mxu0 0
      %957 = vmatpush.bf16.msra.mxu0 %v942
      %958 = vmatpush.bf16.msra.mxu0 %v941
      %959 = vmatmul.bf16.gmra.mxu0 %v946
      %v960 = vpop.f32.mrf.mxu0
      %v961 = vadd.f32 0.0, %v960
      %v962 = vpop.f32.mrf.mxu0
      %v963 = vadd.f32 0.0, %v962
      %964 = vmatmul.bf16.gmra.mxu0 %v949
      %v965 = vpop.f32.mrf.mxu0
      %v966 = vadd.f32 0.0, %v965
      %v967 = vpop.f32.mrf.mxu0
      %968 = vdwg.mxu0
      %v969 = vadd.f32 %v914, %v961
      %v970 = vadd.f32 %v915, %v963
      %v971 = vadd.f32 %v916, %v966
      %v972 = vld [vmem:[%s192 + $0x10] sm:$0x7]
      %s973 = scalar_lea.vmem %s1, 208
      %v974 = vld [vmem:[%s973] sm:$0xf]
      %v975 = vld [vmem:[%s973 + $0x4] sm:$0xf]
      %v976 = vld [vmem:[%s973 + $0x8] sm:$0xf]
      %v977 = vld [vmem:[%s973 + $0xc] sm:$0xf]
      %v979 = vunpack.c.l.b16 %v972
      %v980 = vpack.c.b16 %v979, %v979
      %v982 = vshrl.u32 %v928, 16
      %v984 = vrot.slane %v982, 1
      %v985 = vshll.u32 %v928, 16
      %v987 = vrot.slane %v985, 2
      %v988 = vor.u32 %v984, %v987
      %v990 = vshrl.u32 %v980, 16
      %v992 = vrot.slane %v990, 1
      %v993 = vshll.u32 %v980, 16
      %v995 = vrot.slane %v993, 2
      %v996 = vor.u32 %v992, %v995
      %v997 = vsel %vm372, %v988, %v996
      %v1002 = vunpack.c.l.b16 %v974
      %v1003 = vunpack.c.l.b16 %v975
      %v1004 = vunpack.c.l.b16 %v976
      %v1005 = vunpack.c.l.b16 %v977
      %v1006 = vpack.c.b16 %v1003, %v1002
      %v1007 = vpack.c.b16 %v1005, %v1004
      %v1011 = vsel %vm248, %v997, 0
      %v1014 = vsel %vm248, %v996, 0
      %1016 = vmatpush.bf16.msra.mxu0 0
      %1017 = vmatpush.bf16.msra.mxu0 0
      %1018 = vmatpush.bf16.msra.mxu0 0
      %1019 = vmatpush.bf16.msra.mxu0 0
      %1020 = vmatpush.bf16.msra.mxu0 0
      %1021 = vmatpush.bf16.msra.mxu0 0
      %1022 = vmatpush.bf16.msra.mxu0 %v1007
      %1023 = vmatpush.bf16.msra.mxu0 %v1006
      %1024 = vmatmul.bf16.gmra.mxu0 %v1011
      %v1025 = vpop.f32.mrf.mxu0
      %v1026 = vadd.f32 0.0, %v1025
      %v1027 = vpop.f32.mrf.mxu0
      %v1028 = vadd.f32 0.0, %v1027
      %1029 = vmatmul.bf16.gmra.mxu0 %v1014
      %v1030 = vpop.f32.mrf.mxu0
      %v1031 = vadd.f32 0.0, %v1030
      %v1032 = vpop.f32.mrf.mxu0
      %1033 = vdwg.mxu0
      %v1034 = vadd.f32 %v969, %v1026
      %v1035 = vadd.f32 %v970, %v1028
      %v1036 = vadd.f32 %v971, %v1031
      %v1037 = vld [vmem:[%s192 + $0x8] sm:$0xc]
      %s1038 = scalar_lea.vmem %s1, 224
      %v1039 = vld [vmem:[%s1038] sm:$0xf]
      %v1040 = vld [vmem:[%s1038 + $0x4] sm:$0xf]
      %v1041 = vld [vmem:[%s1038 + $0x8] sm:$0xf]
      %v1042 = vld [vmem:[%s1038 + $0xc] sm:$0xf]
      %v1044 = vunpack.c.l.b16 %v1037
      %v1045 = vpack.c.b16 %v857, %v1044
      %v1046 = vrot.slane %v1045, 2
      %v1047 = vrot.slane %v980, 2
      %v1048 = vsel %vm682, %v1046, %v1047
      %v1053 = vunpack.c.l.b16 %v1039
      %v1054 = vunpack.c.l.b16 %v1040
      %v1055 = vunpack.c.l.b16 %v1041
      %v1056 = vunpack.c.l.b16 %v1042
      %v1057 = vpack.c.b16 %v1054, %v1053
      %v1058 = vpack.c.b16 %v1056, %v1055
      %v1062 = vsel %vm248, %v1048, 0
      %v1065 = vsel %vm248, %v1047, 0
      %1067 = vmatpush.bf16.msra.mxu0 0
      %1068 = vmatpush.bf16.msra.mxu0 0
      %1069 = vmatpush.bf16.msra.mxu0 0
      %1070 = vmatpush.bf16.msra.mxu0 0
      %1071 = vmatpush.bf16.msra.mxu0 0
      %1072 = vmatpush.bf16.msra.mxu0 0
      %1073 = vmatpush.bf16.msra.mxu0 %v1058
      %1074 = vmatpush.bf16.msra.mxu0 %v1057
      %1075 = vmatmul.bf16.gmra.mxu0 %v1062
      %v1076 = vpop.f32.mrf.mxu0
      %v1077 = vadd.f32 0.0, %v1076
      %v1078 = vpop.f32.mrf.mxu0
      %v1079 = vadd.f32 0.0, %v1078
      %1080 = vmatmul.bf16.gmra.mxu0 %v1065
      %v1081 = vpop.f32.mrf.mxu0
      %v1082 = vadd.f32 0.0, %v1081
      %v1083 = vpop.f32.mrf.mxu0
      %1084 = vdwg.mxu0
      %v1085 = vadd.f32 %v1034, %v1077
      %v1086 = vadd.f32 %v1035, %v1079
      %v1087 = vadd.f32 %v1036, %v1082
      %v1088 = vld [vmem:[%s192 + $0x10] sm:$0xf]
      %s1089 = scalar_lea.vmem %s1, 240
      %v1090 = vld [vmem:[%s1089] sm:$0xf]
      %v1091 = vld [vmem:[%s1089 + $0x4] sm:$0xf]
      %v1092 = vld [vmem:[%s1089 + $0x8] sm:$0xf]
      %v1093 = vld [vmem:[%s1089 + $0xc] sm:$0xf]
      %v1095 = vunpack.c.l.b16 %v1088
      %v1096 = vpack.c.b16 %v1095, %v1095
      %v1098 = vshrl.u32 %v1045, 16
      %v1100 = vrot.slane %v1098, 2
      %v1101 = vshll.u32 %v1045, 16
      %v1103 = vrot.slane %v1101, 3
      %v1104 = vor.u32 %v1100, %v1103
      %v1106 = vshrl.u32 %v1096, 16
      %v1108 = vrot.slane %v1106, 2
      %v1109 = vshll.u32 %v1096, 16
      %v1111 = vrot.slane %v1109, 3
      %v1112 = vor.u32 %v1108, %v1111
      %v1113 = vsel %vm734, %v1104, %v1112
      %v1118 = vunpack.c.l.b16 %v1090
      %v1119 = vunpack.c.l.b16 %v1091
      %v1120 = vunpack.c.l.b16 %v1092
      %v1121 = vunpack.c.l.b16 %v1093
      %v1122 = vpack.c.b16 %v1119, %v1118
      %v1123 = vpack.c.b16 %v1121, %v1120
      %v1127 = vsel %vm248, %v1113, 0
      %v1130 = vsel %vm248, %v1112, 0
      %1132 = vmatpush.bf16.msra.mxu0 0
      %1133 = vmatpush.bf16.msra.mxu0 0
      %1134 = vmatpush.bf16.msra.mxu0 0
      %1135 = vmatpush.bf16.msra.mxu0 0
      %1136 = vmatpush.bf16.msra.mxu0 0
      %1137 = vmatpush.bf16.msra.mxu0 0
      %1138 = vmatpush.bf16.msra.mxu0 %v1123
      %1139 = vmatpush.bf16.msra.mxu0 %v1122
      %1140 = vmatmul.bf16.gmra.mxu0 %v1127
      %v1141 = vpop.f32.mrf.mxu0
      %v1142 = vadd.f32 0.0, %v1141
      %v1143 = vpop.f32.mrf.mxu0
      %v1144 = vadd.f32 0.0, %v1143
      %1145 = vmatmul.bf16.gmra.mxu0 %v1130
      %v1146 = vpop.f32.mrf.mxu0
      %v1147 = vadd.f32 0.0, %v1146
      %v1148 = vpop.f32.mrf.mxu0
      %1149 = vdwg.mxu0
      %v1150 = vadd.f32 %v1085, %v1142
      %v1151 = vadd.f32 %v1086, %v1144
      %v1152 = vadd.f32 %v1087, %v1147
      %v1153 = vld [vmem:[%s2] sm:$0x1]
      %v1155 = vperm.slane %v1153, 0
      %v1157 = vmul.f32 %v1150, %v1155
      %v1158 = vmul.f32 %v1151, %v1155
      %v1159 = vmul.f32 %v1152, %v1155
      %v1160 = vld [vmem:[%s3] sm:$0x1]
      %v1162 = vperm.slane %v1160, 0
      %v1164 = vadd.f32 %v1157, %v1162
      %v1165 = vadd.f32 %v1158, %v1162
      %v1166 = vadd.f32 %v1159, %v1162
      %vm1167 = vcmp.ge.f32.partialorder %v1164, 0.0
      %vm1168 = vcmp.ge.f32.partialorder %v1165, 0.0
      %vm1169 = vcmp.ge.f32.partialorder %v1166, 0.0
      %v1170 = vmul.f32 %v1164, 0.2
      %v1171 = vmul.f32 %v1165, 0.2
      %v1172 = vmul.f32 %v1166, 0.2
      %v1173 = vsel %vm1167, %v1164, %v1170
      %v1174 = vsel %vm1168, %v1165, %v1171
      %v1175 = vsel %vm1169, %v1166, %v1172
      %v1176 = vpack.c.bf16 %v1173, %v1173
      %v1177 = vpack.c.bf16 %v1174, %v1174
      %v1178 = vpack.c.bf16 %v1175, %v1175
      %vm1179 = vcmask 519168
      %1180 = vst.msk [vmem:[%s197] sm:$0xf] %vm1179, %v1176
      %1181 = vst.msk [vmem:[%s197 + $0x4] sm:$0xf] %vm1179, %v1177
      %vm1182 = vcmask 516096
      %1183 = vst.msk [vmem:[%s197 + $0x8] sm:$0x1] %vm1182, %v1178
      %p1184 = scmp.lt.s32.totalorder %s15, 1
      %s1185 = scalar_select %p1184, %s15, 1
      %s1186 = smul.addr %s1185, 3
      %s1187 = smul.addr %s1186, 4
      %s1188 = scalar_lea.vmem %s4, %s1187
      // Predicated region
      $region37: #{nlayer_discriminator_forward.8} parent=35 // pred_check
        %p1189 = pneg %p122
      $region38: #{nlayer_discriminator_forward.8} parent=35 // pred_check_branch
        %1191 = sbr.rel (%p1189) target = $region40
      $region39: #{nlayer_discriminator_forward.8} parent=35 // pred_region
        _
      $region40: #{nlayer_discriminator_forward.8} parent=35 // pred_fallthru
        _
    $region36: #{nlayer_discriminator_forward.8} parent=5 // pred_fallthru
      _
    %p1192 = scmp.le.s32.totalorder 2, %s10
    // Predicated region
    $region41: #{nlayer_discriminator_forward.8} parent=5 // pred_check
      %p1193 = pneg %p1192
    $region42: #{nlayer_discriminator_forward.8} parent=5 // pred_check_branch
      %1195 = sbr.rel (%p1193) target = $region44
    $region43: #{nlayer_discriminator_forward.8} parent=5 // pred_region
      %s1196 = ssub.s32 %s10, 2
      // Predicated region
      $region45: #{nlayer_discriminator_forward.8} parent=43 // pred_check
        %p1197 = pneg %p128
      $region46: #{nlayer_discriminator_forward.8} parent=43 // pred_check_branch
        %1199 = sbr.rel (%p1197) target = $region48
      $region47: #{nlayer_discriminator_forward.8} parent=43 // pred_region
        %p1200 = scmp.lt.s32.totalorder %s16, 1
        %s1201 = scalar_select %p1200, %s16, 1
        %s1202 = smul.addr %s1201, 3
        %s1203 = smul.addr %s1202, 4
        %s1204 = scalar_lea.vmem %s4, %s1203
      $region48: #{nlayer_discriminator_forward.8} parent=43 // pred_fallthru
        _
    $region44: #{nlayer_discriminator_forward.8} parent=5 // pred_fallthru
      _
  $region6: #{nlayer_discriminator_forward.8} parent=0 // loop_footer
    %s14 = sadd.s32 1, %s10
  $region7: #{nlayer_discriminator_forward.8} parent=0 // loop_footer_branch
    %9 = sbr.rel target = $region3
  $region8: #{nlayer_discriminator_forward.8} parent=0 // loop_exit
    _

// kernel: nlayer_discriminator_forward.9
$region0: #{nlayer_discriminator_forward.9}
  #allocation0 [shape = 'u32[]', space=smem, size = 0x4, offset = 0x4, fixed_abs, tag = 'smem constant byte address 0x4 - core index']
  #allocation1 [shape = 'u32[72,128]{1,0:T(1,128)}', space=vmem, size = 0x9000, scoped, tag = 'internal scratch']
  %s0 = inlined_call_operand.vmem [shape: bf16[2,28,64], index: 0, kind: input, shape index: {}]
  %s1 = inlined_call_operand.vmem [shape: bf16[16,64,128], index: 1, kind: input, shape index: {}]
  %s2 = inlined_call_operand.vmem [shape: f32[1,128], index: 2, kind: input, shape index: {}]
  %s3 = inlined_call_operand.vmem [shape: f32[1,128], index: 3, kind: input, shape index: {}]
  %s4 = inlined_call_operand.vmem [shape: f32[2,10,128], index: 4, kind: output, shape index: {}]
  %s5 = sld [smem:[#allocation0]]
  $region49: #{nlayer_discriminator_forward.9} parent=0
    _
  %s7 = ssub.s32 1, %s5
  %s8 = scalar_select 0, %s7, %s5
  loop: start=0, step=1, limit=4
  $region2: #{nlayer_discriminator_forward.9} parent=0 // loop_pre_header
    _
  $region3: #{nlayer_discriminator_forward.9} parent=0 // loop_header
    %s10 = sphi 0, %s14
    %p11 = scmp.ge.s32.totalorder %s10, 4
    %s20 = sphi 0, %s22
    %s23 = sphi 0, %s20
    %s24 = sphi 0, %s23
    %s40 = sphi 0, %s24
    %s44 = sphi 0, %s44
    %s46 = sphi 0, %s44
    %s47 = sphi 0, %s46
    %s61 = sphi 0, %s47
    %s65 = sphi 0, %s65
    %s67 = sphi 0, %s65
    %s68 = sphi 0, %s67
    %s82 = sphi 0, %s68
    %s86 = sphi 0, %s86
    %s88 = sphi 0, %s86
    %s89 = sphi 0, %s88
    %s103 = sphi 0, %s89
    %s109 = sphi 0, %s111
    %s112 = sphi 0, %s109
    %s113 = sphi 0, %s112
    %s129 = sphi 0, %s113
  $region4: #{nlayer_discriminator_forward.9} parent=0 // loop_header_branch
    %13 = sbr.rel (%p11) target = $region8
  $region5: #{nlayer_discriminator_forward.9} parent=0 // loop_body
    %s15 = ssub.s32 %s10, 1
    %s16 = ssub.s32 %s10, 2
    %s17 = sadd.s32 %s10, 1
    %s18 = ssub.s32 %s10, %s17
    %p19 = scmp.eq.s32.totalorder %s18, 0
    %s21 = sadd.s32 %s20, 1
    %s22 = scalar_select %p19, %s20, %s21
    %p25 = pneg %p19
    %p26 = scmp.eq.s32.totalorder %s10, 1
    %p27 = por %p25, %p26
    %p28 = scmp.ne.s32.totalorder %s20, %s23
    %p29 = scmp.eq.s32.totalorder %s10, 0
    %p30 = por %p28, %p29
    %p31 = scmp.ne.s32.totalorder %s20, %s23
    %p32 = scmp.eq.s32.totalorder %s15, 1
    %p33 = por %p31, %p32
    %p34 = scmp.ne.s32.totalorder %s23, %s24
    %p35 = scmp.eq.s32.totalorder %s15, 0
    %p36 = por %p34, %p35
    %p37 = scmp.ne.s32.totalorder %s23, %s24
    %p38 = scmp.eq.s32.totalorder %s16, 1
    %p39 = por %p37, %p38
    %p41 = scmp.ne.s32.totalorder %s24, %s40
    %p42 = scmp.eq.s32.totalorder %s16, 0
    %p43 = por %p41, %p42
    %s45 = sadd.s32 %s44, 1
    %p48 = scmp.eq.s32.totalorder %s10, 1
    %p49 = scmp.ne.s32.totalorder %s44, %s46
    %p50 = scmp.eq.s32.totalorder %s10, 0
    %p51 = por %p49, %p50
    %p52 = scmp.ne.s32.totalorder %s44, %s46
    %p53 = scmp.eq.s32.totalorder %s15, 1
    %p54 = por %p52, %p53
    %p55 = scmp.ne.s32.totalorder %s46, %s47
    %p56 = scmp.eq.s32.totalorder %s15, 0
    %p57 = por %p55, %p56
    %p58 = scmp.ne.s32.totalorder %s46, %s47
    %p59 = scmp.eq.s32.totalorder %s16, 1
    %p60 = por %p58, %p59
    %p62 = scmp.ne.s32.totalorder %s47, %s61
    %p63 = scmp.eq.s32.totalorder %s16, 0
    %p64 = por %p62, %p63
    %s66 = sadd.s32 %s65, 1
    %p69 = scmp.eq.s32.totalorder %s10, 1
    %p70 = scmp.ne.s32.totalorder %s65, %s67
    %p71 = scmp.eq.s32.totalorder %s10, 0
    %p72 = por %p70, %p71
    %p73 = scmp.ne.s32.totalorder %s65, %s67
    %p74 = scmp.eq.s32.totalorder %s15, 1
    %p75 = por %p73, %p74
    %p76 = scmp.ne.s32.totalorder %s67, %s68
    %p77 = scmp.eq.s32.totalorder %s15, 0
    %p78 = por %p76, %p77
    %p79 = scmp.ne.s32.totalorder %s67, %s68
    %p80 = scmp.eq.s32.totalorder %s16, 1
    %p81 = por %p79, %p80
    %p83 = scmp.ne.s32.totalorder %s68, %s82
    %p84 = scmp.eq.s32.totalorder %s16, 0
    %p85 = por %p83, %p84
    %s87 = sadd.s32 %s86, 1
    %p90 = scmp.eq.s32.totalorder %s10, 1
    %p91 = scmp.ne.s32.totalorder %s86, %s88
    %p92 = scmp.eq.s32.totalorder %s10, 0
    %p93 = por %p91, %p92
    %p94 = scmp.ne.s32.totalorder %s86, %s88
    %p95 = scmp.eq.s32.totalorder %s15, 1
    %p96 = por %p94, %p95
    %p97 = scmp.ne.s32.totalorder %s88, %s89
    %p98 = scmp.eq.s32.totalorder %s15, 0
    %p99 = por %p97, %p98
    %p100 = scmp.ne.s32.totalorder %s88, %s89
    %p101 = scmp.eq.s32.totalorder %s16, 1
    %p102 = por %p100, %p101
    %p104 = scmp.ne.s32.totalorder %s89, %s103
    %p105 = scmp.eq.s32.totalorder %s16, 0
    %p106 = por %p104, %p105
    %s107 = ssub.s32 %s10, %s17
    %p108 = scmp.eq.s32.totalorder %s107, 0
    %s110 = sadd.s32 %s109, 1
    %s111 = scalar_select %p108, %s109, %s110
    %p114 = pneg %p108
    %p115 = scmp.eq.s32.totalorder %s10, 1
    %p116 = por %p114, %p115
    %p117 = scmp.ne.s32.totalorder %s109, %s112
    %p118 = scmp.eq.s32.totalorder %s10, 0
    %p119 = por %p117, %p118
    %p120 = scmp.ne.s32.totalorder %s109, %s112
    %p121 = scmp.eq.s32.totalorder %s15, 1
    %p122 = por %p120, %p121
    %p123 = scmp.ne.s32.totalorder %s112, %s113
    %p124 = scmp.eq.s32.totalorder %s15, 0
    %p125 = por %p123, %p124
    %p126 = scmp.ne.s32.totalorder %s112, %s113
    %p127 = scmp.eq.s32.totalorder %s16, 1
    %p128 = por %p126, %p127
    %p130 = scmp.ne.s32.totalorder %s113, %s129
    %p131 = scmp.eq.s32.totalorder %s16, 0
    %p132 = por %p130, %p131
    %p133 = scmp.le.s32.totalorder 1, %s10
    %p134 = scmp.lt.s32.totalorder %s10, 3
    %p135 = pnand %p133, %p134
    %p136 = pneg %p135
    // Predicated region
    $region9: #{nlayer_discriminator_forward.9} parent=5 // pred_check
      _
    $region10: #{nlayer_discriminator_forward.9} parent=5 // pred_check_branch
      %138 = sbr.rel (%p135) target = $region12
    $region11: #{nlayer_discriminator_forward.9} parent=5 // pred_region
      %s139 = ssub.s32 %s10, 1
      // Predicated region
      $region13: #{nlayer_discriminator_forward.9} parent=11 // pred_check
        %p140 = pneg %p57
      $region14: #{nlayer_discriminator_forward.9} parent=11 // pred_check_branch
        %142 = sbr.rel (%p140) target = $region16
      $region15: #{nlayer_discriminator_forward.9} parent=11 // pred_region
        _
      $region16: #{nlayer_discriminator_forward.9} parent=11 // pred_fallthru
        _
      // Predicated region
      $region17: #{nlayer_discriminator_forward.9} parent=11 // pred_check
        %p143 = pneg %p78
      $region18: #{nlayer_discriminator_forward.9} parent=11 // pred_check_branch
        %145 = sbr.rel (%p143) target = $region20
      $region19: #{nlayer_discriminator_forward.9} parent=11 // pred_region
        _
      $region20: #{nlayer_discriminator_forward.9} parent=11 // pred_fallthru
        _
      // Predicated region
      $region21: #{nlayer_discriminator_forward.9} parent=11 // pred_check
        %p146 = pneg %p99
      $region22: #{nlayer_discriminator_forward.9} parent=11 // pred_check_branch
        %148 = sbr.rel (%p146) target = $region24
      $region23: #{nlayer_discriminator_forward.9} parent=11 // pred_region
        _
      $region24: #{nlayer_discriminator_forward.9} parent=11 // pred_fallthru
        _
    $region12: #{nlayer_discriminator_forward.9} parent=5 // pred_fallthru
      _
    %p149 = scmp.lt.s32.totalorder %s10, 2
    // Predicated region
    $region25: #{nlayer_discriminator_forward.9} parent=5 // pred_check
      %p150 = pneg %p149
    $region26: #{nlayer_discriminator_forward.9} parent=5 // pred_check_branch
      %152 = sbr.rel (%p150) target = $region28
    $region27: #{nlayer_discriminator_forward.9} parent=5 // pred_region
      // Predicated region
      $region29: #{nlayer_discriminator_forward.9} parent=27 // pred_check
        %p153 = pneg %p30
      $region30: #{nlayer_discriminator_forward.9} parent=27 // pred_check_branch
        %155 = sbr.rel (%p153) target = $region32
      $region31: #{nlayer_discriminator_forward.9} parent=27 // pred_region
        %p156 = scmp.lt.s32.totalorder %s10, 1
        %s157 = scalar_select %p156, %s10, 1
        %s158 = smul.addr %s157, 4
        %s159 = smul.addr %s158, 4
        %s160 = scalar_lea.vmem %s0, %s159
      $region32: #{nlayer_discriminator_forward.9} parent=27 // pred_fallthru
        _
    $region28: #{nlayer_discriminator_forward.9} parent=5 // pred_fallthru
      _
    %p161 = scmp.le.s32.totalorder 1, %s10
    %p162 = scmp.lt.s32.totalorder %s10, 3
    %p163 = pnand %p161, %p162
    %p164 = pneg %p163
    // Predicated region
    $region33: #{nlayer_discriminator_forward.9} parent=5 // pred_check
      _
    $region34: #{nlayer_discriminator_forward.9} parent=5 // pred_check_branch
      %166 = sbr.rel (%p163) target = $region36
    $region35: #{nlayer_discriminator_forward.9} parent=5 // pred_region
      %s167 = ssub.s32 %s10, 1
      %p168 = scmp.lt.s32.totalorder %s15, 1
      %s169 = scalar_select %p168, %s15, 1
      %s170 = smul.addr %s169, 4
      %s171 = smul.addr %s170, 4
      %s172 = scalar_lea.vmem %s0, %s171
      %p173 = pneg %p36
      %p174 = pneg %p33
      %p175 = pneg %p57
      %p176 = pneg %p54
      %p177 = pneg %p78
      %p178 = pneg %p75
      %p179 = pneg %p99
      %p180 = pneg %p96
      %p181 = pneg %p125
      %p182 = pneg %p122
      %p183 = scmp.lt.s32.totalorder %s15, 1
      %s184 = scalar_select %p183, %s15, 1
      %s185 = smul.addr %s184, 2
      %s186 = smul.addr %s185, 8
      %s187 = scalar_lea.vmem %s4, %s186
      %p188 = scmp.lt.s32.totalorder %s15, 1
      %s189 = scalar_select %p188, %s15, 1
      %s190 = smul.addr %s189, 4
      %s191 = smul.addr %s190, 4
      %s192 = scalar_lea.vmem %s0, %s191
      %p193 = scmp.lt.s32.totalorder %s15, 1
      %s194 = scalar_select %p193, %s15, 1
      %s195 = smul.addr %s194, 2
      %s196 = smul.addr %s195, 8
      %s197 = scalar_lea.vmem %s4, %s196
      %v199 = vld [vmem:[%s192] sm:$0xf]
      %v200 = vld [vmem:[%s192 + $0x4] sm:$0x1]
      %v201 = vld [vmem:[%s1] sm:$0xf]
      %v202 = vld [vmem:[%s1 + $0x4] sm:$0xf]
      %v203 = vld [vmem:[%s1 + $0x8] sm:$0xf]
      %v204 = vld [vmem:[%s1 + $0xc] sm:$0xf]
      %v205 = vld [vmem:[%s1 + $0x10] sm:$0xf]
      %v206 = vld [vmem:[%s1 + $0x14] sm:$0xf]
      %v207 = vld [vmem:[%s1 + $0x18] sm:$0xf]
      %v208 = vld [vmem:[%s1 + $0x1c] sm:$0xf]
      %v209 = vld [vmem:[%s192 + $0x4] sm:$0x3]
      %s210 = scalar_lea.vmem %s1, 32
      %v211 = vld [vmem:[%s210] sm:$0xf]
      %v212 = vld [vmem:[%s210 + $0x4] sm:$0xf]
      %v213 = vld [vmem:[%s210 + $0x8] sm:$0xf]
      %v214 = vld [vmem:[%s210 + $0xc] sm:$0xf]
      %v215 = vld [vmem:[%s210 + $0x10] sm:$0xf]
      %v216 = vld [vmem:[%s210 + $0x14] sm:$0xf]
      %v217 = vld [vmem:[%s210 + $0x18] sm:$0xf]
      %v218 = vld [vmem:[%s210 + $0x1c] sm:$0xf]
      %v221 = vunpack.c.l.b16 %v199
      %v222 = vunpack.c.l.b16 %v209
      %v223 = vpack.c.b16 %v222, %v221
      %v225 = vshrl.u32 %v223, 16
      %v227 = vshll.u32 %v223, 16
      %v229 = vrot.slane %v227, 1
      %v230 = vor.u32 %v225, %v229
      %v239 = vunpack.c.l.b16 %v211
      %v240 = vunpack.c.l.b16 %v212
      %v241 = vunpack.c.l.b16 %v213
      %v242 = vunpack.c.l.b16 %v214
      %v243 = vunpack.c.l.b16 %v215
      %v244 = vunpack.c.l.b16 %v216
      %v245 = vunpack.c.l.b16 %v217
      %v246 = vunpack.c.l.b16 %v218
      %v247 = vpack.c.b16 %v240, %v239
      %v248 = vpack.c.b16 %v242, %v241
      %v249 = vpack.c.b16 %v244, %v243
      %v250 = vpack.c.b16 %v246, %v245
      %vm255 = vcmask 523264
      %v257 = vsel %vm255, %v230, 0
      %259 = vmatpush.bf16.msra.mxu0 0
      %260 = vmatpush.bf16.msra.mxu0 0
      %261 = vmatpush.bf16.msra.mxu0 0
      %262 = vmatpush.bf16.msra.mxu0 0
      %263 = vmatpush.bf16.msra.mxu0 %v250
      %264 = vmatpush.bf16.msra.mxu0 %v249
      %265 = vmatpush.bf16.msra.mxu0 %v248
      %266 = vmatpush.bf16.msra.mxu0 %v247
      %267 = vmatmul.bf16.gmra.mxu0 %v257
      %v268 = vpop.f32.mrf.mxu0
      %v269 = vadd.f32 0.0, %v268
      %v270 = vpop.f32.mrf.mxu0
      %v271 = vadd.f32 0.0, %v270
      %272 = vdwg.mxu0
      %v274 = vunpack.c.l.b16 %v200
      %v275 = vpack.c.b16 %v274, %v221
      %v284 = vunpack.c.l.b16 %v201
      %v285 = vunpack.c.l.b16 %v202
      %v286 = vunpack.c.l.b16 %v203
      %v287 = vunpack.c.l.b16 %v204
      %v288 = vunpack.c.l.b16 %v205
      %v289 = vunpack.c.l.b16 %v206
      %v290 = vunpack.c.l.b16 %v207
      %v291 = vunpack.c.l.b16 %v208
      %v292 = vpack.c.b16 %v285, %v284
      %v293 = vpack.c.b16 %v287, %v286
      %v294 = vpack.c.b16 %v289, %v288
      %v295 = vpack.c.b16 %v291, %v290
      %v301 = vsel %vm255, %v275, 0
      %303 = vmatpush.bf16.msra.mxu0 0
      %304 = vmatpush.bf16.msra.mxu0 0
      %305 = vmatpush.bf16.msra.mxu0 0
      %306 = vmatpush.bf16.msra.mxu0 0
      %307 = vmatpush.bf16.msra.mxu0 %v295
      %308 = vmatpush.bf16.msra.mxu0 %v294
      %309 = vmatpush.bf16.msra.mxu0 %v293
      %310 = vmatpush.bf16.msra.mxu0 %v292
      %311 = vmatmul.bf16.gmra.mxu0 %v301
      %v312 = vpop.f32.mrf.mxu0
      %v313 = vadd.f32 %v269, %v312
      %v314 = vpop.f32.mrf.mxu0
      %v315 = vadd.f32 %v271, %v314
      %316 = vdwg.mxu0
      %v317 = vld [vmem:[%s192] sm:$0xe]
      %s318 = scalar_lea.vmem %s1, 64
      %v319 = vld [vmem:[%s318] sm:$0xf]
      %v320 = vld [vmem:[%s318 + $0x4] sm:$0xf]
      %v321 = vld [vmem:[%s318 + $0x8] sm:$0xf]
      %v322 = vld [vmem:[%s318 + $0xc] sm:$0xf]
      %v323 = vld [vmem:[%s318 + $0x10] sm:$0xf]
      %v324 = vld [vmem:[%s318 + $0x14] sm:$0xf]
      %v325 = vld [vmem:[%s318 + $0x18] sm:$0xf]
      %v326 = vld [vmem:[%s318 + $0x1c] sm:$0xf]
      %v328 = vunpack.c.l.b16 %v317
      %v329 = vpack.c.b16 %v222, %v328
      %v330 = vrot.slane %v329, 1
      %v339 = vunpack.c.l.b16 %v319
      %v340 = vunpack.c.l.b16 %v320
      %v341 = vunpack.c.l.b16 %v321
      %v342 = vunpack.c.l.b16 %v322
      %v343 = vunpack.c.l.b16 %v323
      %v344 = vunpack.c.l.b16 %v324
      %v345 = vunpack.c.l.b16 %v325
      %v346 = vunpack.c.l.b16 %v326
      %v347 = vpack.c.b16 %v340, %v339
      %v348 = vpack.c.b16 %v342, %v341
      %v349 = vpack.c.b16 %v344, %v343
      %v350 = vpack.c.b16 %v346, %v345
      %v356 = vsel %vm255, %v330, 0
      %358 = vmatpush.bf16.msra.mxu0 0
      %359 = vmatpush.bf16.msra.mxu0 0
      %360 = vmatpush.bf16.msra.mxu0 0
      %361 = vmatpush.bf16.msra.mxu0 0
      %362 = vmatpush.bf16.msra.mxu0 %v350
      %363 = vmatpush.bf16.msra.mxu0 %v349
      %364 = vmatpush.bf16.msra.mxu0 %v348
      %365 = vmatpush.bf16.msra.mxu0 %v347
      %366 = vmatmul.bf16.gmra.mxu0 %v356
      %v367 = vpop.f32.mrf.mxu0
      %v368 = vadd.f32 0.0, %v367
      %v369 = vpop.f32.mrf.mxu0
      %v370 = vadd.f32 0.0, %v369
      %371 = vdwg.mxu0
      %v372 = vadd.f32 %v313, %v368
      %v373 = vadd.f32 %v315, %v370
      %v374 = vld [vmem:[%s192 + $0x4] sm:$0x7]
      %s375 = scalar_lea.vmem %s1, 96
      %v376 = vld [vmem:[%s375] sm:$0xf]
      %v377 = vld [vmem:[%s375 + $0x4] sm:$0xf]
      %v378 = vld [vmem:[%s375 + $0x8] sm:$0xf]
      %v379 = vld [vmem:[%s375 + $0xc] sm:$0xf]
      %v380 = vld [vmem:[%s375 + $0x10] sm:$0xf]
      %v381 = vld [vmem:[%s375 + $0x14] sm:$0xf]
      %v382 = vld [vmem:[%s375 + $0x18] sm:$0xf]
      %v383 = vld [vmem:[%s375 + $0x1c] sm:$0xf]
      %v385 = vunpack.c.l.b16 %v374
      %v386 = vpack.c.b16 %v385, %v328
      %v388 = vshrl.u32 %v386, 16
      %v390 = vrot.slane %v388, 1
      %v391 = vshll.u32 %v386, 16
      %v393 = vrot.slane %v391, 2
      %v394 = vor.u32 %v390, %v393
      %v403 = vunpack.c.l.b16 %v376
      %v404 = vunpack.c.l.b16 %v377
      %v405 = vunpack.c.l.b16 %v378
      %v406 = vunpack.c.l.b16 %v379
      %v407 = vunpack.c.l.b16 %v380
      %v408 = vunpack.c.l.b16 %v381
      %v409 = vunpack.c.l.b16 %v382
      %v410 = vunpack.c.l.b16 %v383
      %v411 = vpack.c.b16 %v404, %v403
      %v412 = vpack.c.b16 %v406, %v405
      %v413 = vpack.c.b16 %v408, %v407
      %v414 = vpack.c.b16 %v410, %v409
      %v420 = vsel %vm255, %v394, 0
      %422 = vmatpush.bf16.msra.mxu0 0
      %423 = vmatpush.bf16.msra.mxu0 0
      %424 = vmatpush.bf16.msra.mxu0 0
      %425 = vmatpush.bf16.msra.mxu0 0
      %426 = vmatpush.bf16.msra.mxu0 %v414
      %427 = vmatpush.bf16.msra.mxu0 %v413
      %428 = vmatpush.bf16.msra.mxu0 %v412
      %429 = vmatpush.bf16.msra.mxu0 %v411
      %430 = vmatmul.bf16.gmra.mxu0 %v420
      %v431 = vpop.f32.mrf.mxu0
      %v432 = vadd.f32 0.0, %v431
      %v433 = vpop.f32.mrf.mxu0
      %v434 = vadd.f32 0.0, %v433
      %435 = vdwg.mxu0
      %v436 = vadd.f32 %v372, %v432
      %v437 = vadd.f32 %v373, %v434
      %v438 = vld [vmem:[%s192] sm:$0xc]
      %v439 = vld [vmem:[%s192 + $0x4] sm:$0xf]
      %s440 = scalar_lea.vmem %s1, 128
      %v441 = vld [vmem:[%s440] sm:$0xf]
      %v442 = vld [vmem:[%s440 + $0x4] sm:$0xf]
      %v443 = vld [vmem:[%s440 + $0x8] sm:$0xf]
      %v444 = vld [vmem:[%s440 + $0xc] sm:$0xf]
      %v445 = vld [vmem:[%s440 + $0x10] sm:$0xf]
      %v446 = vld [vmem:[%s440 + $0x14] sm:$0xf]
      %v447 = vld [vmem:[%s440 + $0x18] sm:$0xf]
      %v448 = vld [vmem:[%s440 + $0x1c] sm:$0xf]
      %v451 = vunpack.c.l.b16 %v438
      %v452 = vunpack.c.l.b16 %v439
      %v453 = vpack.c.b16 %v452, %v451
      %v455 = vshrl.u32 %v453, 16
      %v457 = vrot.slane %v455, 2
      %v458 = vshll.u32 %v453, 16
      %v460 = vrot.slane %v458, 3
      %v461 = vor.u32 %v457, %v460
      %v470 = vunpack.c.l.b16 %v441
      %v471 = vunpack.c.l.b16 %v442
      %v472 = vunpack.c.l.b16 %v443
      %v473 = vunpack.c.l.b16 %v444
      %v474 = vunpack.c.l.b16 %v445
      %v475 = vunpack.c.l.b16 %v446
      %v476 = vunpack.c.l.b16 %v447
      %v477 = vunpack.c.l.b16 %v448
      %v478 = vpack.c.b16 %v471, %v470
      %v479 = vpack.c.b16 %v473, %v472
      %v480 = vpack.c.b16 %v475, %v474
      %v481 = vpack.c.b16 %v477, %v476
      %v487 = vsel %vm255, %v461, 0
      %489 = vmatpush.bf16.msra.mxu0 0
      %490 = vmatpush.bf16.msra.mxu0 0
      %491 = vmatpush.bf16.msra.mxu0 0
      %492 = vmatpush.bf16.msra.mxu0 0
      %493 = vmatpush.bf16.msra.mxu0 %v481
      %494 = vmatpush.bf16.msra.mxu0 %v480
      %495 = vmatpush.bf16.msra.mxu0 %v479
      %496 = vmatpush.bf16.msra.mxu0 %v478
      %497 = vmatmul.bf16.gmra.mxu0 %v487
      %v498 = vpop.f32.mrf.mxu0
      %v499 = vadd.f32 0.0, %v498
      %v500 = vpop.f32.mrf.mxu0
      %v501 = vadd.f32 0.0, %v500
      %502 = vdwg.mxu0
      %v503 = vadd.f32 %v436, %v499
      %v504 = vadd.f32 %v437, %v501
      %v505 = vld [vmem:[%s192] sm:$0x8]
      %s506 = scalar_lea.vmem %s1, 160
      %v507 = vld [vmem:[%s506] sm:$0xf]
      %v508 = vld [vmem:[%s506 + $0x4] sm:$0xf]
      %v509 = vld [vmem:[%s506 + $0x8] sm:$0xf]
      %v510 = vld [vmem:[%s506 + $0xc] sm:$0xf]
      %v511 = vld [vmem:[%s506 + $0x10] sm:$0xf]
      %v512 = vld [vmem:[%s506 + $0x14] sm:$0xf]
      %v513 = vld [vmem:[%s506 + $0x18] sm:$0xf]
      %v514 = vld [vmem:[%s506 + $0x1c] sm:$0xf]
      %v516 = vunpack.c.l.b16 %v505
      %v517 = vpack.c.b16 %v452, %v516
      %v518 = vrot.slane %v517, 3
      %v527 = vunpack.c.l.b16 %v507
      %v528 = vunpack.c.l.b16 %v508
      %v529 = vunpack.c.l.b16 %v509
      %v530 = vunpack.c.l.b16 %v510
      %v531 = vunpack.c.l.b16 %v511
      %v532 = vunpack.c.l.b16 %v512
      %v533 = vunpack.c.l.b16 %v513
      %v534 = vunpack.c.l.b16 %v514
      %v535 = vpack.c.b16 %v528, %v527
      %v536 = vpack.c.b16 %v530, %v529
      %v537 = vpack.c.b16 %v532, %v531
      %v538 = vpack.c.b16 %v534, %v533
      %v544 = vsel %vm255, %v518, 0
      %546 = vmatpush.bf16.msra.mxu0 0
      %547 = vmatpush.bf16.msra.mxu0 0
      %548 = vmatpush.bf16.msra.mxu0 0
      %549 = vmatpush.bf16.msra.mxu0 0
      %550 = vmatpush.bf16.msra.mxu0 %v538
      %551 = vmatpush.bf16.msra.mxu0 %v537
      %552 = vmatpush.bf16.msra.mxu0 %v536
      %553 = vmatpush.bf16.msra.mxu0 %v535
      %554 = vmatmul.bf16.gmra.mxu0 %v544
      %v555 = vpop.f32.mrf.mxu0
      %v556 = vadd.f32 0.0, %v555
      %v557 = vpop.f32.mrf.mxu0
      %v558 = vadd.f32 0.0, %v557
      %559 = vdwg.mxu0
      %v560 = vadd.f32 %v503, %v556
      %v561 = vadd.f32 %v504, %v558
      %v562 = vld [vmem:[%s192] sm:$0x8]
      %v563 = vld [vmem:[%s192 + $0x4] sm:$0xf]
      %v564 = vld [vmem:[%s192 + $0x8] sm:$0x1]
      %s565 = scalar_lea.vmem %s1, 192
      %v566 = vld [vmem:[%s565] sm:$0xf]
      %v567 = vld [vmem:[%s565 + $0x4] sm:$0xf]
      %v568 = vld [vmem:[%s565 + $0x8] sm:$0xf]
      %v569 = vld [vmem:[%s565 + $0xc] sm:$0xf]
      %v570 = vld [vmem:[%s565 + $0x10] sm:$0xf]
      %v571 = vld [vmem:[%s565 + $0x14] sm:$0xf]
      %v572 = vld [vmem:[%s565 + $0x18] sm:$0xf]
      %v573 = vld [vmem:[%s565 + $0x1c] sm:$0xf]
      %v577 = vunpack.c.l.b16 %v562
      %v578 = vunpack.c.l.b16 %v563
      %v579 = vunpack.c.l.b16 %v564
      %v580 = vpack.c.b16 %v578, %v577
      %v581 = vpack.c.b16 %v579, %v579
      %vm582 = vsmask.f32 4352
      %v584 = vshrl.u32 %v580, 16
      %v586 = vrot.slane %v584, 3
      %v587 = vshll.u32 %v580, 16
      %v589 = vrot.slane %v587, 4
      %v590 = vor.u32 %v586, %v589
      %v592 = vshll.u32 %v581, 16
      %v594 = vrot.slane %v592, 4
      %v595 = vsel %vm582, %v590, %v594
      %v604 = vunpack.c.l.b16 %v566
      %v605 = vunpack.c.l.b16 %v567
      %v606 = vunpack.c.l.b16 %v568
      %v607 = vunpack.c.l.b16 %v569
      %v608 = vunpack.c.l.b16 %v570
      %v609 = vunpack.c.l.b16 %v571
      %v610 = vunpack.c.l.b16 %v572
      %v611 = vunpack.c.l.b16 %v573
      %v612 = vpack.c.b16 %v605, %v604
      %v613 = vpack.c.b16 %v607, %v606
      %v614 = vpack.c.b16 %v609, %v608
      %v615 = vpack.c.b16 %v611, %v610
      %v621 = vsel %vm255, %v595, 0
      %623 = vmatpush.bf16.msra.mxu0 0
      %624 = vmatpush.bf16.msra.mxu0 0
      %625 = vmatpush.bf16.msra.mxu0 0
      %626 = vmatpush.bf16.msra.mxu0 0
      %627 = vmatpush.bf16.msra.mxu0 %v615
      %628 = vmatpush.bf16.msra.mxu0 %v614
      %629 = vmatpush.bf16.msra.mxu0 %v613
      %630 = vmatpush.bf16.msra.mxu0 %v612
      %631 = vmatmul.bf16.gmra.mxu0 %v621
      %v632 = vpop.f32.mrf.mxu0
      %v633 = vadd.f32 0.0, %v632
      %v634 = vpop.f32.mrf.mxu0
      %v635 = vadd.f32 0.0, %v634
      %636 = vdwg.mxu0
      %v637 = vadd.f32 %v560, %v633
      %v638 = vadd.f32 %v561, %v635
      %s639 = scalar_lea.vmem %s1, 224
      %v640 = vld [vmem:[%s639] sm:$0xf]
      %v641 = vld [vmem:[%s639 + $0x4] sm:$0xf]
      %v642 = vld [vmem:[%s639 + $0x8] sm:$0xf]
      %v643 = vld [vmem:[%s639 + $0xc] sm:$0xf]
      %v644 = vld [vmem:[%s639 + $0x10] sm:$0xf]
      %v645 = vld [vmem:[%s639 + $0x14] sm:$0xf]
      %v646 = vld [vmem:[%s639 + $0x18] sm:$0xf]
      %v647 = vld [vmem:[%s639 + $0x1c] sm:$0xf]
      %v648 = vpack.c.b16 %v579, %v578
      %v657 = vunpack.c.l.b16 %v640
      %v658 = vunpack.c.l.b16 %v641
      %v659 = vunpack.c.l.b16 %v642
      %v660 = vunpack.c.l.b16 %v643
      %v661 = vunpack.c.l.b16 %v644
      %v662 = vunpack.c.l.b16 %v645
      %v663 = vunpack.c.l.b16 %v646
      %v664 = vunpack.c.l.b16 %v647
      %v665 = vpack.c.b16 %v658, %v657
      %v666 = vpack.c.b16 %v660, %v659
      %v667 = vpack.c.b16 %v662, %v661
      %v668 = vpack.c.b16 %v664, %v663
      %v674 = vsel %vm255, %v648, 0
      %676 = vmatpush.bf16.msra.mxu0 0
      %677 = vmatpush.bf16.msra.mxu0 0
      %678 = vmatpush.bf16.msra.mxu0 0
      %679 = vmatpush.bf16.msra.mxu0 0
      %680 = vmatpush.bf16.msra.mxu0 %v668
      %681 = vmatpush.bf16.msra.mxu0 %v667
      %682 = vmatpush.bf16.msra.mxu0 %v666
      %683 = vmatpush.bf16.msra.mxu0 %v665
      %684 = vmatmul.bf16.gmra.mxu0 %v674
      %v685 = vpop.f32.mrf.mxu0
      %v686 = vadd.f32 0.0, %v685
      %v687 = vpop.f32.mrf.mxu0
      %v688 = vadd.f32 0.0, %v687
      %689 = vdwg.mxu0
      %v690 = vadd.f32 %v637, %v686
      %v691 = vadd.f32 %v638, %v688
      %v692 = vld [vmem:[%s192 + $0x4] sm:$0xe]
      %v693 = vld [vmem:[%s192 + $0x8] sm:$0x3]
      %s694 = scalar_lea.vmem %s1, 256
      %v695 = vld [vmem:[%s694] sm:$0xf]
      %v696 = vld [vmem:[%s694 + $0x4] sm:$0xf]
      %v697 = vld [vmem:[%s694 + $0x8] sm:$0xf]
      %v698 = vld [vmem:[%s694 + $0xc] sm:$0xf]
      %v699 = vld [vmem:[%s694 + $0x10] sm:$0xf]
      %v700 = vld [vmem:[%s694 + $0x14] sm:$0xf]
      %v701 = vld [vmem:[%s694 + $0x18] sm:$0xf]
      %v702 = vld [vmem:[%s694 + $0x1c] sm:$0xf]
      %v705 = vunpack.c.l.b16 %v692
      %v706 = vunpack.c.l.b16 %v693
      %v707 = vpack.c.b16 %v706, %v705
      %v708 = vrot.slane %v707, 1
      %v717 = vunpack.c.l.b16 %v695
      %v718 = vunpack.c.l.b16 %v696
      %v719 = vunpack.c.l.b16 %v697
      %v720 = vunpack.c.l.b16 %v698
      %v721 = vunpack.c.l.b16 %v699
      %v722 = vunpack.c.l.b16 %v700
      %v723 = vunpack.c.l.b16 %v701
      %v724 = vunpack.c.l.b16 %v702
      %v725 = vpack.c.b16 %v718, %v717
      %v726 = vpack.c.b16 %v720, %v719
      %v727 = vpack.c.b16 %v722, %v721
      %v728 = vpack.c.b16 %v724, %v723
      %v734 = vsel %vm255, %v708, 0
      %736 = vmatpush.bf16.msra.mxu0 0
      %737 = vmatpush.bf16.msra.mxu0 0
      %738 = vmatpush.bf16.msra.mxu0 0
      %739 = vmatpush.bf16.msra.mxu0 0
      %740 = vmatpush.bf16.msra.mxu0 %v728
      %741 = vmatpush.bf16.msra.mxu0 %v727
      %742 = vmatpush.bf16.msra.mxu0 %v726
      %743 = vmatpush.bf16.msra.mxu0 %v725
      %744 = vmatmul.bf16.gmra.mxu0 %v734
      %v745 = vpop.f32.mrf.mxu0
      %v746 = vadd.f32 0.0, %v745
      %v747 = vpop.f32.mrf.mxu0
      %v748 = vadd.f32 0.0, %v747
      %749 = vdwg.mxu0
      %v750 = vadd.f32 %v690, %v746
      %v751 = vadd.f32 %v691, %v748
      %v752 = vld [vmem:[%s192 + $0x8] sm:$0x7]
      %s753 = scalar_lea.vmem %s1, 288
      %v754 = vld [vmem:[%s753] sm:$0xf]
      %v755 = vld [vmem:[%s753 + $0x4] sm:$0xf]
      %v756 = vld [vmem:[%s753 + $0x8] sm:$0xf]
      %v757 = vld [vmem:[%s753 + $0xc] sm:$0xf]
      %v758 = vld [vmem:[%s753 + $0x10] sm:$0xf]
      %v759 = vld [vmem:[%s753 + $0x14] sm:$0xf]
      %v760 = vld [vmem:[%s753 + $0x18] sm:$0xf]
      %v761 = vld [vmem:[%s753 + $0x1c] sm:$0xf]
      %v763 = vunpack.c.l.b16 %v752
      %v764 = vpack.c.b16 %v763, %v705
      %v766 = vshrl.u32 %v764, 16
      %v768 = vrot.slane %v766, 1
      %v769 = vshll.u32 %v764, 16
      %v771 = vrot.slane %v769, 2
      %v772 = vor.u32 %v768, %v771
      %v781 = vunpack.c.l.b16 %v754
      %v782 = vunpack.c.l.b16 %v755
      %v783 = vunpack.c.l.b16 %v756
      %v784 = vunpack.c.l.b16 %v757
      %v785 = vunpack.c.l.b16 %v758
      %v786 = vunpack.c.l.b16 %v759
      %v787 = vunpack.c.l.b16 %v760
      %v788 = vunpack.c.l.b16 %v761
      %v789 = vpack.c.b16 %v782, %v781
      %v790 = vpack.c.b16 %v784, %v783
      %v791 = vpack.c.b16 %v786, %v785
      %v792 = vpack.c.b16 %v788, %v787
      %v798 = vsel %vm255, %v772, 0
      %800 = vmatpush.bf16.msra.mxu0 0
      %801 = vmatpush.bf16.msra.mxu0 0
      %802 = vmatpush.bf16.msra.mxu0 0
      %803 = vmatpush.bf16.msra.mxu0 0
      %804 = vmatpush.bf16.msra.mxu0 %v792
      %805 = vmatpush.bf16.msra.mxu0 %v791
      %806 = vmatpush.bf16.msra.mxu0 %v790
      %807 = vmatpush.bf16.msra.mxu0 %v789
      %808 = vmatmul.bf16.gmra.mxu0 %v798
      %v809 = vpop.f32.mrf.mxu0
      %v810 = vadd.f32 0.0, %v809
      %v811 = vpop.f32.mrf.mxu0
      %v812 = vadd.f32 0.0, %v811
      %813 = vdwg.mxu0
      %v814 = vadd.f32 %v750, %v810
      %v815 = vadd.f32 %v751, %v812
      %v816 = vld [vmem:[%s192 + $0x4] sm:$0xc]
      %s817 = scalar_lea.vmem %s1, 320
      %v818 = vld [vmem:[%s817] sm:$0xf]
      %v819 = vld [vmem:[%s817 + $0x4] sm:$0xf]
      %v820 = vld [vmem:[%s817 + $0x8] sm:$0xf]
      %v821 = vld [vmem:[%s817 + $0xc] sm:$0xf]
      %v822 = vld [vmem:[%s817 + $0x10] sm:$0xf]
      %v823 = vld [vmem:[%s817 + $0x14] sm:$0xf]
      %v824 = vld [vmem:[%s817 + $0x18] sm:$0xf]
      %v825 = vld [vmem:[%s817 + $0x1c] sm:$0xf]
      %v827 = vunpack.c.l.b16 %v816
      %v828 = vpack.c.b16 %v763, %v827
      %v829 = vrot.slane %v828, 2
      %v838 = vunpack.c.l.b16 %v818
      %v839 = vunpack.c.l.b16 %v819
      %v840 = vunpack.c.l.b16 %v820
      %v841 = vunpack.c.l.b16 %v821
      %v842 = vunpack.c.l.b16 %v822
      %v843 = vunpack.c.l.b16 %v823
      %v844 = vunpack.c.l.b16 %v824
      %v845 = vunpack.c.l.b16 %v825
      %v846 = vpack.c.b16 %v839, %v838
      %v847 = vpack.c.b16 %v841, %v840
      %v848 = vpack.c.b16 %v843, %v842
      %v849 = vpack.c.b16 %v845, %v844
      %v855 = vsel %vm255, %v829, 0
      %857 = vmatpush.bf16.msra.mxu0 0
      %858 = vmatpush.bf16.msra.mxu0 0
      %859 = vmatpush.bf16.msra.mxu0 0
      %860 = vmatpush.bf16.msra.mxu0 0
      %861 = vmatpush.bf16.msra.mxu0 %v849
      %862 = vmatpush.bf16.msra.mxu0 %v848
      %863 = vmatpush.bf16.msra.mxu0 %v847
      %864 = vmatpush.bf16.msra.mxu0 %v846
      %865 = vmatmul.bf16.gmra.mxu0 %v855
      %v866 = vpop.f32.mrf.mxu0
      %v867 = vadd.f32 0.0, %v866
      %v868 = vpop.f32.mrf.mxu0
      %v869 = vadd.f32 0.0, %v868
      %870 = vdwg.mxu0
      %v871 = vadd.f32 %v814, %v867
      %v872 = vadd.f32 %v815, %v869
      %v873 = vld [vmem:[%s192 + $0x8] sm:$0xf]
      %s874 = scalar_lea.vmem %s1, 352
      %v875 = vld [vmem:[%s874] sm:$0xf]
      %v876 = vld [vmem:[%s874 + $0x4] sm:$0xf]
      %v877 = vld [vmem:[%s874 + $0x8] sm:$0xf]
      %v878 = vld [vmem:[%s874 + $0xc] sm:$0xf]
      %v879 = vld [vmem:[%s874 + $0x10] sm:$0xf]
      %v880 = vld [vmem:[%s874 + $0x14] sm:$0xf]
      %v881 = vld [vmem:[%s874 + $0x18] sm:$0xf]
      %v882 = vld [vmem:[%s874 + $0x1c] sm:$0xf]
      %v884 = vunpack.c.l.b16 %v873
      %v885 = vpack.c.b16 %v884, %v827
      %v887 = vshrl.u32 %v885, 16
      %v889 = vrot.slane %v887, 2
      %v890 = vshll.u32 %v885, 16
      %v892 = vrot.slane %v890, 3
      %v893 = vor.u32 %v889, %v892
      %v902 = vunpack.c.l.b16 %v875
      %v903 = vunpack.c.l.b16 %v876
      %v904 = vunpack.c.l.b16 %v877
      %v905 = vunpack.c.l.b16 %v878
      %v906 = vunpack.c.l.b16 %v879
      %v907 = vunpack.c.l.b16 %v880
      %v908 = vunpack.c.l.b16 %v881
      %v909 = vunpack.c.l.b16 %v882
      %v910 = vpack.c.b16 %v903, %v902
      %v911 = vpack.c.b16 %v905, %v904
      %v912 = vpack.c.b16 %v907, %v906
      %v913 = vpack.c.b16 %v909, %v908
      %v919 = vsel %vm255, %v893, 0
      %921 = vmatpush.bf16.msra.mxu0 0
      %922 = vmatpush.bf16.msra.mxu0 0
      %923 = vmatpush.bf16.msra.mxu0 0
      %924 = vmatpush.bf16.msra.mxu0 0
      %925 = vmatpush.bf16.msra.mxu0 %v913
      %926 = vmatpush.bf16.msra.mxu0 %v912
      %927 = vmatpush.bf16.msra.mxu0 %v911
      %928 = vmatpush.bf16.msra.mxu0 %v910
      %929 = vmatmul.bf16.gmra.mxu0 %v919
      %v930 = vpop.f32.mrf.mxu0
      %v931 = vadd.f32 0.0, %v930
      %v932 = vpop.f32.mrf.mxu0
      %v933 = vadd.f32 0.0, %v932
      %934 = vdwg.mxu0
      %v935 = vadd.f32 %v871, %v931
      %v936 = vadd.f32 %v872, %v933
      %v937 = vld [vmem:[%s192 + $0x4] sm:$0x8]
      %v938 = vld [vmem:[%s192 + $0x8] sm:$0xf]
      %v939 = vld [vmem:[%s192 + $0xc] sm:$0x1]
      %s940 = scalar_lea.vmem %s1, 384
      %v941 = vld [vmem:[%s940] sm:$0xf]
      %v942 = vld [vmem:[%s940 + $0x4] sm:$0xf]
      %v943 = vld [vmem:[%s940 + $0x8] sm:$0xf]
      %v944 = vld [vmem:[%s940 + $0xc] sm:$0xf]
      %v945 = vld [vmem:[%s940 + $0x10] sm:$0xf]
      %v946 = vld [vmem:[%s940 + $0x14] sm:$0xf]
      %v947 = vld [vmem:[%s940 + $0x18] sm:$0xf]
      %v948 = vld [vmem:[%s940 + $0x1c] sm:$0xf]
      %v952 = vunpack.c.l.b16 %v937
      %v953 = vunpack.c.l.b16 %v938
      %v954 = vunpack.c.l.b16 %v939
      %v955 = vpack.c.b16 %v953, %v952
      %v956 = vpack.c.b16 %v954, %v954
      %v958 = vshrl.u32 %v955, 16
      %v960 = vrot.slane %v958, 3
      %v961 = vshll.u32 %v955, 16
      %v963 = vrot.slane %v961, 4
      %v964 = vor.u32 %v960, %v963
      %v966 = vshll.u32 %v956, 16
      %v968 = vrot.slane %v966, 4
      %v969 = vsel %vm582, %v964, %v968
      %v978 = vunpack.c.l.b16 %v941
      %v979 = vunpack.c.l.b16 %v942
      %v980 = vunpack.c.l.b16 %v943
      %v981 = vunpack.c.l.b16 %v944
      %v982 = vunpack.c.l.b16 %v945
      %v983 = vunpack.c.l.b16 %v946
      %v984 = vunpack.c.l.b16 %v947
      %v985 = vunpack.c.l.b16 %v948
      %v986 = vpack.c.b16 %v979, %v978
      %v987 = vpack.c.b16 %v981, %v980
      %v988 = vpack.c.b16 %v983, %v982
      %v989 = vpack.c.b16 %v985, %v984
      %v995 = vsel %vm255, %v969, 0
      %997 = vmatpush.bf16.msra.mxu0 0
      %998 = vmatpush.bf16.msra.mxu0 0
      %999 = vmatpush.bf16.msra.mxu0 0
      %1000 = vmatpush.bf16.msra.mxu0 0
      %1001 = vmatpush.bf16.msra.mxu0 %v989
      %1002 = vmatpush.bf16.msra.mxu0 %v988
      %1003 = vmatpush.bf16.msra.mxu0 %v987
      %1004 = vmatpush.bf16.msra.mxu0 %v986
      %1005 = vmatmul.bf16.gmra.mxu0 %v995
      %v1006 = vpop.f32.mrf.mxu0
      %v1007 = vadd.f32 0.0, %v1006
      %v1008 = vpop.f32.mrf.mxu0
      %v1009 = vadd.f32 0.0, %v1008
      %1010 = vdwg.mxu0
      %v1011 = vadd.f32 %v935, %v1007
      %v1012 = vadd.f32 %v936, %v1009
      %s1013 = scalar_lea.vmem %s1, 416
      %v1014 = vld [vmem:[%s1013] sm:$0xf]
      %v1015 = vld [vmem:[%s1013 + $0x4] sm:$0xf]
      %v1016 = vld [vmem:[%s1013 + $0x8] sm:$0xf]
      %v1017 = vld [vmem:[%s1013 + $0xc] sm:$0xf]
      %v1018 = vld [vmem:[%s1013 + $0x10] sm:$0xf]
      %v1019 = vld [vmem:[%s1013 + $0x14] sm:$0xf]
      %v1020 = vld [vmem:[%s1013 + $0x18] sm:$0xf]
      %v1021 = vld [vmem:[%s1013 + $0x1c] sm:$0xf]
      %v1022 = vpack.c.b16 %v954, %v953
      %v1031 = vunpack.c.l.b16 %v1014
      %v1032 = vunpack.c.l.b16 %v1015
      %v1033 = vunpack.c.l.b16 %v1016
      %v1034 = vunpack.c.l.b16 %v1017
      %v1035 = vunpack.c.l.b16 %v1018
      %v1036 = vunpack.c.l.b16 %v1019
      %v1037 = vunpack.c.l.b16 %v1020
      %v1038 = vunpack.c.l.b16 %v1021
      %v1039 = vpack.c.b16 %v1032, %v1031
      %v1040 = vpack.c.b16 %v1034, %v1033
      %v1041 = vpack.c.b16 %v1036, %v1035
      %v1042 = vpack.c.b16 %v1038, %v1037
      %v1048 = vsel %vm255, %v1022, 0
      %1050 = vmatpush.bf16.msra.mxu0 0
      %1051 = vmatpush.bf16.msra.mxu0 0
      %1052 = vmatpush.bf16.msra.mxu0 0
      %1053 = vmatpush.bf16.msra.mxu0 0
      %1054 = vmatpush.bf16.msra.mxu0 %v1042
      %1055 = vmatpush.bf16.msra.mxu0 %v1041
      %1056 = vmatpush.bf16.msra.mxu0 %v1040
      %1057 = vmatpush.bf16.msra.mxu0 %v1039
      %1058 = vmatmul.bf16.gmra.mxu0 %v1048
      %v1059 = vpop.f32.mrf.mxu0
      %v1060 = vadd.f32 0.0, %v1059
      %v1061 = vpop.f32.mrf.mxu0
      %v1062 = vadd.f32 0.0, %v1061
      %1063 = vdwg.mxu0
      %v1064 = vadd.f32 %v1011, %v1060
      %v1065 = vadd.f32 %v1012, %v1062
      %v1066 = vld [vmem:[%s192 + $0xc] sm:$0x3]
      %s1067 = scalar_lea.vmem %s1, 448
      %v1068 = vld [vmem:[%s1067] sm:$0xf]
      %v1069 = vld [vmem:[%s1067 + $0x4] sm:$0xf]
      %v1070 = vld [vmem:[%s1067 + $0x8] sm:$0xf]
      %v1071 = vld [vmem:[%s1067 + $0xc] sm:$0xf]
      %v1072 = vld [vmem:[%s1067 + $0x10] sm:$0xf]
      %v1073 = vld [vmem:[%s1067 + $0x14] sm:$0xf]
      %v1074 = vld [vmem:[%s1067 + $0x18] sm:$0xf]
      %v1075 = vld [vmem:[%s1067 + $0x1c] sm:$0xf]
      %v1077 = vunpack.c.l.b16 %v1066
      %v1078 = vpack.c.b16 %v1077, %v953
      %v1080 = vshrl.u32 %v1078, 16
      %v1082 = vshll.u32 %v1078, 16
      %v1084 = vrot.slane %v1082, 1
      %v1085 = vor.u32 %v1080, %v1084
      %v1094 = vunpack.c.l.b16 %v1068
      %v1095 = vunpack.c.l.b16 %v1069
      %v1096 = vunpack.c.l.b16 %v1070
      %v1097 = vunpack.c.l.b16 %v1071
      %v1098 = vunpack.c.l.b16 %v1072
      %v1099 = vunpack.c.l.b16 %v1073
      %v1100 = vunpack.c.l.b16 %v1074
      %v1101 = vunpack.c.l.b16 %v1075
      %v1102 = vpack.c.b16 %v1095, %v1094
      %v1103 = vpack.c.b16 %v1097, %v1096
      %v1104 = vpack.c.b16 %v1099, %v1098
      %v1105 = vpack.c.b16 %v1101, %v1100
      %v1111 = vsel %vm255, %v1085, 0
      %1113 = vmatpush.bf16.msra.mxu0 0
      %1114 = vmatpush.bf16.msra.mxu0 0
      %1115 = vmatpush.bf16.msra.mxu0 0
      %1116 = vmatpush.bf16.msra.mxu0 0
      %1117 = vmatpush.bf16.msra.mxu0 %v1105
      %1118 = vmatpush.bf16.msra.mxu0 %v1104
      %1119 = vmatpush.bf16.msra.mxu0 %v1103
      %1120 = vmatpush.bf16.msra.mxu0 %v1102
      %1121 = vmatmul.bf16.gmra.mxu0 %v1111
      %v1122 = vpop.f32.mrf.mxu0
      %v1123 = vadd.f32 0.0, %v1122
      %v1124 = vpop.f32.mrf.mxu0
      %v1125 = vadd.f32 0.0, %v1124
      %1126 = vdwg.mxu0
      %v1127 = vadd.f32 %v1064, %v1123
      %v1128 = vadd.f32 %v1065, %v1125
      %v1129 = vld [vmem:[%s192 + $0x8] sm:$0xe]
      %s1130 = scalar_lea.vmem %s1, 480
      %v1131 = vld [vmem:[%s1130] sm:$0xf]
      %v1132 = vld [vmem:[%s1130 + $0x4] sm:$0xf]
      %v1133 = vld [vmem:[%s1130 + $0x8] sm:$0xf]
      %v1134 = vld [vmem:[%s1130 + $0xc] sm:$0xf]
      %v1135 = vld [vmem:[%s1130 + $0x10] sm:$0xf]
      %v1136 = vld [vmem:[%s1130 + $0x14] sm:$0xf]
      %v1137 = vld [vmem:[%s1130 + $0x18] sm:$0xf]
      %v1138 = vld [vmem:[%s1130 + $0x1c] sm:$0xf]
      %v1140 = vunpack.c.l.b16 %v1129
      %v1141 = vpack.c.b16 %v1077, %v1140
      %v1142 = vrot.slane %v1141, 1
      %v1151 = vunpack.c.l.b16 %v1131
      %v1152 = vunpack.c.l.b16 %v1132
      %v1153 = vunpack.c.l.b16 %v1133
      %v1154 = vunpack.c.l.b16 %v1134
      %v1155 = vunpack.c.l.b16 %v1135
      %v1156 = vunpack.c.l.b16 %v1136
      %v1157 = vunpack.c.l.b16 %v1137
      %v1158 = vunpack.c.l.b16 %v1138
      %v1159 = vpack.c.b16 %v1152, %v1151
      %v1160 = vpack.c.b16 %v1154, %v1153
      %v1161 = vpack.c.b16 %v1156, %v1155
      %v1162 = vpack.c.b16 %v1158, %v1157
      %v1168 = vsel %vm255, %v1142, 0
      %1170 = vmatpush.bf16.msra.mxu0 0
      %1171 = vmatpush.bf16.msra.mxu0 0
      %1172 = vmatpush.bf16.msra.mxu0 0
      %1173 = vmatpush.bf16.msra.mxu0 0
      %1174 = vmatpush.bf16.msra.mxu0 %v1162
      %1175 = vmatpush.bf16.msra.mxu0 %v1161
      %1176 = vmatpush.bf16.msra.mxu0 %v1160
      %1177 = vmatpush.bf16.msra.mxu0 %v1159
      %1178 = vmatmul.bf16.gmra.mxu0 %v1168
      %v1179 = vpop.f32.mrf.mxu0
      %v1180 = vadd.f32 0.0, %v1179
      %v1181 = vpop.f32.mrf.mxu0
      %v1182 = vadd.f32 0.0, %v1181
      %1183 = vdwg.mxu0
      %v1184 = vadd.f32 %v1127, %v1180
      %v1185 = vadd.f32 %v1128, %v1182
      %v1186 = vld [vmem:[%s2] sm:$0x1]
      %v1188 = vperm.slane %v1186, 0
      %v1190 = vmul.f32 %v1184, %v1188
      %v1191 = vmul.f32 %v1185, %v1188
      %v1192 = vld [vmem:[%s3] sm:$0x1]
      %v1194 = vperm.slane %v1192, 0
      %v1196 = vadd.f32 %v1190, %v1194
      %v1197 = vadd.f32 %v1191, %v1194
      %1198 = vst [vmem:[%s197] sm:$0xff] %v1196
      %1199 = vst [vmem:[%s197 + $0x8] sm:$0x3] %v1197
      %p1200 = scmp.lt.s32.totalorder %s15, 1
      %s1201 = scalar_select %p1200, %s15, 1
      %s1202 = smul.addr %s1201, 2
      %s1203 = smul.addr %s1202, 8
      %s1204 = scalar_lea.vmem %s4, %s1203
      // Predicated region
      $region37: #{nlayer_discriminator_forward.9} parent=35 // pred_check
        %p1205 = pneg %p122
      $region38: #{nlayer_discriminator_forward.9} parent=35 // pred_check_branch
        %1207 = sbr.rel (%p1205) target = $region40
      $region39: #{nlayer_discriminator_forward.9} parent=35 // pred_region
        _
      $region40: #{nlayer_discriminator_forward.9} parent=35 // pred_fallthru
        _
    $region36: #{nlayer_discriminator_forward.9} parent=5 // pred_fallthru
      _
    %p1208 = scmp.le.s32.totalorder 2, %s10
    // Predicated region
    $region41: #{nlayer_discriminator_forward.9} parent=5 // pred_check
      %p1209 = pneg %p1208
    $region42: #{nlayer_discriminator_forward.9} parent=5 // pred_check_branch
      %1211 = sbr.rel (%p1209) target = $region44
    $region43: #{nlayer_discriminator_forward.9} parent=5 // pred_region
      %s1212 = ssub.s32 %s10, 2
      // Predicated region
      $region45: #{nlayer_discriminator_forward.9} parent=43 // pred_check
        %p1213 = pneg %p128
      $region46: #{nlayer_discriminator_forward.9} parent=43 // pred_check_branch
        %1215 = sbr.rel (%p1213) target = $region48
      $region47: #{nlayer_discriminator_forward.9} parent=43 // pred_region
        %p1216 = scmp.lt.s32.totalorder %s16, 1
        %s1217 = scalar_select %p1216, %s16, 1
        %s1218 = smul.addr %s1217, 2
        %s1219 = smul.addr %s1218, 8
        %s1220 = scalar_lea.vmem %s4, %s1219
      $region48: #{nlayer_discriminator_forward.9} parent=43 // pred_fallthru
        _
    $region44: #{nlayer_discriminator_forward.9} parent=5 // pred_fallthru
      _
  $region6: #{nlayer_discriminator_forward.9} parent=0 // loop_footer
    %s14 = sadd.s32 1, %s10
  $region7: #{nlayer_discriminator_forward.9} parent=0 // loop_footer_branch
    %9 = sbr.rel target = $region3
  $region8: #{nlayer_discriminator_forward.9} parent=0 // loop_exit
    _

</llo_original>
